<compile_context>
chip_gen: v5e
topology: v5e:2x2
jax: 0.10.0
libtpu: 0.0.40
codegen_flags: <defaults>
</compile_context>

<pallas_src>
import functools

import jax
import jax.numpy as jnp
from jax.experimental import pallas as pl
from jax.experimental.pallas import tpu as pltpu

EPS = 1e-5  # nn.BatchNorm2d default


# ---------------------------------------------------------------------------
# Kernel bodies
# ---------------------------------------------------------------------------

def _write_stats(stats_ref, y):
    """Per-tile partial BN statistics: rows = [sum, sum-of-squares] per channel."""
    stats_ref[0:1, :] = jnp.sum(y, axis=0, keepdims=True)
    stats_ref[1:2, :] = jnp.sum(y * y, axis=0, keepdims=True)


def conv1x1_kernel(x_ref, w_ref, y_ref, stats_ref):
    """Stage 1: 1x1 conv (x @ W), emit pre-BN activations + partial BN stats."""
    # x_ref: (HW, Cin) bf16, w_ref: (Cin, C) bf16 -> MXU, f32 accumulation.
    y = jnp.dot(x_ref[...], w_ref[...], preferred_element_type=jnp.float32)
    y_ref[...] = y
    _write_stats(stats_ref, y)


def bn_relu_conv1x1_kernel(x_ref, s_ref, t_ref, w_ref, y_ref, stats_ref):
    """Stage 3: folded BN (y*s + t) + ReLU, then 1x1 conv; emits stats."""
    h = jnp.maximum(x_ref[...] * s_ref[...] + t_ref[...], 0.0)   # f32 elementwise
    y = jnp.dot(h.astype(jnp.bfloat16), w_ref[...],
                preferred_element_type=jnp.float32)
    y_ref[...] = y
    _write_stats(stats_ref, y)


def bn_relu_conv3x3_kernel(x_ref, s_ref, t_ref, w_ref, y_ref, stats_ref,
                           pad_ref, *, H, W):
    """Stage 2: folded BN + ReLU, then 3x3 conv (pad=1) as ONE im2col matmul."""
    C = x_ref.shape[-1]
    h = jnp.maximum(x_ref[...] * s_ref[...] + t_ref[...], 0.0)   # (HW, C) f32

    # Zero only the halo border of the padded scratch; the interior is fully
    # overwritten below (no full-scratch zeroing every step).
    zrow = jnp.zeros((1, W + 2, C), jnp.float32)
    zcol = jnp.zeros((H + 2, 1, C), jnp.float32)
    pad_ref[0:1, :, :] = zrow
    pad_ref[H + 1:H + 2, :, :] = zrow
    pad_ref[:, 0:1, :] = zcol
    pad_ref[:, W + 1:W + 2, :] = zcol
    pad_ref[1:H + 1, 1:W + 1, :] = h.reshape(H, W, C)

    # im2col: concatenate the 9 shifted taps channel-wise (tap-major order,
    # matching w_ref = w3.reshape(9*C, C)) and do a single MXU matmul K = 9*C.
    cols = jnp.concatenate(
        [pad_ref[dh:dh + H, dw:dw + W, :] for dh in range(3) for dw in range(3)],
        axis=-1)                                   # (H, W, 9C)
    cols = cols.reshape(H * W, 9 * C)
    y = jnp.dot(cols.astype(jnp.bfloat16), w_ref[...],
                preferred_element_type=jnp.float32)
    y_ref[...] = y
    _write_stats(stats_ref, y)


def bn_relu_residual_kernel(y_ref, x_ref, s_ref, t_ref, o_ref):
    """Stage 4: folded BN3 + ReLU, residual add, ReLU. Lane-dense layout."""
    h = jnp.maximum(y_ref[...] * s_ref[...] + t_ref[...], 0.0)
    o_ref[...] = jnp.maximum(h + x_ref[...], 0.0)


# ---------------------------------------------------------------------------
# Wrapper / orchestration
# ---------------------------------------------------------------------------

def _fold_bn(stats, gamma, beta, count):
    """Reduce per-tile [sum, sumsq] and fold training-mode BN into scale/shift."""
    tot = jnp.sum(stats, axis=0)                               # (2, C)
    mean = tot[0] / count
    var = jnp.maximum(tot[1] / count - mean * mean, 0.0)       # biased variance
    scale = gamma[0] * jax.lax.rsqrt(var + EPS)
    shift = beta[0] - mean * scale
    return scale.reshape(1, -1), shift.reshape(1, -1)


def resblock_forward_nhwc(x_nhwc, p):
    N, H, W, Cin = x_nhwc.shape
    C = p["w1"].shape[1]
    C4 = p["w2"].shape[1]
    assert Cin == C4, "id_block=None residual requires in_channels == out_channel*4"
    HW = H * W
    count = float(N * HW)
    f32, bf16 = jnp.float32, jnp.bfloat16

    # Weights cast to bf16 once (MXU inputs).  Conv biases are not used in the
    # kernels (cancelled exactly by the BN batch-mean subtraction).
    w1 = p["w1"].astype(bf16)                       # (Cin, C)
    w3 = p["w3"].reshape(9 * C, C).astype(bf16)     # (9C, C), tap-major
    w2 = p["w2"].astype(bf16)                       # (C, C4)

    x3 = x_nhwc.reshape(N, HW, Cin)

    # One image per grid step; "parallel" lets v7x split the batch across its
    # two TensorCores.  All per-step buffers are tiny, so the default scoped
    # VMEM limit is ample (set vmem_limit_bytes when scaling the tile up).
    grid = (N,)
    par = pltpu.CompilerParams(dimension_semantics=("parallel",))

    def act_spec(c):        # per-image activation tile (leading dim squeezed)
        return pl.BlockSpec((None, HW, c), lambda i: (i, 0, 0))

    def stat_spec(c):       # per-tile [sum, sumsq] block
        return pl.BlockSpec((None, 2, c), lambda i: (i, 0, 0))

    def resident(shape):    # weights / folded BN params stay VMEM-resident
        return pl.BlockSpec(shape, lambda i: (0, 0))

    # --- stage 1: conv1 (1x1) -> pre-BN y1 + partial stats -------------------
    y1, st1 = pl.pallas_call(
        conv1x1_kernel,
        grid=grid,
        in_specs=[act_spec(Cin), resident((Cin, C))],
        out_specs=[act_spec(C), stat_spec(C)],
        out_shape=[jax.ShapeDtypeStruct((N, HW, C), f32),
                   jax.ShapeDtypeStruct((N, 2, C), f32)],
        compiler_params=par,
    )(x3.astype(bf16), w1)
    s1, t1 = _fold_bn(st1, p["g1"], p["be1"], count)

    # --- stage 2: bn1+relu -> conv3 (3x3 via im2col) -> pre-BN y2 + stats ----
    y2, st2 = pl.pallas_call(
        functools.partial(bn_relu_conv3x3_kernel, H=H, W=W),
        grid=grid,
        in_specs=[act_spec(C), resident((1, C)), resident((1, C)),
                  resident((9 * C, C))],
        out_specs=[act_spec(C), stat_spec(C)],
        out_shape=[jax.ShapeDtypeStruct((N, HW, C), f32),
                   jax.ShapeDtypeStruct((N, 2, C), f32)],
        scratch_shapes=[pltpu.VMEM((H + 2, W + 2, C), f32)],
        compiler_params=par,
    )(y1, s1, t1, w3)
    s2, t2 = _fold_bn(st2, p["g2"], p["be2"], count)

    # --- stage 3: bn2+relu -> conv1_2 (1x1) -> pre-BN y3 + stats -------------
    y3, st3 = pl.pallas_call(
        bn_relu_conv1x1_kernel,
        grid=grid,
        in_specs=[act_spec(C), resident((1, C)), resident((1, C)),
                  resident((C, C4))],
        out_specs=[act_spec(C4), stat_spec(C4)],
        out_shape=[jax.ShapeDtypeStruct((N, HW, C4), f32),
                   jax.ShapeDtypeStruct((N, 2, C4), f32)],
        compiler_params=par,
    )(y2, s2, t2, w2)
    s3, t3 = _fold_bn(st3, p["g3"], p["be3"], count)

    # --- stage 4: bn3+relu + residual + relu, lane-dense last dim = W*C4 -----
    WC = W * C4
    y3f = y3.reshape(N, H, WC)              # contiguous reshapes (free)
    xf = x_nhwc.reshape(N, H, WC)
    s3f = jnp.tile(s3, (1, W))              # channel pattern repeats every C4 lanes
    t3f = jnp.tile(t3, (1, W))
    img_spec = pl.BlockSpec((None, H, WC), lambda i: (i, 0, 0))
    out = pl.pallas_call(
        bn_relu_residual_kernel,
        grid=grid,
        in_specs=[img_spec, img_spec, resident((1, WC)), resident((1, WC))],
        out_specs=pl.BlockSpec((None, H, WC), lambda i: (i, 0, 0)),
        out_shape=jax.ShapeDtypeStruct((N, H, WC), f32),
        compiler_params=par,
    )(y3f, xf, s3f, t3f)
    return out.reshape(N, H, W, C4)


# ---------------------------------------------------------------------------
# Pure-JAX reference (faithful module semantics: conv biases, training-mode BN;
# matmul inputs cast to bf16 to match the kernel's declared MXU precision).
# ---------------------------------------------------------------------------

def resblock_reference_nhwc(x, p):
    N, H, W, _ = x.shape
    f32 = jnp.float32

    def mm(a, b):
        return jnp.einsum("nhwc,cd->nhwd", a.astype(jnp.bfloat16),
                          b.astype(jnp.bfloat16), preferred_element_type=f32)

    def bn_relu(y, g, b):
        mean = y.mean(axis=(0, 1, 2), keepdims=True)
        var = ((y - mean) ** 2).mean(axis=(0, 1, 2), keepdims=True)
        return jnp.maximum((y - mean) * jax.lax.rsqrt(var + EPS) * g + b, 0.0)

    h = mm(x, p["w1"]) + p["b1"]
    h = bn_relu(h, p["g1"], p["be1"])
    hp = jnp.pad(h, ((0, 0), (1, 1), (1, 1), (0, 0)))
    acc = jnp.zeros(h.shape[:3] + (p["w3"].shape[-1],), f32) + p["b3"]
    for t in range(9):
        dh, dw = t // 3, t % 3
        acc = acc + mm(hp[:, dh:dh + H, dw:dw + W, :], p["w3"][t])
    h = bn_relu(acc, p["g2"], p["be2"])
    h = mm(h, p["w2"]) + p["b2"]
    h = bn_relu(h, p["g3"], p["be3"])
    return jnp.maximum(h + x, 0.0)


def init_params(key, in_channels, out_channel, upsample=4):
    C, C4 = out_channel, out_channel * upsample
    ks = jax.random.split(key, 8)
    return {
        # conv1: 1x1, in_channels -> C   (stored as (Cin, C) for x @ W)
        "w1": 0.1 * jax.random.normal(ks[0], (in_channels, C), jnp.float32),
        "b1": 0.1 * jax.random.normal(ks[1], (1, C), jnp.float32),
        "g1": jnp.ones((1, C), jnp.float32),
        "be1": jnp.zeros((1, C), jnp.float32),
        # conv3: 3x3, C -> C   (stored as (9, C, C); tap t = dh*3 + dw)
        "w3": 0.1 * jax.random.normal(ks[2], (9, C, C), jnp.float32),
        "b3": 0.1 * jax.random.normal(ks[3], (1, C), jnp.float32),
        "g2": 1.0 + 0.1 * jax.random.normal(ks[4], (1, C), jnp.float32),
        "be2": 0.1 * jax.random.normal(ks[5], (1, C), jnp.float32),
        # conv1_2: 1x1, C -> C4
        "w2": 0.1 * jax.random.normal(ks[6], (C, C4), jnp.float32),
        "b2": 0.1 * jax.random.normal(ks[7], (1, C4), jnp.float32),
        "g3": jnp.ones((1, C4), jnp.float32),
        "be3": jnp.zeros((1, C4), jnp.float32),
    }


if __name__ == "__main__":
    # id_block=None, strides=1  =>  in_channels == out_channel * 4.
    N, H, W = 2, 16, 16
    out_channel = 4
    in_channels = out_channel * 4  # 16

    key = jax.random.PRNGKey(0)
    kx, kp = jax.random.split(key)
    x_nchw = jax.random.normal(kx, (N, in_channels, H, W), jnp.float32)  # PyTorch layout
    params = init_params(kp, in_channels, out_channel)

    x_nhwc = jnp.transpose(x_nchw, (0, 2, 3, 1))  # NCHW -> NHWC for the kernels

    fwd = jax.jit(resblock_forward_nhwc)
    out_nhwc = jax.block_until_ready(fwd(x_nhwc, params))
    out_nchw = jnp.transpose(out_nhwc, (0, 3, 1, 2))  # back to PyTorch NCHW

    ref = resblock_reference_nhwc(x_nhwc, params)
    assert out_nchw.shape == (N, in_channels, H, W)
    assert jnp.allclose(out_nhwc, ref, atol=2e-3, rtol=2e-3), "mismatch vs reference"

    print("KERNEL_OK")
</pallas_src>

<mosaic_0001>
module attributes {stable_mosaic.version = 11 : i64} {
  func.func @conv1x1_kernel(%arg0: i32, %arg1: memref<1x256x16xbf16, #tpu.memory_space<vmem>>, %arg2: memref<16x4xbf16, #tpu.memory_space<vmem>>, %arg3: memref<1x256x4xf32, #tpu.memory_space<vmem>>, %arg4: memref<1x2x4xf32, #tpu.memory_space<vmem>>) attributes {dimension_semantics = [#tpu.dimension_semantics<parallel>], iteration_bounds = array<i64: 2>, scalar_prefetch = 0 : i64, scratch_operands = 0 : i64, tpu.core_type = #tpu.core_type<tc>, window_params = [{transform_indices = @transform_0, window_bounds = array<i64: 1, 256, 16>}, {pipeline_mode = #tpu.pipeline_mode<synchronous>, transform_indices = @transform_1, window_bounds = array<i64: 16, 4>}, {transform_indices = @transform_2, window_bounds = array<i64: 1, 256, 4>}, {transform_indices = @transform_3, window_bounds = array<i64: 1, 2, 4>}]} {
    %c0 = arith.constant 0 : index
    %c0_0 = arith.constant 0 : index
    %c0_1 = arith.constant 0 : index
    %0 = vector.load %arg1[%c0, %c0_0, %c0_1] : memref<1x256x16xbf16, #tpu.memory_space<vmem>>, vector<1x256x16xbf16>
    %1 = vector.shape_cast %0 : vector<1x256x16xbf16> to vector<256x16xbf16>
    %c0_2 = arith.constant 0 : index
    %c0_3 = arith.constant 0 : index
    %2 = vector.load %arg2[%c0_2, %c0_3] : memref<16x4xbf16, #tpu.memory_space<vmem>>, vector<16x4xbf16>
    %cst = arith.constant dense<0.000000e+00> : vector<256x4xf32>
    %3 = tpu.matmul %1, %2, %cst {dimension_numbers = #tpu.dot_dimension_numbers<[1], [0], [0], [1], [0, 0, 1, 1], [], []>} : vector<256x16xbf16>, vector<16x4xbf16>, vector<256x4xf32> -> vector<256x4xf32>
    %c0_4 = arith.constant 0 : index
    %c0_5 = arith.constant 0 : index
    %c0_6 = arith.constant 0 : index
    %4 = vector.load %arg3[%c0_4, %c0_5, %c0_6] : memref<1x256x4xf32, #tpu.memory_space<vmem>>, vector<1x256x4xf32>
    %5 = vector.shape_cast %4 : vector<1x256x4xf32> to vector<256x4xf32>
    %6 = vector.shape_cast %3 : vector<256x4xf32> to vector<1x256x4xf32>
    tpu.vector_store %arg3[%c0_4, %c0_5, %c0_6], %6 {strides = array<i32>} : memref<1x256x4xf32, #tpu.memory_space<vmem>>, vector<1x256x4xf32>,
    %cst_7 = arith.constant dense<0.000000e+00> : vector<4xf32>
    %7 = vector.multi_reduction <add>, %3, %cst_7 [0] : vector<256x4xf32> to vector<4xf32>
    %8 = vector.shape_cast %7 : vector<4xf32> to vector<1x4xf32>
    %c0_8 = arith.constant 0 : index
    %c0_9 = arith.constant 0 : index
    %c0_10 = arith.constant 0 : index
    %9 = vector.load %arg4[%c0_8, %c0_9, %c0_10] : memref<1x2x4xf32, #tpu.memory_space<vmem>>, vector<1x1x4xf32>
    %10 = vector.shape_cast %9 : vector<1x1x4xf32> to vector<1x4xf32>
    %11 = vector.shape_cast %8 : vector<1x4xf32> to vector<1x1x4xf32>
    tpu.vector_store %arg4[%c0_8, %c0_9, %c0_10], %11 {strides = array<i32>} : memref<1x2x4xf32, #tpu.memory_space<vmem>>, vector<1x1x4xf32>,
    %12 = arith.mulf %3, %3 : vector<256x4xf32>
    %cst_11 = arith.constant dense<0.000000e+00> : vector<4xf32>
    %13 = vector.multi_reduction <add>, %12, %cst_11 [0] : vector<256x4xf32> to vector<4xf32>
    %14 = vector.shape_cast %13 : vector<4xf32> to vector<1x4xf32>
    %c0_12 = arith.constant 0 : index
    %c1 = arith.constant 1 : index
    %c0_13 = arith.constant 0 : index
    %15 = vector.load %arg4[%c0_12, %c1, %c0_13] : memref<1x2x4xf32, #tpu.memory_space<vmem>>, vector<1x1x4xf32>
    %16 = vector.shape_cast %15 : vector<1x1x4xf32> to vector<1x4xf32>
    %17 = vector.shape_cast %14 : vector<1x4xf32> to vector<1x1x4xf32>
    tpu.vector_store %arg4[%c0_12, %c1, %c0_13], %17 {strides = array<i32>} : memref<1x2x4xf32, #tpu.memory_space<vmem>>, vector<1x1x4xf32>,
    return
  }
  func.func @transform_0(%arg0: i32) -> (i32, i32, i32) {
    %c0_i32 = arith.constant 0 : i32
    %c0_i32_0 = arith.constant 0 : i32
    %c0_i32_1 = arith.constant 0 : i32
    return %arg0, %c0_i32, %c0_i32_0 : i32, i32, i32
  }
  func.func @transform_1(%arg0: i32) -> (i32, i32) {
    %c0_i32 = arith.constant 0 : i32
    %c0_i32_0 = arith.constant 0 : i32
    %c0_i32_1 = arith.constant 0 : i32
    return %c0_i32, %c0_i32_0 : i32, i32
  }
  func.func @transform_2(%arg0: i32) -> (i32, i32, i32) {
    %c0_i32 = arith.constant 0 : i32
    %c0_i32_0 = arith.constant 0 : i32
    %c0_i32_1 = arith.constant 0 : i32
    return %arg0, %c0_i32, %c0_i32_0 : i32, i32, i32
  }
  func.func @transform_3(%arg0: i32) -> (i32, i32, i32) {
    %c0_i32 = arith.constant 0 : i32
    %c0_i32_0 = arith.constant 0 : i32
    %c0_i32_1 = arith.constant 0 : i32
    return %arg0, %c0_i32, %c0_i32_0 : i32, i32, i32
  }
}

module attributes {stable_mosaic.version = 11 : i64} {
  func.func @bn_relu_conv3x3_kernel(%arg0: i32, %arg1: memref<1x256x4xf32, #tpu.memory_space<vmem>>, %arg2: memref<1x4xf32, #tpu.memory_space<vmem>>, %arg3: memref<1x4xf32, #tpu.memory_space<vmem>>, %arg4: memref<36x4xbf16, #tpu.memory_space<vmem>>, %arg5: memref<1x256x4xf32, #tpu.memory_space<vmem>>, %arg6: memref<1x2x4xf32, #tpu.memory_space<vmem>>, %arg7: memref<18x18x4xf32, #tpu.memory_space<vmem>>) attributes {dimension_semantics = [#tpu.dimension_semantics<parallel>], iteration_bounds = array<i64: 2>, scalar_prefetch = 0 : i64, scratch_operands = 1 : i64, tpu.core_type = #tpu.core_type<tc>, window_params = [{transform_indices = @transform_0, window_bounds = array<i64: 1, 256, 4>}, {pipeline_mode = #tpu.pipeline_mode<synchronous>, transform_indices = @transform_1, window_bounds = array<i64: 1, 4>}, {pipeline_mode = #tpu.pipeline_mode<synchronous>, transform_indices = @transform_2, window_bounds = array<i64: 1, 4>}, {pipeline_mode = #tpu.pipeline_mode<synchronous>, transform_indices = @transform_3, window_bounds = array<i64: 36, 4>}, {transform_indices = @transform_4, window_bounds = array<i64: 1, 256, 4>}, {transform_indices = @transform_5, window_bounds = array<i64: 1, 2, 4>}]} {
    %c0 = arith.constant 0 : index
    %c0_0 = arith.constant 0 : index
    %c0_1 = arith.constant 0 : index
    %0 = vector.load %arg1[%c0, %c0_0, %c0_1] : memref<1x256x4xf32, #tpu.memory_space<vmem>>, vector<1x256x4xf32>
    %1 = vector.shape_cast %0 : vector<1x256x4xf32> to vector<256x4xf32>
    %c0_2 = arith.constant 0 : index
    %c0_3 = arith.constant 0 : index
    %2 = vector.load %arg2[%c0_2, %c0_3] : memref<1x4xf32, #tpu.memory_space<vmem>>, vector<1x4xf32>
    %3 = vector.broadcast %2 : vector<1x4xf32> to vector<256x4xf32>
    %4 = arith.mulf %1, %3 : vector<256x4xf32>
    %c0_4 = arith.constant 0 : index
    %c0_5 = arith.constant 0 : index
    %5 = vector.load %arg3[%c0_4, %c0_5] : memref<1x4xf32, #tpu.memory_space<vmem>>, vector<1x4xf32>
    %6 = vector.broadcast %5 : vector<1x4xf32> to vector<256x4xf32>
    %7 = arith.addf %4, %6 : vector<256x4xf32>
    %cst = arith.constant 0.000000e+00 : f32
    %8 = vector.broadcast %cst : f32 to vector<256x4xf32>
    %9 = arith.maximumf %7, %8 : vector<256x4xf32>
    %cst_6 = arith.constant 0.000000e+00 : f32
    %10 = vector.broadcast %cst_6 : f32 to vector<1x18x4xf32>
    %cst_7 = arith.constant 0.000000e+00 : f32
    %11 = vector.broadcast %cst_7 : f32 to vector<18x1x4xf32>
    %c0_8 = arith.constant 0 : index
    %c0_9 = arith.constant 0 : index
    %c0_10 = arith.constant 0 : index
    %12 = vector.load %arg7[%c0_8, %c0_9, %c0_10] : memref<18x18x4xf32, #tpu.memory_space<vmem>>, vector<1x18x4xf32>
    tpu.vector_store %arg7[%c0_8, %c0_9, %c0_10], %10 {strides = array<i32>} : memref<18x18x4xf32, #tpu.memory_space<vmem>>, vector<1x18x4xf32>,
    %c17 = arith.constant 17 : index
    %c0_11 = arith.constant 0 : index
    %c0_12 = arith.constant 0 : index
    %13 = vector.load %arg7[%c17, %c0_11, %c0_12] : memref<18x18x4xf32, #tpu.memory_space<vmem>>, vector<1x18x4xf32>
    tpu.vector_store %arg7[%c17, %c0_11, %c0_12], %10 {strides = array<i32>} : memref<18x18x4xf32, #tpu.memory_space<vmem>>, vector<1x18x4xf32>,
    %c0_13 = arith.constant 0 : index
    %c0_14 = arith.constant 0 : index
    %c0_15 = arith.constant 0 : index
    %14 = vector.load %arg7[%c0_13, %c0_14, %c0_15] : memref<18x18x4xf32, #tpu.memory_space<vmem>>, vector<18x1x4xf32>
    tpu.vector_store %arg7[%c0_13, %c0_14, %c0_15], %11 {strides = array<i32>} : memref<18x18x4xf32, #tpu.memory_space<vmem>>, vector<18x1x4xf32>,
    %c0_16 = arith.constant 0 : index
    %c17_17 = arith.constant 17 : index
    %c0_18 = arith.constant 0 : index
    %15 = vector.load %arg7[%c0_16, %c17_17, %c0_18] : memref<18x18x4xf32, #tpu.memory_space<vmem>>, vector<18x1x4xf32>
    tpu.vector_store %arg7[%c0_16, %c17_17, %c0_18], %11 {strides = array<i32>} : memref<18x18x4xf32, #tpu.memory_space<vmem>>, vector<18x1x4xf32>,
    %16 = vector.shape_cast %9 : vector<256x4xf32> to vector<16x16x4xf32>
    %c1 = arith.constant 1 : index
    %c1_19 = arith.constant 1 : index
    %c0_20 = arith.constant 0 : index
    %17 = vector.load %arg7[%c1, %c1_19, %c0_20] : memref<18x18x4xf32, #tpu.memory_space<vmem>>, vector<16x16x4xf32>
    tpu.vector_store %arg7[%c1, %c1_19, %c0_20], %16 {strides = array<i32>} : memref<18x18x4xf32, #tpu.memory_space<vmem>>, vector<16x16x4xf32>,
    %c0_21 = arith.constant 0 : index
    %c0_22 = arith.constant 0 : index
    %c0_23 = arith.constant 0 : index
    %18 = vector.load %arg7[%c0_21, %c0_22, %c0_23] : memref<18x18x4xf32, #tpu.memory_space<vmem>>, vector<16x16x4xf32>
    %c0_24 = arith.constant 0 : index
    %c1_25 = arith.constant 1 : index
    %c0_26 = arith.constant 0 : index
    %19 = vector.load %arg7[%c0_24, %c1_25, %c0_26] : memref<18x18x4xf32, #tpu.memory_space<vmem>>, vector<16x16x4xf32>
    %c0_27 = arith.constant 0 : index
    %c2 = arith.constant 2 : index
    %c0_28 = arith.constant 0 : index
    %20 = vector.load %arg7[%c0_27, %c2, %c0_28] : memref<18x18x4xf32, #tpu.memory_space<vmem>>, vector<16x16x4xf32>
    %c1_29 = arith.constant 1 : index
    %c0_30 = arith.constant 0 : index
    %c0_31 = arith.constant 0 : index
    %21 = vector.load %arg7[%c1_29, %c0_30, %c0_31] : memref<18x18x4xf32, #tpu.memory_space<vmem>>, vector<16x16x4xf32>
    %c1_32 = arith.constant 1 : index
    %c1_33 = arith.constant 1 : index
    %c0_34 = arith.constant 0 : index
    %22 = vector.load %arg7[%c1_32, %c1_33, %c0_34] : memref<18x18x4xf32, #tpu.memory_space<vmem>>, vector<16x16x4xf32>
    %c1_35 = arith.constant 1 : index
    %c2_36 = arith.constant 2 : index
    %c0_37 = arith.constant 0 : index
    %23 = vector.load %arg7[%c1_35, %c2_36, %c0_37] : memref<18x18x4xf32, #tpu.memory_space<vmem>>, vector<16x16x4xf32>
    %c2_38 = arith.constant 2 : index
    %c0_39 = arith.constant 0 : index
    %c0_40 = arith.constant 0 : index
    %24 = vector.load %arg7[%c2_38, %c0_39, %c0_40] : memref<18x18x4xf32, #tpu.memory_space<vmem>>, vector<16x16x4xf32>
    %c2_41 = arith.constant 2 : index
    %c1_42 = arith.constant 1 : index
    %c0_43 = arith.constant 0 : index
    %25 = vector.load %arg7[%c2_41, %c1_42, %c0_43] : memref<18x18x4xf32, #tpu.memory_space<vmem>>, vector<16x16x4xf32>
    %c2_44 = arith.constant 2 : index
    %c2_45 = arith.constant 2 : index
    %c0_46 = arith.constant 0 : index
    %26 = vector.load %arg7[%c2_44, %c2_45, %c0_46] : memref<18x18x4xf32, #tpu.memory_space<vmem>>, vector<16x16x4xf32>
    %27 = tpu.concatenate %18, %19, %20, %21, %22, %23, %24, %25, %26 in 2 : vector<16x16x4xf32>, vector<16x16x4xf32>, vector<16x16x4xf32>, vector<16x16x4xf32>, vector<16x16x4xf32>, vector<16x16x4xf32>, vector<16x16x4xf32>, vector<16x16x4xf32>, vector<16x16x4xf32> -> vector<16x16x36xf32>
    %28 = vector.shape_cast %27 : vector<16x16x36xf32> to vector<256x36xf32>
    %29 = arith.truncf %28 : vector<256x36xf32> to vector<256x36xbf16>
    %c0_47 = arith.constant 0 : index
    %c0_48 = arith.constant 0 : index
    %30 = vector.load %arg4[%c0_47, %c0_48] : memref<36x4xbf16, #tpu.memory_space<vmem>>, vector<36x4xbf16>
    %cst_49 = arith.constant dense<0.000000e+00> : vector<256x4xf32>
    %31 = tpu.matmul %29, %30, %cst_49 {dimension_numbers = #tpu.dot_dimension_numbers<[1], [0], [0], [1], [0, 0, 1, 1], [], []>} : vector<256x36xbf16>, vector<36x4xbf16>, vector<256x4xf32> -> vector<256x4xf32>
    %c0_50 = arith.constant 0 : index
    %c0_51 = arith.constant 0 : index
    %c0_52 = arith.constant 0 : index
    %32 = vector.load %arg5[%c0_50, %c0_51, %c0_52] : memref<1x256x4xf32, #tpu.memory_space<vmem>>, vector<1x256x4xf32>
    %33 = vector.shape_cast %32 : vector<1x256x4xf32> to vector<256x4xf32>
    %34 = vector.shape_cast %31 : vector<256x4xf32> to vector<1x256x4xf32>
    tpu.vector_store %arg5[%c0_50, %c0_51, %c0_52], %34 {strides = array<i32>} : memref<1x256x4xf32, #tpu.memory_space<vmem>>, vector<1x256x4xf32>,
    %cst_53 = arith.constant dense<0.000000e+00> : vector<4xf32>
    %35 = vector.multi_reduction <add>, %31, %cst_53 [0] : vector<256x4xf32> to vector<4xf32>
    %36 = vector.shape_cast %35 : vector<4xf32> to vector<1x4xf32>
    %c0_54 = arith.constant 0 : index
    %c0_55 = arith.constant 0 : index
    %c0_56 = arith.constant 0 : index
    %37 = vector.load %arg6[%c0_54, %c0_55, %c0_56] : memref<1x2x4xf32, #tpu.memory_space<vmem>>, vector<1x1x4xf32>
    %38 = vector.shape_cast %37 : vector<1x1x4xf32> to vector<1x4xf32>
    %39 = vector.shape_cast %36 : vector<1x4xf32> to vector<1x1x4xf32>
    tpu.vector_store %arg6[%c0_54, %c0_55, %c0_56], %39 {strides = array<i32>} : memref<1x2x4xf32, #tpu.memory_space<vmem>>, vector<1x1x4xf32>,
    %40 = arith.mulf %31, %31 : vector<256x4xf32>
    %cst_57 = arith.constant dense<0.000000e+00> : vector<4xf32>
    %41 = vector.multi_reduction <add>, %40, %cst_57 [0] : vector<256x4xf32> to vector<4xf32>
    %42 = vector.shape_cast %41 : vector<4xf32> to vector<1x4xf32>
    %c0_58 = arith.constant 0 : index
    %c1_59 = arith.constant 1 : index
    %c0_60 = arith.constant 0 : index
    %43 = vector.load %arg6[%c0_58, %c1_59, %c0_60] : memref<1x2x4xf32, #tpu.memory_space<vmem>>, vector<1x1x4xf32>
    %44 = vector.shape_cast %43 : vector<1x1x4xf32> to vector<1x4xf32>
    %45 = vector.shape_cast %42 : vector<1x4xf32> to vector<1x1x4xf32>
    tpu.vector_store %arg6[%c0_58, %c1_59, %c0_60], %45 {strides = array<i32>} : memref<1x2x4xf32, #tpu.memory_space<vmem>>, vector<1x1x4xf32>,
    return
  }
  func.func @transform_0(%arg0: i32) -> (i32, i32, i32) {
    %c0_i32 = arith.constant 0 : i32
    %c0_i32_0 = arith.constant 0 : i32
    %c0_i32_1 = arith.constant 0 : i32
    return %arg0, %c0_i32, %c0_i32_0 : i32, i32, i32
  }
  func.func @transform_1(%arg0: i32) -> (i32, i32) {
    %c0_i32 = arith.constant 0 : i32
    %c0_i32_0 = arith.constant 0 : i32
    %c0_i32_1 = arith.constant 0 : i32
    return %c0_i32, %c0_i32_0 : i32, i32
  }
  func.func @transform_2(%arg0: i32) -> (i32, i32) {
    %c0_i32 = arith.constant 0 : i32
    %c0_i32_0 = arith.constant 0 : i32
    %c0_i32_1 = arith.constant 0 : i32
    return %c0_i32, %c0_i32_0 : i32, i32
  }
  func.func @transform_3(%arg0: i32) -> (i32, i32) {
    %c0_i32 = arith.constant 0 : i32
    %c0_i32_0 = arith.constant 0 : i32
    %c0_i32_1 = arith.constant 0 : i32
    return %c0_i32, %c0_i32_0 : i32, i32
  }
  func.func @transform_4(%arg0: i32) -> (i32, i32, i32) {
    %c0_i32 = arith.constant 0 : i32
    %c0_i32_0 = arith.constant 0 : i32
    %c0_i32_1 = arith.constant 0 : i32
    return %arg0, %c0_i32, %c0_i32_0 : i32, i32, i32
  }
  func.func @transform_5(%arg0: i32) -> (i32, i32, i32) {
    %c0_i32 = arith.constant 0 : i32
    %c0_i32_0 = arith.constant 0 : i32
    %c0_i32_1 = arith.constant 0 : i32
    return %arg0, %c0_i32, %c0_i32_0 : i32, i32, i32
  }
}

module attributes {stable_mosaic.version = 11 : i64} {
  func.func @bn_relu_conv1x1_kernel(%arg0: i32, %arg1: memref<1x256x4xf32, #tpu.memory_space<vmem>>, %arg2: memref<1x4xf32, #tpu.memory_space<vmem>>, %arg3: memref<1x4xf32, #tpu.memory_space<vmem>>, %arg4: memref<4x16xbf16, #tpu.memory_space<vmem>>, %arg5: memref<1x256x16xf32, #tpu.memory_space<vmem>>, %arg6: memref<1x2x16xf32, #tpu.memory_space<vmem>>) attributes {dimension_semantics = [#tpu.dimension_semantics<parallel>], iteration_bounds = array<i64: 2>, scalar_prefetch = 0 : i64, scratch_operands = 0 : i64, tpu.core_type = #tpu.core_type<tc>, window_params = [{transform_indices = @transform_0, window_bounds = array<i64: 1, 256, 4>}, {pipeline_mode = #tpu.pipeline_mode<synchronous>, transform_indices = @transform_1, window_bounds = array<i64: 1, 4>}, {pipeline_mode = #tpu.pipeline_mode<synchronous>, transform_indices = @transform_2, window_bounds = array<i64: 1, 4>}, {pipeline_mode = #tpu.pipeline_mode<synchronous>, transform_indices = @transform_3, window_bounds = array<i64: 4, 16>}, {transform_indices = @transform_4, window_bounds = array<i64: 1, 256, 16>}, {transform_indices = @transform_5, window_bounds = array<i64: 1, 2, 16>}]} {
    %c0 = arith.constant 0 : index
    %c0_0 = arith.constant 0 : index
    %c0_1 = arith.constant 0 : index
    %0 = vector.load %arg1[%c0, %c0_0, %c0_1] : memref<1x256x4xf32, #tpu.memory_space<vmem>>, vector<1x256x4xf32>
    %1 = vector.shape_cast %0 : vector<1x256x4xf32> to vector<256x4xf32>
    %c0_2 = arith.constant 0 : index
    %c0_3 = arith.constant 0 : index
    %2 = vector.load %arg2[%c0_2, %c0_3] : memref<1x4xf32, #tpu.memory_space<vmem>>, vector<1x4xf32>
    %3 = vector.broadcast %2 : vector<1x4xf32> to vector<256x4xf32>
    %4 = arith.mulf %1, %3 : vector<256x4xf32>
    %c0_4 = arith.constant 0 : index
    %c0_5 = arith.constant 0 : index
    %5 = vector.load %arg3[%c0_4, %c0_5] : memref<1x4xf32, #tpu.memory_space<vmem>>, vector<1x4xf32>
    %6 = vector.broadcast %5 : vector<1x4xf32> to vector<256x4xf32>
    %7 = arith.addf %4, %6 : vector<256x4xf32>
    %cst = arith.constant 0.000000e+00 : f32
    %8 = vector.broadcast %cst : f32 to vector<256x4xf32>
    %9 = arith.maximumf %7, %8 : vector<256x4xf32>
    %10 = arith.truncf %9 : vector<256x4xf32> to vector<256x4xbf16>
    %c0_6 = arith.constant 0 : index
    %c0_7 = arith.constant 0 : index
    %11 = vector.load %arg4[%c0_6, %c0_7] : memref<4x16xbf16, #tpu.memory_space<vmem>>, vector<4x16xbf16>
    %cst_8 = arith.constant dense<0.000000e+00> : vector<256x16xf32>
    %12 = tpu.matmul %10, %11, %cst_8 {dimension_numbers = #tpu.dot_dimension_numbers<[1], [0], [0], [1], [0, 0, 1, 1], [], []>} : vector<256x4xbf16>, vector<4x16xbf16>, vector<256x16xf32> -> vector<256x16xf32>
    %c0_9 = arith.constant 0 : index
    %c0_10 = arith.constant 0 : index
    %c0_11 = arith.constant 0 : index
    %13 = vector.load %arg5[%c0_9, %c0_10, %c0_11] : memref<1x256x16xf32, #tpu.memory_space<vmem>>, vector<1x256x16xf32>
    %14 = vector.shape_cast %13 : vector<1x256x16xf32> to vector<256x16xf32>
    %15 = vector.shape_cast %12 : vector<256x16xf32> to vector<1x256x16xf32>
    tpu.vector_store %arg5[%c0_9, %c0_10, %c0_11], %15 {strides = array<i32>} : memref<1x256x16xf32, #tpu.memory_space<vmem>>, vector<1x256x16xf32>,
    %cst_12 = arith.constant dense<0.000000e+00> : vector<16xf32>
    %16 = vector.multi_reduction <add>, %12, %cst_12 [0] : vector<256x16xf32> to vector<16xf32>
    %17 = vector.shape_cast %16 : vector<16xf32> to vector<1x16xf32>
    %c0_13 = arith.constant 0 : index
    %c0_14 = arith.constant 0 : index
    %c0_15 = arith.constant 0 : index
    %18 = vector.load %arg6[%c0_13, %c0_14, %c0_15] : memref<1x2x16xf32, #tpu.memory_space<vmem>>, vector<1x1x16xf32>
    %19 = vector.shape_cast %18 : vector<1x1x16xf32> to vector<1x16xf32>
    %20 = vector.shape_cast %17 : vector<1x16xf32> to vector<1x1x16xf32>
    tpu.vector_store %arg6[%c0_13, %c0_14, %c0_15], %20 {strides = array<i32>} : memref<1x2x16xf32, #tpu.memory_space<vmem>>, vector<1x1x16xf32>,
    %21 = arith.mulf %12, %12 : vector<256x16xf32>
    %cst_16 = arith.constant dense<0.000000e+00> : vector<16xf32>
    %22 = vector.multi_reduction <add>, %21, %cst_16 [0] : vector<256x16xf32> to vector<16xf32>
    %23 = vector.shape_cast %22 : vector<16xf32> to vector<1x16xf32>
    %c0_17 = arith.constant 0 : index
    %c1 = arith.constant 1 : index
    %c0_18 = arith.constant 0 : index
    %24 = vector.load %arg6[%c0_17, %c1, %c0_18] : memref<1x2x16xf32, #tpu.memory_space<vmem>>, vector<1x1x16xf32>
    %25 = vector.shape_cast %24 : vector<1x1x16xf32> to vector<1x16xf32>
    %26 = vector.shape_cast %23 : vector<1x16xf32> to vector<1x1x16xf32>
    tpu.vector_store %arg6[%c0_17, %c1, %c0_18], %26 {strides = array<i32>} : memref<1x2x16xf32, #tpu.memory_space<vmem>>, vector<1x1x16xf32>,
    return
  }
  func.func @transform_0(%arg0: i32) -> (i32, i32, i32) {
    %c0_i32 = arith.constant 0 : i32
    %c0_i32_0 = arith.constant 0 : i32
    %c0_i32_1 = arith.constant 0 : i32
    return %arg0, %c0_i32, %c0_i32_0 : i32, i32, i32
  }
  func.func @transform_1(%arg0: i32) -> (i32, i32) {
    %c0_i32 = arith.constant 0 : i32
    %c0_i32_0 = arith.constant 0 : i32
    %c0_i32_1 = arith.constant 0 : i32
    return %c0_i32, %c0_i32_0 : i32, i32
  }
  func.func @transform_2(%arg0: i32) -> (i32, i32) {
    %c0_i32 = arith.constant 0 : i32
    %c0_i32_0 = arith.constant 0 : i32
    %c0_i32_1 = arith.constant 0 : i32
    return %c0_i32, %c0_i32_0 : i32, i32
  }
  func.func @transform_3(%arg0: i32) -> (i32, i32) {
    %c0_i32 = arith.constant 0 : i32
    %c0_i32_0 = arith.constant 0 : i32
    %c0_i32_1 = arith.constant 0 : i32
    return %c0_i32, %c0_i32_0 : i32, i32
  }
  func.func @transform_4(%arg0: i32) -> (i32, i32, i32) {
    %c0_i32 = arith.constant 0 : i32
    %c0_i32_0 = arith.constant 0 : i32
    %c0_i32_1 = arith.constant 0 : i32
    return %arg0, %c0_i32, %c0_i32_0 : i32, i32, i32
  }
  func.func @transform_5(%arg0: i32) -> (i32, i32, i32) {
    %c0_i32 = arith.constant 0 : i32
    %c0_i32_0 = arith.constant 0 : i32
    %c0_i32_1 = arith.constant 0 : i32
    return %arg0, %c0_i32, %c0_i32_0 : i32, i32, i32
  }
}

module attributes {stable_mosaic.version = 11 : i64} {
  func.func @bn_relu_residual_kernel(%arg0: i32, %arg1: memref<1x16x256xf32, #tpu.memory_space<vmem>>, %arg2: memref<1x16x256xf32, #tpu.memory_space<vmem>>, %arg3: memref<1x256xf32, #tpu.memory_space<vmem>>, %arg4: memref<1x256xf32, #tpu.memory_space<vmem>>, %arg5: memref<1x16x256xf32, #tpu.memory_space<vmem>>) attributes {dimension_semantics = [#tpu.dimension_semantics<parallel>], iteration_bounds = array<i64: 2>, scalar_prefetch = 0 : i64, scratch_operands = 0 : i64, tpu.core_type = #tpu.core_type<tc>, window_params = [{transform_indices = @transform_0, window_bounds = array<i64: 1, 16, 256>}, {transform_indices = @transform_1, window_bounds = array<i64: 1, 16, 256>}, {pipeline_mode = #tpu.pipeline_mode<synchronous>, transform_indices = @transform_2, window_bounds = array<i64: 1, 256>}, {pipeline_mode = #tpu.pipeline_mode<synchronous>, transform_indices = @transform_3, window_bounds = array<i64: 1, 256>}, {transform_indices = @transform_4, window_bounds = array<i64: 1, 16, 256>}]} {
    %c0 = arith.constant 0 : index
    %c0_0 = arith.constant 0 : index
    %c0_1 = arith.constant 0 : index
    %0 = vector.load %arg1[%c0, %c0_0, %c0_1] : memref<1x16x256xf32, #tpu.memory_space<vmem>>, vector<1x16x256xf32>
    %1 = vector.shape_cast %0 : vector<1x16x256xf32> to vector<16x256xf32>
    %c0_2 = arith.constant 0 : index
    %c0_3 = arith.constant 0 : index
    %2 = vector.load %arg3[%c0_2, %c0_3] : memref<1x256xf32, #tpu.memory_space<vmem>>, vector<1x256xf32>
    %3 = vector.broadcast %2 : vector<1x256xf32> to vector<16x256xf32>
    %4 = arith.mulf %1, %3 : vector<16x256xf32>
    %c0_4 = arith.constant 0 : index
    %c0_5 = arith.constant 0 : index
    %5 = vector.load %arg4[%c0_4, %c0_5] : memref<1x256xf32, #tpu.memory_space<vmem>>, vector<1x256xf32>
    %6 = vector.broadcast %5 : vector<1x256xf32> to vector<16x256xf32>
    %7 = arith.addf %4, %6 : vector<16x256xf32>
    %cst = arith.constant 0.000000e+00 : f32
    %8 = vector.broadcast %cst : f32 to vector<16x256xf32>
    %9 = arith.maximumf %7, %8 : vector<16x256xf32>
    %c0_6 = arith.constant 0 : index
    %c0_7 = arith.constant 0 : index
    %c0_8 = arith.constant 0 : index
    %10 = vector.load %arg2[%c0_6, %c0_7, %c0_8] : memref<1x16x256xf32, #tpu.memory_space<vmem>>, vector<1x16x256xf32>
    %11 = vector.shape_cast %10 : vector<1x16x256xf32> to vector<16x256xf32>
    %12 = arith.addf %9, %11 : vector<16x256xf32>
    %cst_9 = arith.constant 0.000000e+00 : f32
    %13 = vector.broadcast %cst_9 : f32 to vector<16x256xf32>
    %14 = arith.maximumf %12, %13 : vector<16x256xf32>
    %c0_10 = arith.constant 0 : index
    %c0_11 = arith.constant 0 : index
    %c0_12 = arith.constant 0 : index
    %15 = vector.load %arg5[%c0_10, %c0_11, %c0_12] : memref<1x16x256xf32, #tpu.memory_space<vmem>>, vector<1x16x256xf32>
    %16 = vector.shape_cast %15 : vector<1x16x256xf32> to vector<16x256xf32>
    %17 = vector.shape_cast %14 : vector<16x256xf32> to vector<1x16x256xf32>
    tpu.vector_store %arg5[%c0_10, %c0_11, %c0_12], %17 {strides = array<i32>} : memref<1x16x256xf32, #tpu.memory_space<vmem>>, vector<1x16x256xf32>,
    return
  }
  func.func @transform_0(%arg0: i32) -> (i32, i32, i32) {
    %c0_i32 = arith.constant 0 : i32
    %c0_i32_0 = arith.constant 0 : i32
    %c0_i32_1 = arith.constant 0 : i32
    return %arg0, %c0_i32, %c0_i32_0 : i32, i32, i32
  }
  func.func @transform_1(%arg0: i32) -> (i32, i32, i32) {
    %c0_i32 = arith.constant 0 : i32
    %c0_i32_0 = arith.constant 0 : i32
    %c0_i32_1 = arith.constant 0 : i32
    return %arg0, %c0_i32, %c0_i32_0 : i32, i32, i32
  }
  func.func @transform_2(%arg0: i32) -> (i32, i32) {
    %c0_i32 = arith.constant 0 : i32
    %c0_i32_0 = arith.constant 0 : i32
    %c0_i32_1 = arith.constant 0 : i32
    return %c0_i32, %c0_i32_0 : i32, i32
  }
  func.func @transform_3(%arg0: i32) -> (i32, i32) {
    %c0_i32 = arith.constant 0 : i32
    %c0_i32_0 = arith.constant 0 : i32
    %c0_i32_1 = arith.constant 0 : i32
    return %c0_i32, %c0_i32_0 : i32, i32
  }
  func.func @transform_4(%arg0: i32) -> (i32, i32, i32) {
    %c0_i32 = arith.constant 0 : i32
    %c0_i32_0 = arith.constant 0 : i32
    %c0_i32_1 = arith.constant 0 : i32
    return %arg0, %c0_i32, %c0_i32_0 : i32, i32, i32
  }
}

</mosaic_0001>

<llo_original>
// kernel: resblock_forward_nhwc.4
$region0: #{resblock_forward_nhwc.4}
  #allocation0 [shape = 'u32[]', space=smem, size = 0x4, offset = 0x4, fixed_abs, tag = 'smem constant byte address 0x4 - core index']
  #allocation1 [shape = 'u32[72,128]{1,0:T(1,128)}', space=vmem, size = 0x9000, scoped, tag = 'internal scratch']
  %s0 = inlined_call_operand.vmem [shape: bf16[2,256,16], index: 0, kind: input, shape index: {}]
  %s1 = inlined_call_operand.vmem [shape: bf16[16,4], index: 1, kind: input, shape index: {}]
  %s2 = inlined_call_operand.vmem [shape: f32[2,256,4], index: 2, kind: output, shape index: {0}]
  %s3 = inlined_call_operand.vmem [shape: f32[2,2,4], index: 3, kind: output, shape index: {1}]
  %4 = xla_tuple %s2, %s3
  %s5 = sld [smem:[#allocation0]]
  $region49: #{resblock_forward_nhwc.4} parent=0
    _
  %s7 = ssub.s32 1, %s5
  %s8 = scalar_select 0, %s7, %s5
  loop: start=0, step=1, limit=4
  $region2: #{resblock_forward_nhwc.4} parent=0 // loop_pre_header
    _
  $region3: #{resblock_forward_nhwc.4} parent=0 // loop_header
    %s10 = sphi 0, %s14
    %p11 = scmp.ge.s32.totalorder %s10, 4
    %s20 = sphi 0, %s22
    %s23 = sphi 0, %s20
    %s24 = sphi 0, %s23
    %s40 = sphi 0, %s24
    %s44 = sphi 0, %s44
    %s46 = sphi 0, %s44
    %s47 = sphi 0, %s46
    %s61 = sphi 0, %s47
    %s67 = sphi 0, %s69
    %s70 = sphi 0, %s67
    %s71 = sphi 0, %s70
    %s87 = sphi 0, %s71
    %s93 = sphi 0, %s95
    %s96 = sphi 0, %s93
    %s97 = sphi 0, %s96
    %s113 = sphi 0, %s97
  $region4: #{resblock_forward_nhwc.4} parent=0 // loop_header_branch
    %13 = sbr.rel (%p11) target = $region8
  $region5: #{resblock_forward_nhwc.4} parent=0 // loop_body
    %s15 = ssub.s32 %s10, 1
    %s16 = ssub.s32 %s10, 2
    %s17 = sadd.s32 %s10, 1
    %s18 = ssub.s32 %s10, %s17
    %p19 = scmp.eq.s32.totalorder %s18, 0
    %s21 = sadd.s32 %s20, 1
    %s22 = scalar_select %p19, %s20, %s21
    %p25 = pneg %p19
    %p26 = scmp.eq.s32.totalorder %s10, 1
    %p27 = por %p25, %p26
    %p28 = scmp.ne.s32.totalorder %s20, %s23
    %p29 = scmp.eq.s32.totalorder %s10, 0
    %p30 = por %p28, %p29
    %p31 = scmp.ne.s32.totalorder %s20, %s23
    %p32 = scmp.eq.s32.totalorder %s15, 1
    %p33 = por %p31, %p32
    %p34 = scmp.ne.s32.totalorder %s23, %s24
    %p35 = scmp.eq.s32.totalorder %s15, 0
    %p36 = por %p34, %p35
    %p37 = scmp.ne.s32.totalorder %s23, %s24
    %p38 = scmp.eq.s32.totalorder %s16, 1
    %p39 = por %p37, %p38
    %p41 = scmp.ne.s32.totalorder %s24, %s40
    %p42 = scmp.eq.s32.totalorder %s16, 0
    %p43 = por %p41, %p42
    %s45 = sadd.s32 %s44, 1
    %p48 = scmp.eq.s32.totalorder %s10, 1
    %p49 = scmp.ne.s32.totalorder %s44, %s46
    %p50 = scmp.eq.s32.totalorder %s10, 0
    %p51 = por %p49, %p50
    %p52 = scmp.ne.s32.totalorder %s44, %s46
    %p53 = scmp.eq.s32.totalorder %s15, 1
    %p54 = por %p52, %p53
    %p55 = scmp.ne.s32.totalorder %s46, %s47
    %p56 = scmp.eq.s32.totalorder %s15, 0
    %p57 = por %p55, %p56
    %p58 = scmp.ne.s32.totalorder %s46, %s47
    %p59 = scmp.eq.s32.totalorder %s16, 1
    %p60 = por %p58, %p59
    %p62 = scmp.ne.s32.totalorder %s47, %s61
    %p63 = scmp.eq.s32.totalorder %s16, 0
    %p64 = por %p62, %p63
    %s65 = ssub.s32 %s10, %s17
    %p66 = scmp.eq.s32.totalorder %s65, 0
    %s68 = sadd.s32 %s67, 1
    %s69 = scalar_select %p66, %s67, %s68
    %p72 = pneg %p66
    %p73 = scmp.eq.s32.totalorder %s10, 1
    %p74 = por %p72, %p73
    %p75 = scmp.ne.s32.totalorder %s67, %s70
    %p76 = scmp.eq.s32.totalorder %s10, 0
    %p77 = por %p75, %p76
    %p78 = scmp.ne.s32.totalorder %s67, %s70
    %p79 = scmp.eq.s32.totalorder %s15, 1
    %p80 = por %p78, %p79
    %p81 = scmp.ne.s32.totalorder %s70, %s71
    %p82 = scmp.eq.s32.totalorder %s15, 0
    %p83 = por %p81, %p82
    %p84 = scmp.ne.s32.totalorder %s70, %s71
    %p85 = scmp.eq.s32.totalorder %s16, 1
    %p86 = por %p84, %p85
    %p88 = scmp.ne.s32.totalorder %s71, %s87
    %p89 = scmp.eq.s32.totalorder %s16, 0
    %p90 = por %p88, %p89
    %s91 = ssub.s32 %s10, %s17
    %p92 = scmp.eq.s32.totalorder %s91, 0
    %s94 = sadd.s32 %s93, 1
    %s95 = scalar_select %p92, %s93, %s94
    %p98 = pneg %p92
    %p99 = scmp.eq.s32.totalorder %s10, 1
    %p100 = por %p98, %p99
    %p101 = scmp.ne.s32.totalorder %s93, %s96
    %p102 = scmp.eq.s32.totalorder %s10, 0
    %p103 = por %p101, %p102
    %p104 = scmp.ne.s32.totalorder %s93, %s96
    %p105 = scmp.eq.s32.totalorder %s15, 1
    %p106 = por %p104, %p105
    %p107 = scmp.ne.s32.totalorder %s96, %s97
    %p108 = scmp.eq.s32.totalorder %s15, 0
    %p109 = por %p107, %p108
    %p110 = scmp.ne.s32.totalorder %s96, %s97
    %p111 = scmp.eq.s32.totalorder %s16, 1
    %p112 = por %p110, %p111
    %p114 = scmp.ne.s32.totalorder %s97, %s113
    %p115 = scmp.eq.s32.totalorder %s16, 0
    %p116 = por %p114, %p115
    %p117 = scmp.le.s32.totalorder 1, %s10
    %p118 = scmp.lt.s32.totalorder %s10, 3
    %p119 = pnand %p117, %p118
    %p120 = pneg %p119
    // Predicated region
    $region9: #{resblock_forward_nhwc.4} parent=5 // pred_check
      _
    $region10: #{resblock_forward_nhwc.4} parent=5 // pred_check_branch
      %122 = sbr.rel (%p119) target = $region12
    $region11: #{resblock_forward_nhwc.4} parent=5 // pred_region
      %s123 = ssub.s32 %s10, 1
      // Predicated region
      $region13: #{resblock_forward_nhwc.4} parent=11 // pred_check
        %p124 = pneg %p57
      $region14: #{resblock_forward_nhwc.4} parent=11 // pred_check_branch
        %126 = sbr.rel (%p124) target = $region16
      $region15: #{resblock_forward_nhwc.4} parent=11 // pred_region
        _
      $region16: #{resblock_forward_nhwc.4} parent=11 // pred_fallthru
        _
    $region12: #{resblock_forward_nhwc.4} parent=5 // pred_fallthru
      _
    %p127 = scmp.lt.s32.totalorder %s10, 2
    // Predicated region
    $region17: #{resblock_forward_nhwc.4} parent=5 // pred_check
      %p128 = pneg %p127
    $region18: #{resblock_forward_nhwc.4} parent=5 // pred_check_branch
      %130 = sbr.rel (%p128) target = $region20
    $region19: #{resblock_forward_nhwc.4} parent=5 // pred_region
      // Predicated region
      $region21: #{resblock_forward_nhwc.4} parent=19 // pred_check
        %p131 = pneg %p30
      $region22: #{resblock_forward_nhwc.4} parent=19 // pred_check_branch
        %133 = sbr.rel (%p131) target = $region24
      $region23: #{resblock_forward_nhwc.4} parent=19 // pred_region
        %p134 = scmp.lt.s32.totalorder %s10, 1
        %s135 = scalar_select %p134, %s10, 1
        %s136 = smul.addr %s135, 32
        %s137 = smul.addr %s136, 4
        %s138 = scalar_lea.vmem %s0, %s137
      $region24: #{resblock_forward_nhwc.4} parent=19 // pred_fallthru
        _
    $region20: #{resblock_forward_nhwc.4} parent=5 // pred_fallthru
      _
    %p139 = scmp.le.s32.totalorder 1, %s10
    %p140 = scmp.lt.s32.totalorder %s10, 3
    %p141 = pnand %p139, %p140
    %p142 = pneg %p141
    // Predicated region
    $region25: #{resblock_forward_nhwc.4} parent=5 // pred_check
      _
    $region26: #{resblock_forward_nhwc.4} parent=5 // pred_check_branch
      %144 = sbr.rel (%p141) target = $region28
    $region27: #{resblock_forward_nhwc.4} parent=5 // pred_region
      %s145 = ssub.s32 %s10, 1
      %p146 = scmp.lt.s32.totalorder %s15, 1
      %s147 = scalar_select %p146, %s15, 1
      %s148 = smul.addr %s147, 32
      %s149 = smul.addr %s148, 4
      %s150 = scalar_lea.vmem %s0, %s149
      %p151 = pneg %p36
      %p152 = pneg %p33
      %p153 = pneg %p57
      %p154 = pneg %p54
      %p155 = pneg %p83
      %p156 = pneg %p80
      %p157 = scmp.lt.s32.totalorder %s15, 1
      %s158 = scalar_select %p157, %s15, 1
      %s159 = smul.addr %s158, 32
      %s160 = smul.addr %s159, 8
      %s161 = scalar_lea.vmem %s2, %s160
      %p162 = pneg %p109
      %p163 = pneg %p106
      %p164 = scmp.lt.s32.totalorder %s15, 1
      %s165 = scalar_select %p164, %s15, 1
      %s166 = smul.addr %s165, 2
      %s167 = scalar_lea.vmem %s3, %s166
      %p168 = scmp.lt.s32.totalorder %s15, 1
      %s169 = scalar_select %p168, %s15, 1
      %s170 = smul.addr %s169, 32
      %s171 = smul.addr %s170, 4
      %s172 = scalar_lea.vmem %s0, %s171
      %p173 = scmp.lt.s32.totalorder %s15, 1
      %s174 = scalar_select %p173, %s15, 1
      %s175 = smul.addr %s174, 32
      %s176 = smul.addr %s175, 8
      %s177 = scalar_lea.vmem %s2, %s176
      %p178 = scmp.lt.s32.totalorder %s15, 1
      %s179 = scalar_select %p178, %s15, 1
      %s180 = smul.addr %s179, 2
      %s181 = scalar_lea.vmem %s3, %s180
      %v183 = vld [vmem:[%s172] sm:$0xf]
      %v184 = vld [vmem:[%s172 + $0x4] sm:$0xf]
      %v185 = vld [vmem:[%s172 + $0x8] sm:$0xf]
      %v186 = vld [vmem:[%s172 + $0xc] sm:$0xf]
      %v187 = vld [vmem:[%s172 + $0x10] sm:$0xf]
      %v188 = vld [vmem:[%s172 + $0x14] sm:$0xf]
      %v189 = vld [vmem:[%s172 + $0x18] sm:$0xf]
      %v190 = vld [vmem:[%s172 + $0x1c] sm:$0xf]
      %v191 = vld [vmem:[%s172 + $0x20] sm:$0xf]
      %v192 = vld [vmem:[%s172 + $0x24] sm:$0xf]
      %v193 = vld [vmem:[%s172 + $0x28] sm:$0xf]
      %v194 = vld [vmem:[%s172 + $0x2c] sm:$0xf]
      %v195 = vld [vmem:[%s172 + $0x30] sm:$0xf]
      %v196 = vld [vmem:[%s172 + $0x34] sm:$0xf]
      %v197 = vld [vmem:[%s172 + $0x38] sm:$0xf]
      %v198 = vld [vmem:[%s172 + $0x3c] sm:$0xf]
      %v199 = vld [vmem:[%s172 + $0x40] sm:$0xf]
      %v200 = vld [vmem:[%s172 + $0x44] sm:$0xf]
      %v201 = vld [vmem:[%s172 + $0x48] sm:$0xf]
      %v202 = vld [vmem:[%s172 + $0x4c] sm:$0xf]
      %v203 = vld [vmem:[%s172 + $0x50] sm:$0xf]
      %v204 = vld [vmem:[%s172 + $0x54] sm:$0xf]
      %v205 = vld [vmem:[%s172 + $0x58] sm:$0xf]
      %v206 = vld [vmem:[%s172 + $0x5c] sm:$0xf]
      %v207 = vld [vmem:[%s172 + $0x60] sm:$0xf]
      %v208 = vld [vmem:[%s172 + $0x64] sm:$0xf]
      %v209 = vld [vmem:[%s172 + $0x68] sm:$0xf]
      %v210 = vld [vmem:[%s172 + $0x6c] sm:$0xf]
      %v211 = vld [vmem:[%s172 + $0x70] sm:$0xf]
      %v212 = vld [vmem:[%s172 + $0x74] sm:$0xf]
      %v213 = vld [vmem:[%s172 + $0x78] sm:$0xf]
      %v214 = vld [vmem:[%s172 + $0x7c] sm:$0xf]
      %v215 = vld [vmem:[%s1] sm:$0xf]
      %v216 = vld [vmem:[%s1 + $0x4] sm:$0xf]
      %v249 = vunpack.c.l.b16 %v183
      %v250 = vunpack.c.l.b16 %v184
      %v251 = vunpack.c.l.b16 %v185
      %v252 = vunpack.c.l.b16 %v186
      %v253 = vunpack.c.l.b16 %v187
      %v254 = vunpack.c.l.b16 %v188
      %v255 = vunpack.c.l.b16 %v189
      %v256 = vunpack.c.l.b16 %v190
      %v257 = vunpack.c.l.b16 %v191
      %v258 = vunpack.c.l.b16 %v192
      %v259 = vunpack.c.l.b16 %v193
      %v260 = vunpack.c.l.b16 %v194
      %v261 = vunpack.c.l.b16 %v195
      %v262 = vunpack.c.l.b16 %v196
      %v263 = vunpack.c.l.b16 %v197
      %v264 = vunpack.c.l.b16 %v198
      %v265 = vunpack.c.l.b16 %v199
      %v266 = vunpack.c.l.b16 %v200
      %v267 = vunpack.c.l.b16 %v201
      %v268 = vunpack.c.l.b16 %v202
      %v269 = vunpack.c.l.b16 %v203
      %v270 = vunpack.c.l.b16 %v204
      %v271 = vunpack.c.l.b16 %v205
      %v272 = vunpack.c.l.b16 %v206
      %v273 = vunpack.c.l.b16 %v207
      %v274 = vunpack.c.l.b16 %v208
      %v275 = vunpack.c.l.b16 %v209
      %v276 = vunpack.c.l.b16 %v210
      %v277 = vunpack.c.l.b16 %v211
      %v278 = vunpack.c.l.b16 %v212
      %v279 = vunpack.c.l.b16 %v213
      %v280 = vunpack.c.l.b16 %v214
      %v281 = vpack.c.b16 %v250, %v249
      %v282 = vpack.c.b16 %v252, %v251
      %v283 = vpack.c.b16 %v254, %v253
      %v284 = vpack.c.b16 %v256, %v255
      %v285 = vpack.c.b16 %v258, %v257
      %v286 = vpack.c.b16 %v260, %v259
      %v287 = vpack.c.b16 %v262, %v261
      %v288 = vpack.c.b16 %v264, %v263
      %v289 = vpack.c.b16 %v266, %v265
      %v290 = vpack.c.b16 %v268, %v267
      %v291 = vpack.c.b16 %v270, %v269
      %v292 = vpack.c.b16 %v272, %v271
      %v293 = vpack.c.b16 %v274, %v273
      %v294 = vpack.c.b16 %v276, %v275
      %v295 = vpack.c.b16 %v278, %v277
      %v296 = vpack.c.b16 %v280, %v279
      %v299 = vunpack.c.l.b16 %v215
      %v300 = vunpack.c.l.b16 %v216
      %v301 = vpack.c.b16 %v300, %v299
      %vm303 = vcmask 130048
      %v305 = vsel %vm303, %v281, 0
      %v308 = vsel %vm303, %v282, 0
      %v311 = vsel %vm303, %v283, 0
      %v314 = vsel %vm303, %v284, 0
      %v317 = vsel %vm303, %v285, 0
      %v320 = vsel %vm303, %v286, 0
      %v323 = vsel %vm303, %v287, 0
      %v326 = vsel %vm303, %v288, 0
      %v329 = vsel %vm303, %v289, 0
      %v332 = vsel %vm303, %v290, 0
      %v335 = vsel %vm303, %v291, 0
      %v338 = vsel %vm303, %v292, 0
      %v341 = vsel %vm303, %v293, 0
      %v344 = vsel %vm303, %v294, 0
      %v347 = vsel %vm303, %v295, 0
      %v350 = vsel %vm303, %v296, 0
      %352 = vmatpush.bf16.msra.mxu0 0
      %353 = vmatpush.bf16.msra.mxu0 0
      %354 = vmatpush.bf16.msra.mxu0 0
      %355 = vmatpush.bf16.msra.mxu0 0
      %356 = vmatpush.bf16.msra.mxu0 0
      %357 = vmatpush.bf16.msra.mxu0 0
      %358 = vmatpush.bf16.msra.mxu0 0
      %359 = vmatpush.bf16.msra.mxu0 %v301
      %360 = vmatmul.bf16.gmra.mxu0 %v305
      %v361 = vpop.f32.mrf.mxu0
      %v362 = vadd.f32 0.0, %v361
      %v363 = vpop.f32.mrf.mxu0
      %v364 = vadd.f32 0.0, %v363
      %365 = vmatmul.bf16.gmra.mxu0 %v308
      %v366 = vpop.f32.mrf.mxu0
      %v367 = vadd.f32 0.0, %v366
      %v368 = vpop.f32.mrf.mxu0
      %v369 = vadd.f32 0.0, %v368
      %370 = vmatmul.bf16.gmra.mxu0 %v311
      %v371 = vpop.f32.mrf.mxu0
      %v372 = vadd.f32 0.0, %v371
      %v373 = vpop.f32.mrf.mxu0
      %v374 = vadd.f32 0.0, %v373
      %375 = vmatmul.bf16.gmra.mxu0 %v314
      %v376 = vpop.f32.mrf.mxu0
      %v377 = vadd.f32 0.0, %v376
      %v378 = vpop.f32.mrf.mxu0
      %v379 = vadd.f32 0.0, %v378
      %380 = vmatmul.bf16.gmra.mxu0 %v317
      %v381 = vpop.f32.mrf.mxu0
      %v382 = vadd.f32 0.0, %v381
      %v383 = vpop.f32.mrf.mxu0
      %v384 = vadd.f32 0.0, %v383
      %385 = vmatmul.bf16.gmra.mxu0 %v320
      %v386 = vpop.f32.mrf.mxu0
      %v387 = vadd.f32 0.0, %v386
      %v388 = vpop.f32.mrf.mxu0
      %v389 = vadd.f32 0.0, %v388
      %390 = vmatmul.bf16.gmra.mxu0 %v323
      %v391 = vpop.f32.mrf.mxu0
      %v392 = vadd.f32 0.0, %v391
      %v393 = vpop.f32.mrf.mxu0
      %v394 = vadd.f32 0.0, %v393
      %395 = vmatmul.bf16.gmra.mxu0 %v326
      %v396 = vpop.f32.mrf.mxu0
      %v397 = vadd.f32 0.0, %v396
      %v398 = vpop.f32.mrf.mxu0
      %v399 = vadd.f32 0.0, %v398
      %400 = vmatmul.bf16.gmra.mxu0 %v329
      %v401 = vpop.f32.mrf.mxu0
      %v402 = vadd.f32 0.0, %v401
      %v403 = vpop.f32.mrf.mxu0
      %v404 = vadd.f32 0.0, %v403
      %405 = vmatmul.bf16.gmra.mxu0 %v332
      %v406 = vpop.f32.mrf.mxu0
      %v407 = vadd.f32 0.0, %v406
      %v408 = vpop.f32.mrf.mxu0
      %v409 = vadd.f32 0.0, %v408
      %410 = vmatmul.bf16.gmra.mxu0 %v335
      %v411 = vpop.f32.mrf.mxu0
      %v412 = vadd.f32 0.0, %v411
      %v413 = vpop.f32.mrf.mxu0
      %v414 = vadd.f32 0.0, %v413
      %415 = vmatmul.bf16.gmra.mxu0 %v338
      %v416 = vpop.f32.mrf.mxu0
      %v417 = vadd.f32 0.0, %v416
      %v418 = vpop.f32.mrf.mxu0
      %v419 = vadd.f32 0.0, %v418
      %420 = vmatmul.bf16.gmra.mxu0 %v341
      %v421 = vpop.f32.mrf.mxu0
      %v422 = vadd.f32 0.0, %v421
      %v423 = vpop.f32.mrf.mxu0
      %v424 = vadd.f32 0.0, %v423
      %425 = vmatmul.bf16.gmra.mxu0 %v344
      %v426 = vpop.f32.mrf.mxu0
      %v427 = vadd.f32 0.0, %v426
      %v428 = vpop.f32.mrf.mxu0
      %v429 = vadd.f32 0.0, %v428
      %430 = vmatmul.bf16.gmra.mxu0 %v347
      %v431 = vpop.f32.mrf.mxu0
      %v432 = vadd.f32 0.0, %v431
      %v433 = vpop.f32.mrf.mxu0
      %v434 = vadd.f32 0.0, %v433
      %435 = vmatmul.bf16.gmra.mxu0 %v350
      %v436 = vpop.f32.mrf.mxu0
      %v437 = vadd.f32 0.0, %v436
      %v438 = vpop.f32.mrf.mxu0
      %v439 = vadd.f32 0.0, %v438
      %440 = vdwg.mxu0
      %vm441 = vcmask 31744
      %442 = vst.msk [vmem:[%s177] sm:$0xff] %vm441, %v362
      %443 = vst.msk [vmem:[%s177 + $0x8] sm:$0xff] %vm441, %v364
      %444 = vst.msk [vmem:[%s177 + $0x10] sm:$0xff] %vm441, %v367
      %445 = vst.msk [vmem:[%s177 + $0x18] sm:$0xff] %vm441, %v369
      %446 = vst.msk [vmem:[%s177 + $0x20] sm:$0xff] %vm441, %v372
      %447 = vst.msk [vmem:[%s177 + $0x28] sm:$0xff] %vm441, %v374
      %448 = vst.msk [vmem:[%s177 + $0x30] sm:$0xff] %vm441, %v377
      %449 = vst.msk [vmem:[%s177 + $0x38] sm:$0xff] %vm441, %v379
      %450 = vst.msk [vmem:[%s177 + $0x40] sm:$0xff] %vm441, %v382
      %451 = vst.msk [vmem:[%s177 + $0x48] sm:$0xff] %vm441, %v384
      %452 = vst.msk [vmem:[%s177 + $0x50] sm:$0xff] %vm441, %v387
      %453 = vst.msk [vmem:[%s177 + $0x58] sm:$0xff] %vm441, %v389
      %454 = vst.msk [vmem:[%s177 + $0x60] sm:$0xff] %vm441, %v392
      %455 = vst.msk [vmem:[%s177 + $0x68] sm:$0xff] %vm441, %v394
      %456 = vst.msk [vmem:[%s177 + $0x70] sm:$0xff] %vm441, %v397
      %457 = vst.msk [vmem:[%s177 + $0x78] sm:$0xff] %vm441, %v399
      %458 = vst.msk [vmem:[%s177 + $0x80] sm:$0xff] %vm441, %v402
      %459 = vst.msk [vmem:[%s177 + $0x88] sm:$0xff] %vm441, %v404
      %460 = vst.msk [vmem:[%s177 + $0x90] sm:$0xff] %vm441, %v407
      %461 = vst.msk [vmem:[%s177 + $0x98] sm:$0xff] %vm441, %v409
      %462 = vst.msk [vmem:[%s177 + $0xa0] sm:$0xff] %vm441, %v412
      %463 = vst.msk [vmem:[%s177 + $0xa8] sm:$0xff] %vm441, %v414
      %464 = vst.msk [vmem:[%s177 + $0xb0] sm:$0xff] %vm441, %v417
      %465 = vst.msk [vmem:[%s177 + $0xb8] sm:$0xff] %vm441, %v419
      %466 = vst.msk [vmem:[%s177 + $0xc0] sm:$0xff] %vm441, %v422
      %467 = vst.msk [vmem:[%s177 + $0xc8] sm:$0xff] %vm441, %v424
      %468 = vst.msk [vmem:[%s177 + $0xd0] sm:$0xff] %vm441, %v427
      %469 = vst.msk [vmem:[%s177 + $0xd8] sm:$0xff] %vm441, %v429
      %470 = vst.msk [vmem:[%s177 + $0xe0] sm:$0xff] %vm441, %v432
      %471 = vst.msk [vmem:[%s177 + $0xe8] sm:$0xff] %vm441, %v434
      %472 = vst.msk [vmem:[%s177 + $0xf0] sm:$0xff] %vm441, %v437
      %473 = vst.msk [vmem:[%s177 + $0xf8] sm:$0xff] %vm441, %v439
      %v474 = vsel %vm441, %v362, 0.0
      %v475 = vsel %vm441, %v364, 0.0
      %v476 = vadd.f32 %v474, %v475
      %v477 = vsel %vm441, %v367, 0.0
      %v478 = vadd.f32 %v476, %v477
      %v479 = vsel %vm441, %v369, 0.0
      %v480 = vadd.f32 %v478, %v479
      %v481 = vsel %vm441, %v372, 0.0
      %v482 = vadd.f32 %v480, %v481
      %v483 = vsel %vm441, %v374, 0.0
      %v484 = vadd.f32 %v482, %v483
      %v485 = vsel %vm441, %v377, 0.0
      %v486 = vadd.f32 %v484, %v485
      %v487 = vsel %vm441, %v379, 0.0
      %v488 = vadd.f32 %v486, %v487
      %v489 = vsel %vm441, %v382, 0.0
      %v490 = vadd.f32 %v488, %v489
      %v491 = vsel %vm441, %v384, 0.0
      %v492 = vadd.f32 %v490, %v491
      %v493 = vsel %vm441, %v387, 0.0
      %v494 = vadd.f32 %v492, %v493
      %v495 = vsel %vm441, %v389, 0.0
      %v496 = vadd.f32 %v494, %v495
      %v497 = vsel %vm441, %v392, 0.0
      %v498 = vadd.f32 %v496, %v497
      %v499 = vsel %vm441, %v394, 0.0
      %v500 = vadd.f32 %v498, %v499
      %v501 = vsel %vm441, %v397, 0.0
      %v502 = vadd.f32 %v500, %v501
      %v503 = vsel %vm441, %v399, 0.0
      %v504 = vadd.f32 %v502, %v503
      %v505 = vsel %vm441, %v402, 0.0
      %v506 = vadd.f32 %v504, %v505
      %v507 = vsel %vm441, %v404, 0.0
      %v508 = vadd.f32 %v506, %v507
      %v509 = vsel %vm441, %v407, 0.0
      %v510 = vadd.f32 %v508, %v509
      %v511 = vsel %vm441, %v409, 0.0
      %v512 = vadd.f32 %v510, %v511
      %v513 = vsel %vm441, %v412, 0.0
      %v514 = vadd.f32 %v512, %v513
      %v515 = vsel %vm441, %v414, 0.0
      %v516 = vadd.f32 %v514, %v515
      %v517 = vsel %vm441, %v417, 0.0
      %v518 = vadd.f32 %v516, %v517
      %v519 = vsel %vm441, %v419, 0.0
      %v520 = vadd.f32 %v518, %v519
      %v521 = vsel %vm441, %v422, 0.0
      %v522 = vadd.f32 %v520, %v521
      %v523 = vsel %vm441, %v424, 0.0
      %v524 = vadd.f32 %v522, %v523
      %v525 = vsel %vm441, %v427, 0.0
      %v526 = vadd.f32 %v524, %v525
      %v527 = vsel %vm441, %v429, 0.0
      %v528 = vadd.f32 %v526, %v527
      %v529 = vsel %vm441, %v432, 0.0
      %v530 = vadd.f32 %v528, %v529
      %v531 = vsel %vm441, %v434, 0.0
      %v532 = vadd.f32 %v530, %v531
      %v533 = vsel %vm441, %v437, 0.0
      %v534 = vadd.f32 %v532, %v533
      %v535 = vsel %vm441, %v439, 0.0
      %v536 = vadd.f32 %v534, %v535
      %v537 = vrot.slane %v536, 4
      %v538 = vadd.f32 %v536, %v537
      %v539 = vrot.slane %v538, 2
      %v540 = vadd.f32 %v538, %v539
      %v541 = vrot.slane %v540, 1
      %v542 = vadd.f32 %v540, %v541
      %vm543 = vcmask 24576
      %544 = vst.msk [vmem:[%s181] sm:$0x1] %vm543, %v542
      %v545 = vmul.f32 %v362, %v362
      %v546 = vmul.f32 %v364, %v364
      %v547 = vmul.f32 %v367, %v367
      %v548 = vmul.f32 %v369, %v369
      %v549 = vmul.f32 %v372, %v372
      %v550 = vmul.f32 %v374, %v374
      %v551 = vmul.f32 %v377, %v377
      %v552 = vmul.f32 %v379, %v379
      %v553 = vmul.f32 %v382, %v382
      %v554 = vmul.f32 %v384, %v384
      %v555 = vmul.f32 %v387, %v387
      %v556 = vmul.f32 %v389, %v389
      %v557 = vmul.f32 %v392, %v392
      %v558 = vmul.f32 %v394, %v394
      %v559 = vmul.f32 %v397, %v397
      %v560 = vmul.f32 %v399, %v399
      %v561 = vmul.f32 %v402, %v402
      %v562 = vmul.f32 %v404, %v404
      %v563 = vmul.f32 %v407, %v407
      %v564 = vmul.f32 %v409, %v409
      %v565 = vmul.f32 %v412, %v412
      %v566 = vmul.f32 %v414, %v414
      %v567 = vmul.f32 %v417, %v417
      %v568 = vmul.f32 %v419, %v419
      %v569 = vmul.f32 %v422, %v422
      %v570 = vmul.f32 %v424, %v424
      %v571 = vmul.f32 %v427, %v427
      %v572 = vmul.f32 %v429, %v429
      %v573 = vmul.f32 %v432, %v432
      %v574 = vmul.f32 %v434, %v434
      %v575 = vmul.f32 %v437, %v437
      %v576 = vmul.f32 %v439, %v439
      %v577 = vsel %vm441, %v545, 0.0
      %v578 = vsel %vm441, %v546, 0.0
      %v579 = vadd.f32 %v577, %v578
      %v580 = vsel %vm441, %v547, 0.0
      %v581 = vadd.f32 %v579, %v580
      %v582 = vsel %vm441, %v548, 0.0
      %v583 = vadd.f32 %v581, %v582
      %v584 = vsel %vm441, %v549, 0.0
      %v585 = vadd.f32 %v583, %v584
      %v586 = vsel %vm441, %v550, 0.0
      %v587 = vadd.f32 %v585, %v586
      %v588 = vsel %vm441, %v551, 0.0
      %v589 = vadd.f32 %v587, %v588
      %v590 = vsel %vm441, %v552, 0.0
      %v591 = vadd.f32 %v589, %v590
      %v592 = vsel %vm441, %v553, 0.0
      %v593 = vadd.f32 %v591, %v592
      %v594 = vsel %vm441, %v554, 0.0
      %v595 = vadd.f32 %v593, %v594
      %v596 = vsel %vm441, %v555, 0.0
      %v597 = vadd.f32 %v595, %v596
      %v598 = vsel %vm441, %v556, 0.0
      %v599 = vadd.f32 %v597, %v598
      %v600 = vsel %vm441, %v557, 0.0
      %v601 = vadd.f32 %v599, %v600
      %v602 = vsel %vm441, %v558, 0.0
      %v603 = vadd.f32 %v601, %v602
      %v604 = vsel %vm441, %v559, 0.0
      %v605 = vadd.f32 %v603, %v604
      %v606 = vsel %vm441, %v560, 0.0
      %v607 = vadd.f32 %v605, %v606
      %v608 = vsel %vm441, %v561, 0.0
      %v609 = vadd.f32 %v607, %v608
      %v610 = vsel %vm441, %v562, 0.0
      %v611 = vadd.f32 %v609, %v610
      %v612 = vsel %vm441, %v563, 0.0
      %v613 = vadd.f32 %v611, %v612
      %v614 = vsel %vm441, %v564, 0.0
      %v615 = vadd.f32 %v613, %v614
      %v616 = vsel %vm441, %v565, 0.0
      %v617 = vadd.f32 %v615, %v616
      %v618 = vsel %vm441, %v566, 0.0
      %v619 = vadd.f32 %v617, %v618
      %v620 = vsel %vm441, %v567, 0.0
      %v621 = vadd.f32 %v619, %v620
      %v622 = vsel %vm441, %v568, 0.0
      %v623 = vadd.f32 %v621, %v622
      %v624 = vsel %vm441, %v569, 0.0
      %v625 = vadd.f32 %v623, %v624
      %v626 = vsel %vm441, %v570, 0.0
      %v627 = vadd.f32 %v625, %v626
      %v628 = vsel %vm441, %v571, 0.0
      %v629 = vadd.f32 %v627, %v628
      %v630 = vsel %vm441, %v572, 0.0
      %v631 = vadd.f32 %v629, %v630
      %v632 = vsel %vm441, %v573, 0.0
      %v633 = vadd.f32 %v631, %v632
      %v634 = vsel %vm441, %v574, 0.0
      %v635 = vadd.f32 %v633, %v634
      %v636 = vsel %vm441, %v575, 0.0
      %v637 = vadd.f32 %v635, %v636
      %v638 = vsel %vm441, %v576, 0.0
      %v639 = vadd.f32 %v637, %v638
      %v640 = vrot.slane %v639, 4
      %v641 = vadd.f32 %v639, %v640
      %v642 = vrot.slane %v641, 2
      %v643 = vadd.f32 %v641, %v642
      %v644 = vrot.slane %v643, 1
      %v645 = vadd.f32 %v643, %v644
      %646 = vst.msk [vmem:[%s181 + $0x1] sm:$0x1] %vm543, %v645
      %p647 = scmp.lt.s32.totalorder %s15, 1
      %s648 = scalar_select %p647, %s15, 1
      %s649 = smul.addr %s648, 32
      %s650 = smul.addr %s649, 8
      %s651 = scalar_lea.vmem %s2, %s650
      %p652 = scmp.lt.s32.totalorder %s15, 1
      %s653 = scalar_select %p652, %s15, 1
      %s654 = smul.addr %s653, 2
      %s655 = scalar_lea.vmem %s3, %s654
      // Predicated region
      $region29: #{resblock_forward_nhwc.4} parent=27 // pred_check
        %p656 = pneg %p80
      $region30: #{resblock_forward_nhwc.4} parent=27 // pred_check_branch
        %658 = sbr.rel (%p656) target = $region32
      $region31: #{resblock_forward_nhwc.4} parent=27 // pred_region
        _
      $region32: #{resblock_forward_nhwc.4} parent=27 // pred_fallthru
        _
      // Predicated region
      $region33: #{resblock_forward_nhwc.4} parent=27 // pred_check
        %p659 = pneg %p106
      $region34: #{resblock_forward_nhwc.4} parent=27 // pred_check_branch
        %661 = sbr.rel (%p659) target = $region36
      $region35: #{resblock_forward_nhwc.4} parent=27 // pred_region
        _
      $region36: #{resblock_forward_nhwc.4} parent=27 // pred_fallthru
        _
    $region28: #{resblock_forward_nhwc.4} parent=5 // pred_fallthru
      _
    %p662 = scmp.le.s32.totalorder 2, %s10
    // Predicated region
    $region37: #{resblock_forward_nhwc.4} parent=5 // pred_check
      %p663 = pneg %p662
    $region38: #{resblock_forward_nhwc.4} parent=5 // pred_check_branch
      %665 = sbr.rel (%p663) target = $region40
    $region39: #{resblock_forward_nhwc.4} parent=5 // pred_region
      %s666 = ssub.s32 %s10, 2
      // Predicated region
      $region41: #{resblock_forward_nhwc.4} parent=39 // pred_check
        %p667 = pneg %p86
      $region42: #{resblock_forward_nhwc.4} parent=39 // pred_check_branch
        %669 = sbr.rel (%p667) target = $region44
      $region43: #{resblock_forward_nhwc.4} parent=39 // pred_region
        %p670 = scmp.lt.s32.totalorder %s16, 1
        %s671 = scalar_select %p670, %s16, 1
        %s672 = smul.addr %s671, 32
        %s673 = smul.addr %s672, 8
        %s674 = scalar_lea.vmem %s2, %s673
      $region44: #{resblock_forward_nhwc.4} parent=39 // pred_fallthru
        _
      // Predicated region
      $region45: #{resblock_forward_nhwc.4} parent=39 // pred_check
        %p675 = pneg %p112
      $region46: #{resblock_forward_nhwc.4} parent=39 // pred_check_branch
        %677 = sbr.rel (%p675) target = $region48
      $region47: #{resblock_forward_nhwc.4} parent=39 // pred_region
        %p678 = scmp.lt.s32.totalorder %s16, 1
        %s679 = scalar_select %p678, %s16, 1
        %s680 = smul.addr %s679, 2
        %s681 = scalar_lea.vmem %s3, %s680
      $region48: #{resblock_forward_nhwc.4} parent=39 // pred_fallthru
        _
    $region40: #{resblock_forward_nhwc.4} parent=5 // pred_fallthru
      _
  $region6: #{resblock_forward_nhwc.4} parent=0 // loop_footer
    %s14 = sadd.s32 1, %s10
  $region7: #{resblock_forward_nhwc.4} parent=0 // loop_footer_branch
    %9 = sbr.rel target = $region3
  $region8: #{resblock_forward_nhwc.4} parent=0 // loop_exit
    _

// kernel: resblock_forward_nhwc.6
$region0: #{resblock_forward_nhwc.6}
  #allocation0 [shape = 'u32[]', space=smem, size = 0x4, offset = 0x4, fixed_abs, tag = 'smem constant byte address 0x4 - core index']
  #allocation1 [shape = 'u32[72,128]{1,0:T(1,128)}', space=vmem, size = 0x9000, scoped, tag = 'internal scratch']
  %s0 = inlined_call_operand.vmem [shape: f32[2,256,4], index: 0, kind: input, shape index: {}]
  %s1 = inlined_call_operand.vmem [shape: f32[1,4], index: 1, kind: input, shape index: {}]
  %s2 = inlined_call_operand.vmem [shape: f32[1,4], index: 2, kind: input, shape index: {}]
  %s3 = inlined_call_operand.vmem [shape: bf16[4,16], index: 3, kind: input, shape index: {}]
  %s4 = inlined_call_operand.vmem [shape: f32[2,256,16], index: 4, kind: output, shape index: {0}]
  %s5 = inlined_call_operand.vmem [shape: f32[2,2,16], index: 5, kind: output, shape index: {1}]
  %6 = xla_tuple %s4, %s5
  %s7 = sld [smem:[#allocation0]]
  $region57: #{resblock_forward_nhwc.6} parent=0
    _
  %s9 = ssub.s32 1, %s7
  %s10 = scalar_select 0, %s9, %s7
  loop: start=0, step=1, limit=4
  $region2: #{resblock_forward_nhwc.6} parent=0 // loop_pre_header
    _
  $region3: #{resblock_forward_nhwc.6} parent=0 // loop_header
    %s12 = sphi 0, %s16
    %p13 = scmp.ge.s32.totalorder %s12, 4
    %s22 = sphi 0, %s24
    %s25 = sphi 0, %s22
    %s26 = sphi 0, %s25
    %s42 = sphi 0, %s26
    %s46 = sphi 0, %s46
    %s48 = sphi 0, %s46
    %s49 = sphi 0, %s48
    %s63 = sphi 0, %s49
    %s67 = sphi 0, %s67
    %s69 = sphi 0, %s67
    %s70 = sphi 0, %s69
    %s84 = sphi 0, %s70
    %s88 = sphi 0, %s88
    %s90 = sphi 0, %s88
    %s91 = sphi 0, %s90
    %s105 = sphi 0, %s91
    %s111 = sphi 0, %s113
    %s114 = sphi 0, %s111
    %s115 = sphi 0, %s114
    %s131 = sphi 0, %s115
    %s137 = sphi 0, %s139
    %s140 = sphi 0, %s137
    %s141 = sphi 0, %s140
    %s157 = sphi 0, %s141
  $region4: #{resblock_forward_nhwc.6} parent=0 // loop_header_branch
    %15 = sbr.rel (%p13) target = $region8
  $region5: #{resblock_forward_nhwc.6} parent=0 // loop_body
    %s17 = ssub.s32 %s12, 1
    %s18 = ssub.s32 %s12, 2
    %s19 = sadd.s32 %s12, 1
    %s20 = ssub.s32 %s12, %s19
    %p21 = scmp.eq.s32.totalorder %s20, 0
    %s23 = sadd.s32 %s22, 1
    %s24 = scalar_select %p21, %s22, %s23
    %p27 = pneg %p21
    %p28 = scmp.eq.s32.totalorder %s12, 1
    %p29 = por %p27, %p28
    %p30 = scmp.ne.s32.totalorder %s22, %s25
    %p31 = scmp.eq.s32.totalorder %s12, 0
    %p32 = por %p30, %p31
    %p33 = scmp.ne.s32.totalorder %s22, %s25
    %p34 = scmp.eq.s32.totalorder %s17, 1
    %p35 = por %p33, %p34
    %p36 = scmp.ne.s32.totalorder %s25, %s26
    %p37 = scmp.eq.s32.totalorder %s17, 0
    %p38 = por %p36, %p37
    %p39 = scmp.ne.s32.totalorder %s25, %s26
    %p40 = scmp.eq.s32.totalorder %s18, 1
    %p41 = por %p39, %p40
    %p43 = scmp.ne.s32.totalorder %s26, %s42
    %p44 = scmp.eq.s32.totalorder %s18, 0
    %p45 = por %p43, %p44
    %s47 = sadd.s32 %s46, 1
    %p50 = scmp.eq.s32.totalorder %s12, 1
    %p51 = scmp.ne.s32.totalorder %s46, %s48
    %p52 = scmp.eq.s32.totalorder %s12, 0
    %p53 = por %p51, %p52
    %p54 = scmp.ne.s32.totalorder %s46, %s48
    %p55 = scmp.eq.s32.totalorder %s17, 1
    %p56 = por %p54, %p55
    %p57 = scmp.ne.s32.totalorder %s48, %s49
    %p58 = scmp.eq.s32.totalorder %s17, 0
    %p59 = por %p57, %p58
    %p60 = scmp.ne.s32.totalorder %s48, %s49
    %p61 = scmp.eq.s32.totalorder %s18, 1
    %p62 = por %p60, %p61
    %p64 = scmp.ne.s32.totalorder %s49, %s63
    %p65 = scmp.eq.s32.totalorder %s18, 0
    %p66 = por %p64, %p65
    %s68 = sadd.s32 %s67, 1
    %p71 = scmp.eq.s32.totalorder %s12, 1
    %p72 = scmp.ne.s32.totalorder %s67, %s69
    %p73 = scmp.eq.s32.totalorder %s12, 0
    %p74 = por %p72, %p73
    %p75 = scmp.ne.s32.totalorder %s67, %s69
    %p76 = scmp.eq.s32.totalorder %s17, 1
    %p77 = por %p75, %p76
    %p78 = scmp.ne.s32.totalorder %s69, %s70
    %p79 = scmp.eq.s32.totalorder %s17, 0
    %p80 = por %p78, %p79
    %p81 = scmp.ne.s32.totalorder %s69, %s70
    %p82 = scmp.eq.s32.totalorder %s18, 1
    %p83 = por %p81, %p82
    %p85 = scmp.ne.s32.totalorder %s70, %s84
    %p86 = scmp.eq.s32.totalorder %s18, 0
    %p87 = por %p85, %p86
    %s89 = sadd.s32 %s88, 1
    %p92 = scmp.eq.s32.totalorder %s12, 1
    %p93 = scmp.ne.s32.totalorder %s88, %s90
    %p94 = scmp.eq.s32.totalorder %s12, 0
    %p95 = por %p93, %p94
    %p96 = scmp.ne.s32.totalorder %s88, %s90
    %p97 = scmp.eq.s32.totalorder %s17, 1
    %p98 = por %p96, %p97
    %p99 = scmp.ne.s32.totalorder %s90, %s91
    %p100 = scmp.eq.s32.totalorder %s17, 0
    %p101 = por %p99, %p100
    %p102 = scmp.ne.s32.totalorder %s90, %s91
    %p103 = scmp.eq.s32.totalorder %s18, 1
    %p104 = por %p102, %p103
    %p106 = scmp.ne.s32.totalorder %s91, %s105
    %p107 = scmp.eq.s32.totalorder %s18, 0
    %p108 = por %p106, %p107
    %s109 = ssub.s32 %s12, %s19
    %p110 = scmp.eq.s32.totalorder %s109, 0
    %s112 = sadd.s32 %s111, 1
    %s113 = scalar_select %p110, %s111, %s112
    %p116 = pneg %p110
    %p117 = scmp.eq.s32.totalorder %s12, 1
    %p118 = por %p116, %p117
    %p119 = scmp.ne.s32.totalorder %s111, %s114
    %p120 = scmp.eq.s32.totalorder %s12, 0
    %p121 = por %p119, %p120
    %p122 = scmp.ne.s32.totalorder %s111, %s114
    %p123 = scmp.eq.s32.totalorder %s17, 1
    %p124 = por %p122, %p123
    %p125 = scmp.ne.s32.totalorder %s114, %s115
    %p126 = scmp.eq.s32.totalorder %s17, 0
    %p127 = por %p125, %p126
    %p128 = scmp.ne.s32.totalorder %s114, %s115
    %p129 = scmp.eq.s32.totalorder %s18, 1
    %p130 = por %p128, %p129
    %p132 = scmp.ne.s32.totalorder %s115, %s131
    %p133 = scmp.eq.s32.totalorder %s18, 0
    %p134 = por %p132, %p133
    %s135 = ssub.s32 %s12, %s19
    %p136 = scmp.eq.s32.totalorder %s135, 0
    %s138 = sadd.s32 %s137, 1
    %s139 = scalar_select %p136, %s137, %s138
    %p142 = pneg %p136
    %p143 = scmp.eq.s32.totalorder %s12, 1
    %p144 = por %p142, %p143
    %p145 = scmp.ne.s32.totalorder %s137, %s140
    %p146 = scmp.eq.s32.totalorder %s12, 0
    %p147 = por %p145, %p146
    %p148 = scmp.ne.s32.totalorder %s137, %s140
    %p149 = scmp.eq.s32.totalorder %s17, 1
    %p150 = por %p148, %p149
    %p151 = scmp.ne.s32.totalorder %s140, %s141
    %p152 = scmp.eq.s32.totalorder %s17, 0
    %p153 = por %p151, %p152
    %p154 = scmp.ne.s32.totalorder %s140, %s141
    %p155 = scmp.eq.s32.totalorder %s18, 1
    %p156 = por %p154, %p155
    %p158 = scmp.ne.s32.totalorder %s141, %s157
    %p159 = scmp.eq.s32.totalorder %s18, 0
    %p160 = por %p158, %p159
    %p161 = scmp.le.s32.totalorder 1, %s12
    %p162 = scmp.lt.s32.totalorder %s12, 3
    %p163 = pnand %p161, %p162
    %p164 = pneg %p163
    // Predicated region
    $region9: #{resblock_forward_nhwc.6} parent=5 // pred_check
      _
    $region10: #{resblock_forward_nhwc.6} parent=5 // pred_check_branch
      %166 = sbr.rel (%p163) target = $region12
    $region11: #{resblock_forward_nhwc.6} parent=5 // pred_region
      %s167 = ssub.s32 %s12, 1
      // Predicated region
      $region13: #{resblock_forward_nhwc.6} parent=11 // pred_check
        %p168 = pneg %p59
      $region14: #{resblock_forward_nhwc.6} parent=11 // pred_check_branch
        %170 = sbr.rel (%p168) target = $region16
      $region15: #{resblock_forward_nhwc.6} parent=11 // pred_region
        _
      $region16: #{resblock_forward_nhwc.6} parent=11 // pred_fallthru
        _
      // Predicated region
      $region17: #{resblock_forward_nhwc.6} parent=11 // pred_check
        %p171 = pneg %p80
      $region18: #{resblock_forward_nhwc.6} parent=11 // pred_check_branch
        %173 = sbr.rel (%p171) target = $region20
      $region19: #{resblock_forward_nhwc.6} parent=11 // pred_region
        _
      $region20: #{resblock_forward_nhwc.6} parent=11 // pred_fallthru
        _
      // Predicated region
      $region21: #{resblock_forward_nhwc.6} parent=11 // pred_check
        %p174 = pneg %p101
      $region22: #{resblock_forward_nhwc.6} parent=11 // pred_check_branch
        %176 = sbr.rel (%p174) target = $region24
      $region23: #{resblock_forward_nhwc.6} parent=11 // pred_region
        _
      $region24: #{resblock_forward_nhwc.6} parent=11 // pred_fallthru
        _
    $region12: #{resblock_forward_nhwc.6} parent=5 // pred_fallthru
      _
    %p177 = scmp.lt.s32.totalorder %s12, 2
    // Predicated region
    $region25: #{resblock_forward_nhwc.6} parent=5 // pred_check
      %p178 = pneg %p177
    $region26: #{resblock_forward_nhwc.6} parent=5 // pred_check_branch
      %180 = sbr.rel (%p178) target = $region28
    $region27: #{resblock_forward_nhwc.6} parent=5 // pred_region
      // Predicated region
      $region29: #{resblock_forward_nhwc.6} parent=27 // pred_check
        %p181 = pneg %p32
      $region30: #{resblock_forward_nhwc.6} parent=27 // pred_check_branch
        %183 = sbr.rel (%p181) target = $region32
      $region31: #{resblock_forward_nhwc.6} parent=27 // pred_region
        %p184 = scmp.lt.s32.totalorder %s12, 1
        %s185 = scalar_select %p184, %s12, 1
        %s186 = smul.addr %s185, 32
        %s187 = smul.addr %s186, 8
        %s188 = scalar_lea.vmem %s0, %s187
      $region32: #{resblock_forward_nhwc.6} parent=27 // pred_fallthru
        _
    $region28: #{resblock_forward_nhwc.6} parent=5 // pred_fallthru
      _
    %p189 = scmp.le.s32.totalorder 1, %s12
    %p190 = scmp.lt.s32.totalorder %s12, 3
    %p191 = pnand %p189, %p190
    %p192 = pneg %p191
    // Predicated region
    $region33: #{resblock_forward_nhwc.6} parent=5 // pred_check
      _
    $region34: #{resblock_forward_nhwc.6} parent=5 // pred_check_branch
      %194 = sbr.rel (%p191) target = $region36
    $region35: #{resblock_forward_nhwc.6} parent=5 // pred_region
      %s195 = ssub.s32 %s12, 1
      %p196 = scmp.lt.s32.totalorder %s17, 1
      %s197 = scalar_select %p196, %s17, 1
      %s198 = smul.addr %s197, 32
      %s199 = smul.addr %s198, 8
      %s200 = scalar_lea.vmem %s0, %s199
      %p201 = pneg %p38
      %p202 = pneg %p35
      %p203 = pneg %p59
      %p204 = pneg %p56
      %p205 = pneg %p80
      %p206 = pneg %p77
      %p207 = pneg %p101
      %p208 = pneg %p98
      %p209 = pneg %p127
      %p210 = pneg %p124
      %p211 = scmp.lt.s32.totalorder %s17, 1
      %s212 = scalar_select %p211, %s17, 1
      %s213 = smul.addr %s212, 32
      %s214 = smul.addr %s213, 8
      %s215 = scalar_lea.vmem %s4, %s214
      %p216 = pneg %p153
      %p217 = pneg %p150
      %p218 = scmp.lt.s32.totalorder %s17, 1
      %s219 = scalar_select %p218, %s17, 1
      %s220 = smul.addr %s219, 2
      %s221 = scalar_lea.vmem %s5, %s220
      %p222 = scmp.lt.s32.totalorder %s17, 1
      %s223 = scalar_select %p222, %s17, 1
      %s224 = smul.addr %s223, 32
      %s225 = smul.addr %s224, 8
      %s226 = scalar_lea.vmem %s0, %s225
      %p227 = scmp.lt.s32.totalorder %s17, 1
      %s228 = scalar_select %p227, %s17, 1
      %s229 = smul.addr %s228, 32
      %s230 = smul.addr %s229, 8
      %s231 = scalar_lea.vmem %s4, %s230
      %p232 = scmp.lt.s32.totalorder %s17, 1
      %s233 = scalar_select %p232, %s17, 1
      %s234 = smul.addr %s233, 2
      %s235 = scalar_lea.vmem %s5, %s234
      %v237 = vld [vmem:[%s226] sm:$0xff]
      %v238 = vld [vmem:[%s226 + $0x8] sm:$0xff]
      %v239 = vld [vmem:[%s226 + $0x10] sm:$0xff]
      %v240 = vld [vmem:[%s226 + $0x18] sm:$0xff]
      %v241 = vld [vmem:[%s226 + $0x20] sm:$0xff]
      %v242 = vld [vmem:[%s226 + $0x28] sm:$0xff]
      %v243 = vld [vmem:[%s226 + $0x30] sm:$0xff]
      %v244 = vld [vmem:[%s226 + $0x38] sm:$0xff]
      %v245 = vld [vmem:[%s226 + $0x40] sm:$0xff]
      %v246 = vld [vmem:[%s226 + $0x48] sm:$0xff]
      %v247 = vld [vmem:[%s226 + $0x50] sm:$0xff]
      %v248 = vld [vmem:[%s226 + $0x58] sm:$0xff]
      %v249 = vld [vmem:[%s226 + $0x60] sm:$0xff]
      %v250 = vld [vmem:[%s226 + $0x68] sm:$0xff]
      %v251 = vld [vmem:[%s226 + $0x70] sm:$0xff]
      %v252 = vld [vmem:[%s226 + $0x78] sm:$0xff]
      %v253 = vld [vmem:[%s226 + $0x80] sm:$0xff]
      %v254 = vld [vmem:[%s226 + $0x88] sm:$0xff]
      %v255 = vld [vmem:[%s226 + $0x90] sm:$0xff]
      %v256 = vld [vmem:[%s226 + $0x98] sm:$0xff]
      %v257 = vld [vmem:[%s226 + $0xa0] sm:$0xff]
      %v258 = vld [vmem:[%s226 + $0xa8] sm:$0xff]
      %v259 = vld [vmem:[%s226 + $0xb0] sm:$0xff]
      %v260 = vld [vmem:[%s226 + $0xb8] sm:$0xff]
      %v261 = vld [vmem:[%s226 + $0xc0] sm:$0xff]
      %v262 = vld [vmem:[%s226 + $0xc8] sm:$0xff]
      %v263 = vld [vmem:[%s226 + $0xd0] sm:$0xff]
      %v264 = vld [vmem:[%s226 + $0xd8] sm:$0xff]
      %v265 = vld [vmem:[%s226 + $0xe0] sm:$0xff]
      %v266 = vld [vmem:[%s226 + $0xe8] sm:$0xff]
      %v267 = vld [vmem:[%s226 + $0xf0] sm:$0xff]
      %v268 = vld [vmem:[%s226 + $0xf8] sm:$0xff]
      %v269 = vld [vmem:[%s1] sm:$0x1]
      %v271 = vperm.slane %v269, 0
      %v273 = vmul.f32 %v237, %v271
      %v274 = vmul.f32 %v238, %v271
      %v275 = vmul.f32 %v239, %v271
      %v276 = vmul.f32 %v240, %v271
      %v277 = vmul.f32 %v241, %v271
      %v278 = vmul.f32 %v242, %v271
      %v279 = vmul.f32 %v243, %v271
      %v280 = vmul.f32 %v244, %v271
      %v281 = vmul.f32 %v245, %v271
      %v282 = vmul.f32 %v246, %v271
      %v283 = vmul.f32 %v247, %v271
      %v284 = vmul.f32 %v248, %v271
      %v285 = vmul.f32 %v249, %v271
      %v286 = vmul.f32 %v250, %v271
      %v287 = vmul.f32 %v251, %v271
      %v288 = vmul.f32 %v252, %v271
      %v289 = vmul.f32 %v253, %v271
      %v290 = vmul.f32 %v254, %v271
      %v291 = vmul.f32 %v255, %v271
      %v292 = vmul.f32 %v256, %v271
      %v293 = vmul.f32 %v257, %v271
      %v294 = vmul.f32 %v258, %v271
      %v295 = vmul.f32 %v259, %v271
      %v296 = vmul.f32 %v260, %v271
      %v297 = vmul.f32 %v261, %v271
      %v298 = vmul.f32 %v262, %v271
      %v299 = vmul.f32 %v263, %v271
      %v300 = vmul.f32 %v264, %v271
      %v301 = vmul.f32 %v265, %v271
      %v302 = vmul.f32 %v266, %v271
      %v303 = vmul.f32 %v267, %v271
      %v304 = vmul.f32 %v268, %v271
      %v305 = vld [vmem:[%s2] sm:$0x1]
      %v307 = vperm.slane %v305, 0
      %v309 = vadd.f32 %v273, %v307
      %v310 = vadd.f32 %v274, %v307
      %v311 = vadd.f32 %v275, %v307
      %v312 = vadd.f32 %v276, %v307
      %v313 = vadd.f32 %v277, %v307
      %v314 = vadd.f32 %v278, %v307
      %v315 = vadd.f32 %v279, %v307
      %v316 = vadd.f32 %v280, %v307
      %v317 = vadd.f32 %v281, %v307
      %v318 = vadd.f32 %v282, %v307
      %v319 = vadd.f32 %v283, %v307
      %v320 = vadd.f32 %v284, %v307
      %v321 = vadd.f32 %v285, %v307
      %v322 = vadd.f32 %v286, %v307
      %v323 = vadd.f32 %v287, %v307
      %v324 = vadd.f32 %v288, %v307
      %v325 = vadd.f32 %v289, %v307
      %v326 = vadd.f32 %v290, %v307
      %v327 = vadd.f32 %v291, %v307
      %v328 = vadd.f32 %v292, %v307
      %v329 = vadd.f32 %v293, %v307
      %v330 = vadd.f32 %v294, %v307
      %v331 = vadd.f32 %v295, %v307
      %v332 = vadd.f32 %v296, %v307
      %v333 = vadd.f32 %v297, %v307
      %v334 = vadd.f32 %v298, %v307
      %v335 = vadd.f32 %v299, %v307
      %v336 = vadd.f32 %v300, %v307
      %v337 = vadd.f32 %v301, %v307
      %v338 = vadd.f32 %v302, %v307
      %v339 = vadd.f32 %v303, %v307
      %v340 = vadd.f32 %v304, %v307
      %v341 = vmax.f32 %v309, 0.0
      %v342 = vmax.f32 %v310, 0.0
      %v343 = vmax.f32 %v311, 0.0
      %v344 = vmax.f32 %v312, 0.0
      %v345 = vmax.f32 %v313, 0.0
      %v346 = vmax.f32 %v314, 0.0
      %v347 = vmax.f32 %v315, 0.0
      %v348 = vmax.f32 %v316, 0.0
      %v349 = vmax.f32 %v317, 0.0
      %v350 = vmax.f32 %v318, 0.0
      %v351 = vmax.f32 %v319, 0.0
      %v352 = vmax.f32 %v320, 0.0
      %v353 = vmax.f32 %v321, 0.0
      %v354 = vmax.f32 %v322, 0.0
      %v355 = vmax.f32 %v323, 0.0
      %v356 = vmax.f32 %v324, 0.0
      %v357 = vmax.f32 %v325, 0.0
      %v358 = vmax.f32 %v326, 0.0
      %v359 = vmax.f32 %v327, 0.0
      %v360 = vmax.f32 %v328, 0.0
      %v361 = vmax.f32 %v329, 0.0
      %v362 = vmax.f32 %v330, 0.0
      %v363 = vmax.f32 %v331, 0.0
      %v364 = vmax.f32 %v332, 0.0
      %v365 = vmax.f32 %v333, 0.0
      %v366 = vmax.f32 %v334, 0.0
      %v367 = vmax.f32 %v335, 0.0
      %v368 = vmax.f32 %v336, 0.0
      %v369 = vmax.f32 %v337, 0.0
      %v370 = vmax.f32 %v338, 0.0
      %v371 = vmax.f32 %v339, 0.0
      %v372 = vmax.f32 %v340, 0.0
      %v373 = vpack.c.bf16 %v342, %v341
      %v374 = vpack.c.bf16 %v344, %v343
      %v375 = vpack.c.bf16 %v346, %v345
      %v376 = vpack.c.bf16 %v348, %v347
      %v377 = vpack.c.bf16 %v350, %v349
      %v378 = vpack.c.bf16 %v352, %v351
      %v379 = vpack.c.bf16 %v354, %v353
      %v380 = vpack.c.bf16 %v356, %v355
      %v381 = vpack.c.bf16 %v358, %v357
      %v382 = vpack.c.bf16 %v360, %v359
      %v383 = vpack.c.bf16 %v362, %v361
      %v384 = vpack.c.bf16 %v364, %v363
      %v385 = vpack.c.bf16 %v366, %v365
      %v386 = vpack.c.bf16 %v368, %v367
      %v387 = vpack.c.bf16 %v370, %v369
      %v388 = vpack.c.bf16 %v372, %v371
      %v389 = vld [vmem:[%s3] sm:$0x3]
      %vm390 = vcmask 31744
      %v392 = vsel %vm390, %v373, 0
      %v395 = vsel %vm390, %v374, 0
      %v398 = vsel %vm390, %v375, 0
      %v401 = vsel %vm390, %v376, 0
      %v404 = vsel %vm390, %v377, 0
      %v407 = vsel %vm390, %v378, 0
      %v410 = vsel %vm390, %v379, 0
      %v413 = vsel %vm390, %v380, 0
      %v416 = vsel %vm390, %v381, 0
      %v419 = vsel %vm390, %v382, 0
      %v422 = vsel %vm390, %v383, 0
      %v425 = vsel %vm390, %v384, 0
      %v428 = vsel %vm390, %v385, 0
      %v431 = vsel %vm390, %v386, 0
      %v434 = vsel %vm390, %v387, 0
      %v437 = vsel %vm390, %v388, 0
      %vm439 = vcmask 1041408
      %v441 = vsel %vm439, %v389, 0
      %443 = vmatpush.bf16.msra.mxu0 0
      %444 = vmatpush.bf16.msra.mxu0 0
      %445 = vmatpush.bf16.msra.mxu0 0
      %446 = vmatpush.bf16.msra.mxu0 0
      %447 = vmatpush.bf16.msra.mxu0 0
      %448 = vmatpush.bf16.msra.mxu0 0
      %449 = vmatpush.bf16.msra.mxu0 0
      %450 = vmatpush.bf16.msra.mxu0 %v441
      %451 = vmatmul.bf16.gmra.mxu0 %v392
      %v452 = vpop.f32.mrf.mxu0
      %v453 = vadd.f32 0.0, %v452
      %v454 = vpop.f32.mrf.mxu0
      %v455 = vadd.f32 0.0, %v454
      %456 = vmatmul.bf16.gmra.mxu0 %v395
      %v457 = vpop.f32.mrf.mxu0
      %v458 = vadd.f32 0.0, %v457
      %v459 = vpop.f32.mrf.mxu0
      %v460 = vadd.f32 0.0, %v459
      %461 = vmatmul.bf16.gmra.mxu0 %v398
      %v462 = vpop.f32.mrf.mxu0
      %v463 = vadd.f32 0.0, %v462
      %v464 = vpop.f32.mrf.mxu0
      %v465 = vadd.f32 0.0, %v464
      %466 = vmatmul.bf16.gmra.mxu0 %v401
      %v467 = vpop.f32.mrf.mxu0
      %v468 = vadd.f32 0.0, %v467
      %v469 = vpop.f32.mrf.mxu0
      %v470 = vadd.f32 0.0, %v469
      %471 = vmatmul.bf16.gmra.mxu0 %v404
      %v472 = vpop.f32.mrf.mxu0
      %v473 = vadd.f32 0.0, %v472
      %v474 = vpop.f32.mrf.mxu0
      %v475 = vadd.f32 0.0, %v474
      %476 = vmatmul.bf16.gmra.mxu0 %v407
      %v477 = vpop.f32.mrf.mxu0
      %v478 = vadd.f32 0.0, %v477
      %v479 = vpop.f32.mrf.mxu0
      %v480 = vadd.f32 0.0, %v479
      %481 = vmatmul.bf16.gmra.mxu0 %v410
      %v482 = vpop.f32.mrf.mxu0
      %v483 = vadd.f32 0.0, %v482
      %v484 = vpop.f32.mrf.mxu0
      %v485 = vadd.f32 0.0, %v484
      %486 = vmatmul.bf16.gmra.mxu0 %v413
      %v487 = vpop.f32.mrf.mxu0
      %v488 = vadd.f32 0.0, %v487
      %v489 = vpop.f32.mrf.mxu0
      %v490 = vadd.f32 0.0, %v489
      %491 = vmatmul.bf16.gmra.mxu0 %v416
      %v492 = vpop.f32.mrf.mxu0
      %v493 = vadd.f32 0.0, %v492
      %v494 = vpop.f32.mrf.mxu0
      %v495 = vadd.f32 0.0, %v494
      %496 = vmatmul.bf16.gmra.mxu0 %v419
      %v497 = vpop.f32.mrf.mxu0
      %v498 = vadd.f32 0.0, %v497
      %v499 = vpop.f32.mrf.mxu0
      %v500 = vadd.f32 0.0, %v499
      %501 = vmatmul.bf16.gmra.mxu0 %v422
      %v502 = vpop.f32.mrf.mxu0
      %v503 = vadd.f32 0.0, %v502
      %v504 = vpop.f32.mrf.mxu0
      %v505 = vadd.f32 0.0, %v504
      %506 = vmatmul.bf16.gmra.mxu0 %v425
      %v507 = vpop.f32.mrf.mxu0
      %v508 = vadd.f32 0.0, %v507
      %v509 = vpop.f32.mrf.mxu0
      %v510 = vadd.f32 0.0, %v509
      %511 = vmatmul.bf16.gmra.mxu0 %v428
      %v512 = vpop.f32.mrf.mxu0
      %v513 = vadd.f32 0.0, %v512
      %v514 = vpop.f32.mrf.mxu0
      %v515 = vadd.f32 0.0, %v514
      %516 = vmatmul.bf16.gmra.mxu0 %v431
      %v517 = vpop.f32.mrf.mxu0
      %v518 = vadd.f32 0.0, %v517
      %v519 = vpop.f32.mrf.mxu0
      %v520 = vadd.f32 0.0, %v519
      %521 = vmatmul.bf16.gmra.mxu0 %v434
      %v522 = vpop.f32.mrf.mxu0
      %v523 = vadd.f32 0.0, %v522
      %v524 = vpop.f32.mrf.mxu0
      %v525 = vadd.f32 0.0, %v524
      %526 = vmatmul.bf16.gmra.mxu0 %v437
      %v527 = vpop.f32.mrf.mxu0
      %v528 = vadd.f32 0.0, %v527
      %v529 = vpop.f32.mrf.mxu0
      %v530 = vadd.f32 0.0, %v529
      %531 = vdwg.mxu0
      %vm532 = vcmask 130048
      %533 = vst.msk [vmem:[%s231] sm:$0xff] %vm532, %v453
      %534 = vst.msk [vmem:[%s231 + $0x8] sm:$0xff] %vm532, %v455
      %535 = vst.msk [vmem:[%s231 + $0x10] sm:$0xff] %vm532, %v458
      %536 = vst.msk [vmem:[%s231 + $0x18] sm:$0xff] %vm532, %v460
      %537 = vst.msk [vmem:[%s231 + $0x20] sm:$0xff] %vm532, %v463
      %538 = vst.msk [vmem:[%s231 + $0x28] sm:$0xff] %vm532, %v465
      %539 = vst.msk [vmem:[%s231 + $0x30] sm:$0xff] %vm532, %v468
      %540 = vst.msk [vmem:[%s231 + $0x38] sm:$0xff] %vm532, %v470
      %541 = vst.msk [vmem:[%s231 + $0x40] sm:$0xff] %vm532, %v473
      %542 = vst.msk [vmem:[%s231 + $0x48] sm:$0xff] %vm532, %v475
      %543 = vst.msk [vmem:[%s231 + $0x50] sm:$0xff] %vm532, %v478
      %544 = vst.msk [vmem:[%s231 + $0x58] sm:$0xff] %vm532, %v480
      %545 = vst.msk [vmem:[%s231 + $0x60] sm:$0xff] %vm532, %v483
      %546 = vst.msk [vmem:[%s231 + $0x68] sm:$0xff] %vm532, %v485
      %547 = vst.msk [vmem:[%s231 + $0x70] sm:$0xff] %vm532, %v488
      %548 = vst.msk [vmem:[%s231 + $0x78] sm:$0xff] %vm532, %v490
      %549 = vst.msk [vmem:[%s231 + $0x80] sm:$0xff] %vm532, %v493
      %550 = vst.msk [vmem:[%s231 + $0x88] sm:$0xff] %vm532, %v495
      %551 = vst.msk [vmem:[%s231 + $0x90] sm:$0xff] %vm532, %v498
      %552 = vst.msk [vmem:[%s231 + $0x98] sm:$0xff] %vm532, %v500
      %553 = vst.msk [vmem:[%s231 + $0xa0] sm:$0xff] %vm532, %v503
      %554 = vst.msk [vmem:[%s231 + $0xa8] sm:$0xff] %vm532, %v505
      %555 = vst.msk [vmem:[%s231 + $0xb0] sm:$0xff] %vm532, %v508
      %556 = vst.msk [vmem:[%s231 + $0xb8] sm:$0xff] %vm532, %v510
      %557 = vst.msk [vmem:[%s231 + $0xc0] sm:$0xff] %vm532, %v513
      %558 = vst.msk [vmem:[%s231 + $0xc8] sm:$0xff] %vm532, %v515
      %559 = vst.msk [vmem:[%s231 + $0xd0] sm:$0xff] %vm532, %v518
      %560 = vst.msk [vmem:[%s231 + $0xd8] sm:$0xff] %vm532, %v520
      %561 = vst.msk [vmem:[%s231 + $0xe0] sm:$0xff] %vm532, %v523
      %562 = vst.msk [vmem:[%s231 + $0xe8] sm:$0xff] %vm532, %v525
      %563 = vst.msk [vmem:[%s231 + $0xf0] sm:$0xff] %vm532, %v528
      %564 = vst.msk [vmem:[%s231 + $0xf8] sm:$0xff] %vm532, %v530
      %v565 = vsel %vm532, %v453, 0.0
      %v566 = vsel %vm532, %v455, 0.0
      %v567 = vadd.f32 %v565, %v566
      %v568 = vsel %vm532, %v458, 0.0
      %v569 = vadd.f32 %v567, %v568
      %v570 = vsel %vm532, %v460, 0.0
      %v571 = vadd.f32 %v569, %v570
      %v572 = vsel %vm532, %v463, 0.0
      %v573 = vadd.f32 %v571, %v572
      %v574 = vsel %vm532, %v465, 0.0
      %v575 = vadd.f32 %v573, %v574
      %v576 = vsel %vm532, %v468, 0.0
      %v577 = vadd.f32 %v575, %v576
      %v578 = vsel %vm532, %v470, 0.0
      %v579 = vadd.f32 %v577, %v578
      %v580 = vsel %vm532, %v473, 0.0
      %v581 = vadd.f32 %v579, %v580
      %v582 = vsel %vm532, %v475, 0.0
      %v583 = vadd.f32 %v581, %v582
      %v584 = vsel %vm532, %v478, 0.0
      %v585 = vadd.f32 %v583, %v584
      %v586 = vsel %vm532, %v480, 0.0
      %v587 = vadd.f32 %v585, %v586
      %v588 = vsel %vm532, %v483, 0.0
      %v589 = vadd.f32 %v587, %v588
      %v590 = vsel %vm532, %v485, 0.0
      %v591 = vadd.f32 %v589, %v590
      %v592 = vsel %vm532, %v488, 0.0
      %v593 = vadd.f32 %v591, %v592
      %v594 = vsel %vm532, %v490, 0.0
      %v595 = vadd.f32 %v593, %v594
      %v596 = vsel %vm532, %v493, 0.0
      %v597 = vadd.f32 %v595, %v596
      %v598 = vsel %vm532, %v495, 0.0
      %v599 = vadd.f32 %v597, %v598
      %v600 = vsel %vm532, %v498, 0.0
      %v601 = vadd.f32 %v599, %v600
      %v602 = vsel %vm532, %v500, 0.0
      %v603 = vadd.f32 %v601, %v602
      %v604 = vsel %vm532, %v503, 0.0
      %v605 = vadd.f32 %v603, %v604
      %v606 = vsel %vm532, %v505, 0.0
      %v607 = vadd.f32 %v605, %v606
      %v608 = vsel %vm532, %v508, 0.0
      %v609 = vadd.f32 %v607, %v608
      %v610 = vsel %vm532, %v510, 0.0
      %v611 = vadd.f32 %v609, %v610
      %v612 = vsel %vm532, %v513, 0.0
      %v613 = vadd.f32 %v611, %v612
      %v614 = vsel %vm532, %v515, 0.0
      %v615 = vadd.f32 %v613, %v614
      %v616 = vsel %vm532, %v518, 0.0
      %v617 = vadd.f32 %v615, %v616
      %v618 = vsel %vm532, %v520, 0.0
      %v619 = vadd.f32 %v617, %v618
      %v620 = vsel %vm532, %v523, 0.0
      %v621 = vadd.f32 %v619, %v620
      %v622 = vsel %vm532, %v525, 0.0
      %v623 = vadd.f32 %v621, %v622
      %v624 = vsel %vm532, %v528, 0.0
      %v625 = vadd.f32 %v623, %v624
      %v626 = vsel %vm532, %v530, 0.0
      %v627 = vadd.f32 %v625, %v626
      %v628 = vrot.slane %v627, 4
      %v629 = vadd.f32 %v627, %v628
      %v630 = vrot.slane %v629, 2
      %v631 = vadd.f32 %v629, %v630
      %v632 = vrot.slane %v631, 1
      %v633 = vadd.f32 %v631, %v632
      %vm634 = vcmask 122880
      %635 = vst.msk [vmem:[%s235] sm:$0x1] %vm634, %v633
      %v636 = vmul.f32 %v453, %v453
      %v637 = vmul.f32 %v455, %v455
      %v638 = vmul.f32 %v458, %v458
      %v639 = vmul.f32 %v460, %v460
      %v640 = vmul.f32 %v463, %v463
      %v641 = vmul.f32 %v465, %v465
      %v642 = vmul.f32 %v468, %v468
      %v643 = vmul.f32 %v470, %v470
      %v644 = vmul.f32 %v473, %v473
      %v645 = vmul.f32 %v475, %v475
      %v646 = vmul.f32 %v478, %v478
      %v647 = vmul.f32 %v480, %v480
      %v648 = vmul.f32 %v483, %v483
      %v649 = vmul.f32 %v485, %v485
      %v650 = vmul.f32 %v488, %v488
      %v651 = vmul.f32 %v490, %v490
      %v652 = vmul.f32 %v493, %v493
      %v653 = vmul.f32 %v495, %v495
      %v654 = vmul.f32 %v498, %v498
      %v655 = vmul.f32 %v500, %v500
      %v656 = vmul.f32 %v503, %v503
      %v657 = vmul.f32 %v505, %v505
      %v658 = vmul.f32 %v508, %v508
      %v659 = vmul.f32 %v510, %v510
      %v660 = vmul.f32 %v513, %v513
      %v661 = vmul.f32 %v515, %v515
      %v662 = vmul.f32 %v518, %v518
      %v663 = vmul.f32 %v520, %v520
      %v664 = vmul.f32 %v523, %v523
      %v665 = vmul.f32 %v525, %v525
      %v666 = vmul.f32 %v528, %v528
      %v667 = vmul.f32 %v530, %v530
      %v668 = vsel %vm532, %v636, 0.0
      %v669 = vsel %vm532, %v637, 0.0
      %v670 = vadd.f32 %v668, %v669
      %v671 = vsel %vm532, %v638, 0.0
      %v672 = vadd.f32 %v670, %v671
      %v673 = vsel %vm532, %v639, 0.0
      %v674 = vadd.f32 %v672, %v673
      %v675 = vsel %vm532, %v640, 0.0
      %v676 = vadd.f32 %v674, %v675
      %v677 = vsel %vm532, %v641, 0.0
      %v678 = vadd.f32 %v676, %v677
      %v679 = vsel %vm532, %v642, 0.0
      %v680 = vadd.f32 %v678, %v679
      %v681 = vsel %vm532, %v643, 0.0
      %v682 = vadd.f32 %v680, %v681
      %v683 = vsel %vm532, %v644, 0.0
      %v684 = vadd.f32 %v682, %v683
      %v685 = vsel %vm532, %v645, 0.0
      %v686 = vadd.f32 %v684, %v685
      %v687 = vsel %vm532, %v646, 0.0
      %v688 = vadd.f32 %v686, %v687
      %v689 = vsel %vm532, %v647, 0.0
      %v690 = vadd.f32 %v688, %v689
      %v691 = vsel %vm532, %v648, 0.0
      %v692 = vadd.f32 %v690, %v691
      %v693 = vsel %vm532, %v649, 0.0
      %v694 = vadd.f32 %v692, %v693
      %v695 = vsel %vm532, %v650, 0.0
      %v696 = vadd.f32 %v694, %v695
      %v697 = vsel %vm532, %v651, 0.0
      %v698 = vadd.f32 %v696, %v697
      %v699 = vsel %vm532, %v652, 0.0
      %v700 = vadd.f32 %v698, %v699
      %v701 = vsel %vm532, %v653, 0.0
      %v702 = vadd.f32 %v700, %v701
      %v703 = vsel %vm532, %v654, 0.0
      %v704 = vadd.f32 %v702, %v703
      %v705 = vsel %vm532, %v655, 0.0
      %v706 = vadd.f32 %v704, %v705
      %v707 = vsel %vm532, %v656, 0.0
      %v708 = vadd.f32 %v706, %v707
      %v709 = vsel %vm532, %v657, 0.0
      %v710 = vadd.f32 %v708, %v709
      %v711 = vsel %vm532, %v658, 0.0
      %v712 = vadd.f32 %v710, %v711
      %v713 = vsel %vm532, %v659, 0.0
      %v714 = vadd.f32 %v712, %v713
      %v715 = vsel %vm532, %v660, 0.0
      %v716 = vadd.f32 %v714, %v715
      %v717 = vsel %vm532, %v661, 0.0
      %v718 = vadd.f32 %v716, %v717
      %v719 = vsel %vm532, %v662, 0.0
      %v720 = vadd.f32 %v718, %v719
      %v721 = vsel %vm532, %v663, 0.0
      %v722 = vadd.f32 %v720, %v721
      %v723 = vsel %vm532, %v664, 0.0
      %v724 = vadd.f32 %v722, %v723
      %v725 = vsel %vm532, %v665, 0.0
      %v726 = vadd.f32 %v724, %v725
      %v727 = vsel %vm532, %v666, 0.0
      %v728 = vadd.f32 %v726, %v727
      %v729 = vsel %vm532, %v667, 0.0
      %v730 = vadd.f32 %v728, %v729
      %v731 = vrot.slane %v730, 4
      %v732 = vadd.f32 %v730, %v731
      %v733 = vrot.slane %v732, 2
      %v734 = vadd.f32 %v732, %v733
      %v735 = vrot.slane %v734, 1
      %v736 = vadd.f32 %v734, %v735
      %737 = vst.msk [vmem:[%s235 + $0x1] sm:$0x1] %vm634, %v736
      %p738 = scmp.lt.s32.totalorder %s17, 1
      %s739 = scalar_select %p738, %s17, 1
      %s740 = smul.addr %s739, 32
      %s741 = smul.addr %s740, 8
      %s742 = scalar_lea.vmem %s4, %s741
      %p743 = scmp.lt.s32.totalorder %s17, 1
      %s744 = scalar_select %p743, %s17, 1
      %s745 = smul.addr %s744, 2
      %s746 = scalar_lea.vmem %s5, %s745
      // Predicated region
      $region37: #{resblock_forward_nhwc.6} parent=35 // pred_check
        %p747 = pneg %p124
      $region38: #{resblock_forward_nhwc.6} parent=35 // pred_check_branch
        %749 = sbr.rel (%p747) target = $region40
      $region39: #{resblock_forward_nhwc.6} parent=35 // pred_region
        _
      $region40: #{resblock_forward_nhwc.6} parent=35 // pred_fallthru
        _
      // Predicated region
      $region41: #{resblock_forward_nhwc.6} parent=35 // pred_check
        %p750 = pneg %p150
      $region42: #{resblock_forward_nhwc.6} parent=35 // pred_check_branch
        %752 = sbr.rel (%p750) target = $region44
      $region43: #{resblock_forward_nhwc.6} parent=35 // pred_region
        _
      $region44: #{resblock_forward_nhwc.6} parent=35 // pred_fallthru
        _
    $region36: #{resblock_forward_nhwc.6} parent=5 // pred_fallthru
      _
    %p753 = scmp.le.s32.totalorder 2, %s12
    // Predicated region
    $region45: #{resblock_forward_nhwc.6} parent=5 // pred_check
      %p754 = pneg %p753
    $region46: #{resblock_forward_nhwc.6} parent=5 // pred_check_branch
      %756 = sbr.rel (%p754) target = $region48
    $region47: #{resblock_forward_nhwc.6} parent=5 // pred_region
      %s757 = ssub.s32 %s12, 2
      // Predicated region
      $region49: #{resblock_forward_nhwc.6} parent=47 // pred_check
        %p758 = pneg %p130
      $region50: #{resblock_forward_nhwc.6} parent=47 // pred_check_branch
        %760 = sbr.rel (%p758) target = $region52
      $region51: #{resblock_forward_nhwc.6} parent=47 // pred_region
        %p761 = scmp.lt.s32.totalorder %s18, 1
        %s762 = scalar_select %p761, %s18, 1
        %s763 = smul.addr %s762, 32
        %s764 = smul.addr %s763, 8
        %s765 = scalar_lea.vmem %s4, %s764
      $region52: #{resblock_forward_nhwc.6} parent=47 // pred_fallthru
        _
      // Predicated region
      $region53: #{resblock_forward_nhwc.6} parent=47 // pred_check
        %p766 = pneg %p156
      $region54: #{resblock_forward_nhwc.6} parent=47 // pred_check_branch
        %768 = sbr.rel (%p766) target = $region56
      $region55: #{resblock_forward_nhwc.6} parent=47 // pred_region
        %p769 = scmp.lt.s32.totalorder %s18, 1
        %s770 = scalar_select %p769, %s18, 1
        %s771 = smul.addr %s770, 2
        %s772 = scalar_lea.vmem %s5, %s771
      $region56: #{resblock_forward_nhwc.6} parent=47 // pred_fallthru
        _
    $region48: #{resblock_forward_nhwc.6} parent=5 // pred_fallthru
      _
  $region6: #{resblock_forward_nhwc.6} parent=0 // loop_footer
    %s16 = sadd.s32 1, %s12
  $region7: #{resblock_forward_nhwc.6} parent=0 // loop_footer_branch
    %11 = sbr.rel target = $region3
  $region8: #{resblock_forward_nhwc.6} parent=0 // loop_exit
    _

// kernel: resblock_forward_nhwc.7
$region0: #{resblock_forward_nhwc.7}
  #allocation0 [shape = 'u32[]', space=smem, size = 0x4, offset = 0x4, fixed_abs, tag = 'smem constant byte address 0x4 - core index']
  #allocation1 [shape = 'u32[72,128]{1,0:T(1,128)}', space=vmem, size = 0x9000, scoped, tag = 'internal scratch']
  %s0 = inlined_call_operand.vmem [shape: f32[2,16,256], index: 0, kind: input, shape index: {}]
  %s1 = inlined_call_operand.vmem [shape: f32[2,16,256], index: 1, kind: input, shape index: {}]
  %s2 = inlined_call_operand.vmem [shape: f32[1,256], index: 2, kind: input, shape index: {}]
  %s3 = inlined_call_operand.vmem [shape: f32[1,256], index: 3, kind: input, shape index: {}]
  %s4 = inlined_call_operand.vmem [shape: f32[2,16,256], index: 4, kind: output, shape index: {}]
  %s5 = sld [smem:[#allocation0]]
  $region49: #{resblock_forward_nhwc.7} parent=0
    _
  %s7 = ssub.s32 1, %s5
  %s8 = scalar_select 0, %s7, %s5
  loop: start=0, step=1, limit=4
  $region2: #{resblock_forward_nhwc.7} parent=0 // loop_pre_header
    _
  $region3: #{resblock_forward_nhwc.7} parent=0 // loop_header
    %s10 = sphi 0, %s14
    %p11 = scmp.ge.s32.totalorder %s10, 4
    %s20 = sphi 0, %s22
    %s23 = sphi 0, %s20
    %s24 = sphi 0, %s23
    %s40 = sphi 0, %s24
    %s46 = sphi 0, %s48
    %s49 = sphi 0, %s46
    %s50 = sphi 0, %s49
    %s66 = sphi 0, %s50
    %s70 = sphi 0, %s70
    %s72 = sphi 0, %s70
    %s73 = sphi 0, %s72
    %s87 = sphi 0, %s73
    %s91 = sphi 0, %s91
    %s93 = sphi 0, %s91
    %s94 = sphi 0, %s93
    %s108 = sphi 0, %s94
    %s114 = sphi 0, %s116
    %s117 = sphi 0, %s114
    %s118 = sphi 0, %s117
    %s134 = sphi 0, %s118
  $region4: #{resblock_forward_nhwc.7} parent=0 // loop_header_branch
    %13 = sbr.rel (%p11) target = $region8
  $region5: #{resblock_forward_nhwc.7} parent=0 // loop_body
    %s15 = ssub.s32 %s10, 1
    %s16 = ssub.s32 %s10, 2
    %s17 = sadd.s32 %s10, 1
    %s18 = ssub.s32 %s10, %s17
    %p19 = scmp.eq.s32.totalorder %s18, 0
    %s21 = sadd.s32 %s20, 1
    %s22 = scalar_select %p19, %s20, %s21
    %p25 = pneg %p19
    %p26 = scmp.eq.s32.totalorder %s10, 1
    %p27 = por %p25, %p26
    %p28 = scmp.ne.s32.totalorder %s20, %s23
    %p29 = scmp.eq.s32.totalorder %s10, 0
    %p30 = por %p28, %p29
    %p31 = scmp.ne.s32.totalorder %s20, %s23
    %p32 = scmp.eq.s32.totalorder %s15, 1
    %p33 = por %p31, %p32
    %p34 = scmp.ne.s32.totalorder %s23, %s24
    %p35 = scmp.eq.s32.totalorder %s15, 0
    %p36 = por %p34, %p35
    %p37 = scmp.ne.s32.totalorder %s23, %s24
    %p38 = scmp.eq.s32.totalorder %s16, 1
    %p39 = por %p37, %p38
    %p41 = scmp.ne.s32.totalorder %s24, %s40
    %p42 = scmp.eq.s32.totalorder %s16, 0
    %p43 = por %p41, %p42
    %s44 = ssub.s32 %s10, %s17
    %p45 = scmp.eq.s32.totalorder %s44, 0
    %s47 = sadd.s32 %s46, 1
    %s48 = scalar_select %p45, %s46, %s47
    %p51 = pneg %p45
    %p52 = scmp.eq.s32.totalorder %s10, 1
    %p53 = por %p51, %p52
    %p54 = scmp.ne.s32.totalorder %s46, %s49
    %p55 = scmp.eq.s32.totalorder %s10, 0
    %p56 = por %p54, %p55
    %p57 = scmp.ne.s32.totalorder %s46, %s49
    %p58 = scmp.eq.s32.totalorder %s15, 1
    %p59 = por %p57, %p58
    %p60 = scmp.ne.s32.totalorder %s49, %s50
    %p61 = scmp.eq.s32.totalorder %s15, 0
    %p62 = por %p60, %p61
    %p63 = scmp.ne.s32.totalorder %s49, %s50
    %p64 = scmp.eq.s32.totalorder %s16, 1
    %p65 = por %p63, %p64
    %p67 = scmp.ne.s32.totalorder %s50, %s66
    %p68 = scmp.eq.s32.totalorder %s16, 0
    %p69 = por %p67, %p68
    %s71 = sadd.s32 %s70, 1
    %p74 = scmp.eq.s32.totalorder %s10, 1
    %p75 = scmp.ne.s32.totalorder %s70, %s72
    %p76 = scmp.eq.s32.totalorder %s10, 0
    %p77 = por %p75, %p76
    %p78 = scmp.ne.s32.totalorder %s70, %s72
    %p79 = scmp.eq.s32.totalorder %s15, 1
    %p80 = por %p78, %p79
    %p81 = scmp.ne.s32.totalorder %s72, %s73
    %p82 = scmp.eq.s32.totalorder %s15, 0
    %p83 = por %p81, %p82
    %p84 = scmp.ne.s32.totalorder %s72, %s73
    %p85 = scmp.eq.s32.totalorder %s16, 1
    %p86 = por %p84, %p85
    %p88 = scmp.ne.s32.totalorder %s73, %s87
    %p89 = scmp.eq.s32.totalorder %s16, 0
    %p90 = por %p88, %p89
    %s92 = sadd.s32 %s91, 1
    %p95 = scmp.eq.s32.totalorder %s10, 1
    %p96 = scmp.ne.s32.totalorder %s91, %s93
    %p97 = scmp.eq.s32.totalorder %s10, 0
    %p98 = por %p96, %p97
    %p99 = scmp.ne.s32.totalorder %s91, %s93
    %p100 = scmp.eq.s32.totalorder %s15, 1
    %p101 = por %p99, %p100
    %p102 = scmp.ne.s32.totalorder %s93, %s94
    %p103 = scmp.eq.s32.totalorder %s15, 0
    %p104 = por %p102, %p103
    %p105 = scmp.ne.s32.totalorder %s93, %s94
    %p106 = scmp.eq.s32.totalorder %s16, 1
    %p107 = por %p105, %p106
    %p109 = scmp.ne.s32.totalorder %s94, %s108
    %p110 = scmp.eq.s32.totalorder %s16, 0
    %p111 = por %p109, %p110
    %s112 = ssub.s32 %s10, %s17
    %p113 = scmp.eq.s32.totalorder %s112, 0
    %s115 = sadd.s32 %s114, 1
    %s116 = scalar_select %p113, %s114, %s115
    %p119 = pneg %p113
    %p120 = scmp.eq.s32.totalorder %s10, 1
    %p121 = por %p119, %p120
    %p122 = scmp.ne.s32.totalorder %s114, %s117
    %p123 = scmp.eq.s32.totalorder %s10, 0
    %p124 = por %p122, %p123
    %p125 = scmp.ne.s32.totalorder %s114, %s117
    %p126 = scmp.eq.s32.totalorder %s15, 1
    %p127 = por %p125, %p126
    %p128 = scmp.ne.s32.totalorder %s117, %s118
    %p129 = scmp.eq.s32.totalorder %s15, 0
    %p130 = por %p128, %p129
    %p131 = scmp.ne.s32.totalorder %s117, %s118
    %p132 = scmp.eq.s32.totalorder %s16, 1
    %p133 = por %p131, %p132
    %p135 = scmp.ne.s32.totalorder %s118, %s134
    %p136 = scmp.eq.s32.totalorder %s16, 0
    %p137 = por %p135, %p136
    %p138 = scmp.le.s32.totalorder 1, %s10
    %p139 = scmp.lt.s32.totalorder %s10, 3
    %p140 = pnand %p138, %p139
    %p141 = pneg %p140
    // Predicated region
    $region9: #{resblock_forward_nhwc.7} parent=5 // pred_check
      _
    $region10: #{resblock_forward_nhwc.7} parent=5 // pred_check_branch
      %143 = sbr.rel (%p140) target = $region12
    $region11: #{resblock_forward_nhwc.7} parent=5 // pred_region
      %s144 = ssub.s32 %s10, 1
      // Predicated region
      $region13: #{resblock_forward_nhwc.7} parent=11 // pred_check
        %p145 = pneg %p83
      $region14: #{resblock_forward_nhwc.7} parent=11 // pred_check_branch
        %147 = sbr.rel (%p145) target = $region16
      $region15: #{resblock_forward_nhwc.7} parent=11 // pred_region
        _
      $region16: #{resblock_forward_nhwc.7} parent=11 // pred_fallthru
        _
      // Predicated region
      $region17: #{resblock_forward_nhwc.7} parent=11 // pred_check
        %p148 = pneg %p104
      $region18: #{resblock_forward_nhwc.7} parent=11 // pred_check_branch
        %150 = sbr.rel (%p148) target = $region20
      $region19: #{resblock_forward_nhwc.7} parent=11 // pred_region
        _
      $region20: #{resblock_forward_nhwc.7} parent=11 // pred_fallthru
        _
    $region12: #{resblock_forward_nhwc.7} parent=5 // pred_fallthru
      _
    %p151 = scmp.lt.s32.totalorder %s10, 2
    // Predicated region
    $region21: #{resblock_forward_nhwc.7} parent=5 // pred_check
      %p152 = pneg %p151
    $region22: #{resblock_forward_nhwc.7} parent=5 // pred_check_branch
      %154 = sbr.rel (%p152) target = $region24
    $region23: #{resblock_forward_nhwc.7} parent=5 // pred_region
      // Predicated region
      $region25: #{resblock_forward_nhwc.7} parent=23 // pred_check
        %p155 = pneg %p30
      $region26: #{resblock_forward_nhwc.7} parent=23 // pred_check_branch
        %157 = sbr.rel (%p155) target = $region28
      $region27: #{resblock_forward_nhwc.7} parent=23 // pred_region
        %p158 = scmp.lt.s32.totalorder %s10, 1
        %s159 = scalar_select %p158, %s10, 1
        %s160 = smul.addr %s159, 4
        %s161 = smul.addr %s160, 8
        %s162 = scalar_lea.vmem %s0, %s161
      $region28: #{resblock_forward_nhwc.7} parent=23 // pred_fallthru
        _
      // Predicated region
      $region29: #{resblock_forward_nhwc.7} parent=23 // pred_check
        %p163 = pneg %p56
      $region30: #{resblock_forward_nhwc.7} parent=23 // pred_check_branch
        %165 = sbr.rel (%p163) target = $region32
      $region31: #{resblock_forward_nhwc.7} parent=23 // pred_region
        %p166 = scmp.lt.s32.totalorder %s10, 1
        %s167 = scalar_select %p166, %s10, 1
        %s168 = smul.addr %s167, 4
        %s169 = smul.addr %s168, 8
        %s170 = scalar_lea.vmem %s1, %s169
      $region32: #{resblock_forward_nhwc.7} parent=23 // pred_fallthru
        _
    $region24: #{resblock_forward_nhwc.7} parent=5 // pred_fallthru
      _
    %p171 = scmp.le.s32.totalorder 1, %s10
    %p172 = scmp.lt.s32.totalorder %s10, 3
    %p173 = pnand %p171, %p172
    %p174 = pneg %p173
    // Predicated region
    $region33: #{resblock_forward_nhwc.7} parent=5 // pred_check
      _
    $region34: #{resblock_forward_nhwc.7} parent=5 // pred_check_branch
      %176 = sbr.rel (%p173) target = $region36
    $region35: #{resblock_forward_nhwc.7} parent=5 // pred_region
      %s177 = ssub.s32 %s10, 1
      %p178 = scmp.lt.s32.totalorder %s15, 1
      %s179 = scalar_select %p178, %s15, 1
      %s180 = smul.addr %s179, 4
      %s181 = smul.addr %s180, 8
      %s182 = scalar_lea.vmem %s0, %s181
      %p183 = pneg %p36
      %p184 = pneg %p33
      %p185 = scmp.lt.s32.totalorder %s15, 1
      %s186 = scalar_select %p185, %s15, 1
      %s187 = smul.addr %s186, 4
      %s188 = smul.addr %s187, 8
      %s189 = scalar_lea.vmem %s1, %s188
      %p190 = pneg %p62
      %p191 = pneg %p59
      %p192 = pneg %p83
      %p193 = pneg %p80
      %p194 = pneg %p104
      %p195 = pneg %p101
      %p196 = pneg %p130
      %p197 = pneg %p127
      %p198 = scmp.lt.s32.totalorder %s15, 1
      %s199 = scalar_select %p198, %s15, 1
      %s200 = smul.addr %s199, 4
      %s201 = smul.addr %s200, 8
      %s202 = scalar_lea.vmem %s4, %s201
      %p203 = scmp.lt.s32.totalorder %s15, 1
      %s204 = scalar_select %p203, %s15, 1
      %s205 = smul.addr %s204, 4
      %s206 = smul.addr %s205, 8
      %s207 = scalar_lea.vmem %s0, %s206
      %p208 = scmp.lt.s32.totalorder %s15, 1
      %s209 = scalar_select %p208, %s15, 1
      %s210 = smul.addr %s209, 4
      %s211 = smul.addr %s210, 8
      %s212 = scalar_lea.vmem %s1, %s211
      %p213 = scmp.lt.s32.totalorder %s15, 1
      %s214 = scalar_select %p213, %s15, 1
      %s215 = smul.addr %s214, 4
      %s216 = smul.addr %s215, 8
      %s217 = scalar_lea.vmem %s4, %s216
      %v218 = vld [vmem:[%s207] sm:$0xff]
      %v219 = vld [vmem:[%s207 + $0x8] sm:$0xff]
      %v220 = vld [vmem:[%s207 + $0x10] sm:$0xff]
      %v221 = vld [vmem:[%s207 + $0x18] sm:$0xff]
      %v222 = vld [vmem:[%s2] sm:$0x3]
      %v224 = vperm.slane %v222, 0
      %v225 = vperm.slane %v222, 1
      %v228 = vmul.f32 %v218, %v224
      %v229 = vmul.f32 %v219, %v225
      %v230 = vmul.f32 %v220, %v224
      %v231 = vmul.f32 %v221, %v225
      %v232 = vld [vmem:[%s3] sm:$0x3]
      %v234 = vperm.slane %v232, 0
      %v235 = vperm.slane %v232, 1
      %v238 = vadd.f32 %v228, %v234
      %v239 = vadd.f32 %v229, %v235
      %v240 = vadd.f32 %v230, %v234
      %v241 = vadd.f32 %v231, %v235
      %v242 = vmax.f32 %v238, 0.0
      %v243 = vmax.f32 %v239, 0.0
      %v244 = vmax.f32 %v240, 0.0
      %v245 = vmax.f32 %v241, 0.0
      %v246 = vld [vmem:[%s212] sm:$0xff]
      %v247 = vld [vmem:[%s212 + $0x8] sm:$0xff]
      %v248 = vld [vmem:[%s212 + $0x10] sm:$0xff]
      %v249 = vld [vmem:[%s212 + $0x18] sm:$0xff]
      %v250 = vadd.f32 %v242, %v246
      %v251 = vadd.f32 %v243, %v247
      %v252 = vadd.f32 %v244, %v248
      %v253 = vadd.f32 %v245, %v249
      %v254 = vmax.f32 %v250, 0.0
      %v255 = vmax.f32 %v251, 0.0
      %v256 = vmax.f32 %v252, 0.0
      %v257 = vmax.f32 %v253, 0.0
      %258 = vst [vmem:[%s217] sm:$0xff] %v254
      %259 = vst [vmem:[%s217 + $0x8] sm:$0xff] %v255
      %260 = vst [vmem:[%s217 + $0x10] sm:$0xff] %v256
      %261 = vst [vmem:[%s217 + $0x18] sm:$0xff] %v257
      %p262 = scmp.lt.s32.totalorder %s15, 1
      %s263 = scalar_select %p262, %s15, 1
      %s264 = smul.addr %s263, 4
      %s265 = smul.addr %s264, 8
      %s266 = scalar_lea.vmem %s4, %s265
      // Predicated region
      $region37: #{resblock_forward_nhwc.7} parent=35 // pred_check
        %p267 = pneg %p127
      $region38: #{resblock_forward_nhwc.7} parent=35 // pred_check_branch
        %269 = sbr.rel (%p267) target = $region40
      $region39: #{resblock_forward_nhwc.7} parent=35 // pred_region
        _
      $region40: #{resblock_forward_nhwc.7} parent=35 // pred_fallthru
        _
    $region36: #{resblock_forward_nhwc.7} parent=5 // pred_fallthru
      _
    %p270 = scmp.le.s32.totalorder 2, %s10
    // Predicated region
    $region41: #{resblock_forward_nhwc.7} parent=5 // pred_check
      %p271 = pneg %p270
    $region42: #{resblock_forward_nhwc.7} parent=5 // pred_check_branch
      %273 = sbr.rel (%p271) target = $region44
    $region43: #{resblock_forward_nhwc.7} parent=5 // pred_region
      %s274 = ssub.s32 %s10, 2
      // Predicated region
      $region45: #{resblock_forward_nhwc.7} parent=43 // pred_check
        %p275 = pneg %p133
      $region46: #{resblock_forward_nhwc.7} parent=43 // pred_check_branch
        %277 = sbr.rel (%p275) target = $region48
      $region47: #{resblock_forward_nhwc.7} parent=43 // pred_region
        %p278 = scmp.lt.s32.totalorder %s16, 1
        %s279 = scalar_select %p278, %s16, 1
        %s280 = smul.addr %s279, 4
        %s281 = smul.addr %s280, 8
        %s282 = scalar_lea.vmem %s4, %s281
      $region48: #{resblock_forward_nhwc.7} parent=43 // pred_fallthru
        _
    $region44: #{resblock_forward_nhwc.7} parent=5 // pred_fallthru
      _
  $region6: #{resblock_forward_nhwc.7} parent=0 // loop_footer
    %s14 = sadd.s32 1, %s10
  $region7: #{resblock_forward_nhwc.7} parent=0 // loop_footer_branch
    %9 = sbr.rel target = $region3
  $region8: #{resblock_forward_nhwc.7} parent=0 // loop_exit
    _

// kernel: resblock_forward_nhwc.5
$region0: #{resblock_forward_nhwc.5}
  #allocation0 [shape = 'u32[]', space=smem, size = 0x4, offset = 0x4, fixed_abs, tag = 'smem constant byte address 0x4 - core index']
  #allocation1 [shape = 'u32[72,128]{1,0:T(1,128)}', space=vmem, size = 0x9000, scoped, tag = 'internal scratch']
  #allocation2 [shape = 'f32[18,18,4]{2,1,0:T(8,128)}', space=vmem, size = 0x36000, scoped, tag = 'scratch operand']
  %s0 = inlined_call_operand.vmem [shape: f32[2,256,4], index: 0, kind: input, shape index: {}]
  %s1 = inlined_call_operand.vmem [shape: f32[1,4], index: 1, kind: input, shape index: {}]
  %s2 = inlined_call_operand.vmem [shape: f32[1,4], index: 2, kind: input, shape index: {}]
  %s3 = inlined_call_operand.vmem [shape: bf16[36,4], index: 3, kind: input, shape index: {}]
  %s4 = inlined_call_operand.vmem [shape: f32[2,256,4], index: 4, kind: output, shape index: {0}]
  %s5 = inlined_call_operand.vmem [shape: f32[2,2,4], index: 5, kind: output, shape index: {1}]
  %6 = xla_tuple %s4, %s5
  %s7 = sld [smem:[#allocation0]]
  $region57: #{resblock_forward_nhwc.5} parent=0
    _
  %s9 = ssub.s32 1, %s7
  %s10 = scalar_select 0, %s9, %s7
  loop: start=0, step=1, limit=4
  $region2: #{resblock_forward_nhwc.5} parent=0 // loop_pre_header
    _
  $region3: #{resblock_forward_nhwc.5} parent=0 // loop_header
    %s12 = sphi 0, %s16
    %p13 = scmp.ge.s32.totalorder %s12, 4
    %s22 = sphi 0, %s24
    %s25 = sphi 0, %s22
    %s26 = sphi 0, %s25
    %s42 = sphi 0, %s26
    %s46 = sphi 0, %s46
    %s48 = sphi 0, %s46
    %s49 = sphi 0, %s48
    %s63 = sphi 0, %s49
    %s67 = sphi 0, %s67
    %s69 = sphi 0, %s67
    %s70 = sphi 0, %s69
    %s84 = sphi 0, %s70
    %s88 = sphi 0, %s88
    %s90 = sphi 0, %s88
    %s91 = sphi 0, %s90
    %s105 = sphi 0, %s91
    %s111 = sphi 0, %s113
    %s114 = sphi 0, %s111
    %s115 = sphi 0, %s114
    %s131 = sphi 0, %s115
    %s137 = sphi 0, %s139
    %s140 = sphi 0, %s137
    %s141 = sphi 0, %s140
    %s157 = sphi 0, %s141
  $region4: #{resblock_forward_nhwc.5} parent=0 // loop_header_branch
    %15 = sbr.rel (%p13) target = $region8
  $region5: #{resblock_forward_nhwc.5} parent=0 // loop_body
    %s17 = ssub.s32 %s12, 1
    %s18 = ssub.s32 %s12, 2
    %s19 = sadd.s32 %s12, 1
    %s20 = ssub.s32 %s12, %s19
    %p21 = scmp.eq.s32.totalorder %s20, 0
    %s23 = sadd.s32 %s22, 1
    %s24 = scalar_select %p21, %s22, %s23
    %p27 = pneg %p21
    %p28 = scmp.eq.s32.totalorder %s12, 1
    %p29 = por %p27, %p28
    %p30 = scmp.ne.s32.totalorder %s22, %s25
    %p31 = scmp.eq.s32.totalorder %s12, 0
    %p32 = por %p30, %p31
    %p33 = scmp.ne.s32.totalorder %s22, %s25
    %p34 = scmp.eq.s32.totalorder %s17, 1
    %p35 = por %p33, %p34
    %p36 = scmp.ne.s32.totalorder %s25, %s26
    %p37 = scmp.eq.s32.totalorder %s17, 0
    %p38 = por %p36, %p37
    %p39 = scmp.ne.s32.totalorder %s25, %s26
    %p40 = scmp.eq.s32.totalorder %s18, 1
    %p41 = por %p39, %p40
    %p43 = scmp.ne.s32.totalorder %s26, %s42
    %p44 = scmp.eq.s32.totalorder %s18, 0
    %p45 = por %p43, %p44
    %s47 = sadd.s32 %s46, 1
    %p50 = scmp.eq.s32.totalorder %s12, 1
    %p51 = scmp.ne.s32.totalorder %s46, %s48
    %p52 = scmp.eq.s32.totalorder %s12, 0
    %p53 = por %p51, %p52
    %p54 = scmp.ne.s32.totalorder %s46, %s48
    %p55 = scmp.eq.s32.totalorder %s17, 1
    %p56 = por %p54, %p55
    %p57 = scmp.ne.s32.totalorder %s48, %s49
    %p58 = scmp.eq.s32.totalorder %s17, 0
    %p59 = por %p57, %p58
    %p60 = scmp.ne.s32.totalorder %s48, %s49
    %p61 = scmp.eq.s32.totalorder %s18, 1
    %p62 = por %p60, %p61
    %p64 = scmp.ne.s32.totalorder %s49, %s63
    %p65 = scmp.eq.s32.totalorder %s18, 0
    %p66 = por %p64, %p65
    %s68 = sadd.s32 %s67, 1
    %p71 = scmp.eq.s32.totalorder %s12, 1
    %p72 = scmp.ne.s32.totalorder %s67, %s69
    %p73 = scmp.eq.s32.totalorder %s12, 0
    %p74 = por %p72, %p73
    %p75 = scmp.ne.s32.totalorder %s67, %s69
    %p76 = scmp.eq.s32.totalorder %s17, 1
    %p77 = por %p75, %p76
    %p78 = scmp.ne.s32.totalorder %s69, %s70
    %p79 = scmp.eq.s32.totalorder %s17, 0
    %p80 = por %p78, %p79
    %p81 = scmp.ne.s32.totalorder %s69, %s70
    %p82 = scmp.eq.s32.totalorder %s18, 1
    %p83 = por %p81, %p82
    %p85 = scmp.ne.s32.totalorder %s70, %s84
    %p86 = scmp.eq.s32.totalorder %s18, 0
    %p87 = por %p85, %p86
    %s89 = sadd.s32 %s88, 1
    %p92 = scmp.eq.s32.totalorder %s12, 1
    %p93 = scmp.ne.s32.totalorder %s88, %s90
    %p94 = scmp.eq.s32.totalorder %s12, 0
    %p95 = por %p93, %p94
    %p96 = scmp.ne.s32.totalorder %s88, %s90
    %p97 = scmp.eq.s32.totalorder %s17, 1
    %p98 = por %p96, %p97
    %p99 = scmp.ne.s32.totalorder %s90, %s91
    %p100 = scmp.eq.s32.totalorder %s17, 0
    %p101 = por %p99, %p100
    %p102 = scmp.ne.s32.totalorder %s90, %s91
    %p103 = scmp.eq.s32.totalorder %s18, 1
    %p104 = por %p102, %p103
    %p106 = scmp.ne.s32.totalorder %s91, %s105
    %p107 = scmp.eq.s32.totalorder %s18, 0
    %p108 = por %p106, %p107
    %s109 = ssub.s32 %s12, %s19
    %p110 = scmp.eq.s32.totalorder %s109, 0
    %s112 = sadd.s32 %s111, 1
    %s113 = scalar_select %p110, %s111, %s112
    %p116 = pneg %p110
    %p117 = scmp.eq.s32.totalorder %s12, 1
    %p118 = por %p116, %p117
    %p119 = scmp.ne.s32.totalorder %s111, %s114
    %p120 = scmp.eq.s32.totalorder %s12, 0
    %p121 = por %p119, %p120
    %p122 = scmp.ne.s32.totalorder %s111, %s114
    %p123 = scmp.eq.s32.totalorder %s17, 1
    %p124 = por %p122, %p123
    %p125 = scmp.ne.s32.totalorder %s114, %s115
    %p126 = scmp.eq.s32.totalorder %s17, 0
    %p127 = por %p125, %p126
    %p128 = scmp.ne.s32.totalorder %s114, %s115
    %p129 = scmp.eq.s32.totalorder %s18, 1
    %p130 = por %p128, %p129
    %p132 = scmp.ne.s32.totalorder %s115, %s131
    %p133 = scmp.eq.s32.totalorder %s18, 0
    %p134 = por %p132, %p133
    %s135 = ssub.s32 %s12, %s19
    %p136 = scmp.eq.s32.totalorder %s135, 0
    %s138 = sadd.s32 %s137, 1
    %s139 = scalar_select %p136, %s137, %s138
    %p142 = pneg %p136
    %p143 = scmp.eq.s32.totalorder %s12, 1
    %p144 = por %p142, %p143
    %p145 = scmp.ne.s32.totalorder %s137, %s140
    %p146 = scmp.eq.s32.totalorder %s12, 0
    %p147 = por %p145, %p146
    %p148 = scmp.ne.s32.totalorder %s137, %s140
    %p149 = scmp.eq.s32.totalorder %s17, 1
    %p150 = por %p148, %p149
    %p151 = scmp.ne.s32.totalorder %s140, %s141
    %p152 = scmp.eq.s32.totalorder %s17, 0
    %p153 = por %p151, %p152
    %p154 = scmp.ne.s32.totalorder %s140, %s141
    %p155 = scmp.eq.s32.totalorder %s18, 1
    %p156 = por %p154, %p155
    %p158 = scmp.ne.s32.totalorder %s141, %s157
    %p159 = scmp.eq.s32.totalorder %s18, 0
    %p160 = por %p158, %p159
    %p161 = scmp.le.s32.totalorder 1, %s12
    %p162 = scmp.lt.s32.totalorder %s12, 3
    %p163 = pnand %p161, %p162
    %p164 = pneg %p163
    // Predicated region
    $region9: #{resblock_forward_nhwc.5} parent=5 // pred_check
      _
    $region10: #{resblock_forward_nhwc.5} parent=5 // pred_check_branch
      %166 = sbr.rel (%p163) target = $region12
    $region11: #{resblock_forward_nhwc.5} parent=5 // pred_region
      %s167 = ssub.s32 %s12, 1
      // Predicated region
      $region13: #{resblock_forward_nhwc.5} parent=11 // pred_check
        %p168 = pneg %p59
      $region14: #{resblock_forward_nhwc.5} parent=11 // pred_check_branch
        %170 = sbr.rel (%p168) target = $region16
      $region15: #{resblock_forward_nhwc.5} parent=11 // pred_region
        _
      $region16: #{resblock_forward_nhwc.5} parent=11 // pred_fallthru
        _
      // Predicated region
      $region17: #{resblock_forward_nhwc.5} parent=11 // pred_check
        %p171 = pneg %p80
      $region18: #{resblock_forward_nhwc.5} parent=11 // pred_check_branch
        %173 = sbr.rel (%p171) target = $region20
      $region19: #{resblock_forward_nhwc.5} parent=11 // pred_region
        _
      $region20: #{resblock_forward_nhwc.5} parent=11 // pred_fallthru
        _
      // Predicated region
      $region21: #{resblock_forward_nhwc.5} parent=11 // pred_check
        %p174 = pneg %p101
      $region22: #{resblock_forward_nhwc.5} parent=11 // pred_check_branch
        %176 = sbr.rel (%p174) target = $region24
      $region23: #{resblock_forward_nhwc.5} parent=11 // pred_region
        _
      $region24: #{resblock_forward_nhwc.5} parent=11 // pred_fallthru
        _
    $region12: #{resblock_forward_nhwc.5} parent=5 // pred_fallthru
      _
    %p177 = scmp.lt.s32.totalorder %s12, 2
    // Predicated region
    $region25: #{resblock_forward_nhwc.5} parent=5 // pred_check
      %p178 = pneg %p177
    $region26: #{resblock_forward_nhwc.5} parent=5 // pred_check_branch
      %180 = sbr.rel (%p178) target = $region28
    $region27: #{resblock_forward_nhwc.5} parent=5 // pred_region
      // Predicated region
      $region29: #{resblock_forward_nhwc.5} parent=27 // pred_check
        %p181 = pneg %p32
      $region30: #{resblock_forward_nhwc.5} parent=27 // pred_check_branch
        %183 = sbr.rel (%p181) target = $region32
      $region31: #{resblock_forward_nhwc.5} parent=27 // pred_region
        %p184 = scmp.lt.s32.totalorder %s12, 1
        %s185 = scalar_select %p184, %s12, 1
        %s186 = smul.addr %s185, 32
        %s187 = smul.addr %s186, 8
        %s188 = scalar_lea.vmem %s0, %s187
      $region32: #{resblock_forward_nhwc.5} parent=27 // pred_fallthru
        _
    $region28: #{resblock_forward_nhwc.5} parent=5 // pred_fallthru
      _
    %p189 = scmp.le.s32.totalorder 1, %s12
    %p190 = scmp.lt.s32.totalorder %s12, 3
    %p191 = pnand %p189, %p190
    %p192 = pneg %p191
    // Predicated region
    $region33: #{resblock_forward_nhwc.5} parent=5 // pred_check
      _
    $region34: #{resblock_forward_nhwc.5} parent=5 // pred_check_branch
      %194 = sbr.rel (%p191) target = $region36
    $region35: #{resblock_forward_nhwc.5} parent=5 // pred_region
      %s195 = ssub.s32 %s12, 1
      %p196 = scmp.lt.s32.totalorder %s17, 1
      %s197 = scalar_select %p196, %s17, 1
      %s198 = smul.addr %s197, 32
      %s199 = smul.addr %s198, 8
      %s200 = scalar_lea.vmem %s0, %s199
      %p201 = pneg %p38
      %p202 = pneg %p35
      %p203 = pneg %p59
      %p204 = pneg %p56
      %p205 = pneg %p80
      %p206 = pneg %p77
      %p207 = pneg %p101
      %p208 = pneg %p98
      %p209 = pneg %p127
      %p210 = pneg %p124
      %p211 = scmp.lt.s32.totalorder %s17, 1
      %s212 = scalar_select %p211, %s17, 1
      %s213 = smul.addr %s212, 32
      %s214 = smul.addr %s213, 8
      %s215 = scalar_lea.vmem %s4, %s214
      %p216 = pneg %p153
      %p217 = pneg %p150
      %p218 = scmp.lt.s32.totalorder %s17, 1
      %s219 = scalar_select %p218, %s17, 1
      %s220 = smul.addr %s219, 2
      %s221 = scalar_lea.vmem %s5, %s220
      %p222 = scmp.lt.s32.totalorder %s17, 1
      %s223 = scalar_select %p222, %s17, 1
      %s224 = smul.addr %s223, 32
      %s225 = smul.addr %s224, 8
      %s226 = scalar_lea.vmem %s0, %s225
      %p227 = scmp.lt.s32.totalorder %s17, 1
      %s228 = scalar_select %p227, %s17, 1
      %s229 = smul.addr %s228, 32
      %s230 = smul.addr %s229, 8
      %s231 = scalar_lea.vmem %s4, %s230
      %p232 = scmp.lt.s32.totalorder %s17, 1
      %s233 = scalar_select %p232, %s17, 1
      %s234 = smul.addr %s233, 2
      %s235 = scalar_lea.vmem %s5, %s234
      %v237 = vld [vmem:[%s226] sm:$0xff]
      %v238 = vld [vmem:[%s226 + $0x8] sm:$0xff]
      %v239 = vld [vmem:[%s226 + $0x10] sm:$0xff]
      %v240 = vld [vmem:[%s226 + $0x18] sm:$0xff]
      %v241 = vld [vmem:[%s226 + $0x20] sm:$0xff]
      %v242 = vld [vmem:[%s226 + $0x28] sm:$0xff]
      %v243 = vld [vmem:[%s226 + $0x30] sm:$0xff]
      %v244 = vld [vmem:[%s226 + $0x38] sm:$0xff]
      %v245 = vld [vmem:[%s226 + $0x40] sm:$0xff]
      %v246 = vld [vmem:[%s226 + $0x48] sm:$0xff]
      %v247 = vld [vmem:[%s226 + $0x50] sm:$0xff]
      %v248 = vld [vmem:[%s226 + $0x58] sm:$0xff]
      %v249 = vld [vmem:[%s226 + $0x60] sm:$0xff]
      %v250 = vld [vmem:[%s226 + $0x68] sm:$0xff]
      %v251 = vld [vmem:[%s226 + $0x70] sm:$0xff]
      %v252 = vld [vmem:[%s226 + $0x78] sm:$0xff]
      %v253 = vld [vmem:[%s226 + $0x80] sm:$0xff]
      %v254 = vld [vmem:[%s226 + $0x88] sm:$0xff]
      %v255 = vld [vmem:[%s226 + $0x90] sm:$0xff]
      %v256 = vld [vmem:[%s226 + $0x98] sm:$0xff]
      %v257 = vld [vmem:[%s226 + $0xa0] sm:$0xff]
      %v258 = vld [vmem:[%s226 + $0xa8] sm:$0xff]
      %v259 = vld [vmem:[%s226 + $0xb0] sm:$0xff]
      %v260 = vld [vmem:[%s226 + $0xb8] sm:$0xff]
      %v261 = vld [vmem:[%s226 + $0xc0] sm:$0xff]
      %v262 = vld [vmem:[%s226 + $0xc8] sm:$0xff]
      %v263 = vld [vmem:[%s226 + $0xd0] sm:$0xff]
      %v264 = vld [vmem:[%s226 + $0xd8] sm:$0xff]
      %v265 = vld [vmem:[%s226 + $0xe0] sm:$0xff]
      %v266 = vld [vmem:[%s226 + $0xe8] sm:$0xff]
      %v267 = vld [vmem:[%s226 + $0xf0] sm:$0xff]
      %v268 = vld [vmem:[%s226 + $0xf8] sm:$0xff]
      %v269 = vld [vmem:[%s1] sm:$0x1]
      %v271 = vperm.slane %v269, 0
      %v273 = vmul.f32 %v237, %v271
      %v274 = vmul.f32 %v238, %v271
      %v275 = vmul.f32 %v239, %v271
      %v276 = vmul.f32 %v240, %v271
      %v277 = vmul.f32 %v241, %v271
      %v278 = vmul.f32 %v242, %v271
      %v279 = vmul.f32 %v243, %v271
      %v280 = vmul.f32 %v244, %v271
      %v281 = vmul.f32 %v245, %v271
      %v282 = vmul.f32 %v246, %v271
      %v283 = vmul.f32 %v247, %v271
      %v284 = vmul.f32 %v248, %v271
      %v285 = vmul.f32 %v249, %v271
      %v286 = vmul.f32 %v250, %v271
      %v287 = vmul.f32 %v251, %v271
      %v288 = vmul.f32 %v252, %v271
      %v289 = vmul.f32 %v253, %v271
      %v290 = vmul.f32 %v254, %v271
      %v291 = vmul.f32 %v255, %v271
      %v292 = vmul.f32 %v256, %v271
      %v293 = vmul.f32 %v257, %v271
      %v294 = vmul.f32 %v258, %v271
      %v295 = vmul.f32 %v259, %v271
      %v296 = vmul.f32 %v260, %v271
      %v297 = vmul.f32 %v261, %v271
      %v298 = vmul.f32 %v262, %v271
      %v299 = vmul.f32 %v263, %v271
      %v300 = vmul.f32 %v264, %v271
      %v301 = vmul.f32 %v265, %v271
      %v302 = vmul.f32 %v266, %v271
      %v303 = vmul.f32 %v267, %v271
      %v304 = vmul.f32 %v268, %v271
      %v305 = vld [vmem:[%s2] sm:$0x1]
      %v307 = vperm.slane %v305, 0
      %v309 = vadd.f32 %v273, %v307
      %v310 = vadd.f32 %v274, %v307
      %v311 = vadd.f32 %v275, %v307
      %v312 = vadd.f32 %v276, %v307
      %v313 = vadd.f32 %v277, %v307
      %v314 = vadd.f32 %v278, %v307
      %v315 = vadd.f32 %v279, %v307
      %v316 = vadd.f32 %v280, %v307
      %v317 = vadd.f32 %v281, %v307
      %v318 = vadd.f32 %v282, %v307
      %v319 = vadd.f32 %v283, %v307
      %v320 = vadd.f32 %v284, %v307
      %v321 = vadd.f32 %v285, %v307
      %v322 = vadd.f32 %v286, %v307
      %v323 = vadd.f32 %v287, %v307
      %v324 = vadd.f32 %v288, %v307
      %v325 = vadd.f32 %v289, %v307
      %v326 = vadd.f32 %v290, %v307
      %v327 = vadd.f32 %v291, %v307
      %v328 = vadd.f32 %v292, %v307
      %v329 = vadd.f32 %v293, %v307
      %v330 = vadd.f32 %v294, %v307
      %v331 = vadd.f32 %v295, %v307
      %v332 = vadd.f32 %v296, %v307
      %v333 = vadd.f32 %v297, %v307
      %v334 = vadd.f32 %v298, %v307
      %v335 = vadd.f32 %v299, %v307
      %v336 = vadd.f32 %v300, %v307
      %v337 = vadd.f32 %v301, %v307
      %v338 = vadd.f32 %v302, %v307
      %v339 = vadd.f32 %v303, %v307
      %v340 = vadd.f32 %v304, %v307
      %v341 = vmax.f32 %v309, 0.0
      %v342 = vmax.f32 %v310, 0.0
      %v343 = vmax.f32 %v311, 0.0
      %v344 = vmax.f32 %v312, 0.0
      %v345 = vmax.f32 %v313, 0.0
      %v346 = vmax.f32 %v314, 0.0
      %v347 = vmax.f32 %v315, 0.0
      %v348 = vmax.f32 %v316, 0.0
      %v349 = vmax.f32 %v317, 0.0
      %v350 = vmax.f32 %v318, 0.0
      %v351 = vmax.f32 %v319, 0.0
      %v352 = vmax.f32 %v320, 0.0
      %v353 = vmax.f32 %v321, 0.0
      %v354 = vmax.f32 %v322, 0.0
      %v355 = vmax.f32 %v323, 0.0
      %v356 = vmax.f32 %v324, 0.0
      %v357 = vmax.f32 %v325, 0.0
      %v358 = vmax.f32 %v326, 0.0
      %v359 = vmax.f32 %v327, 0.0
      %v360 = vmax.f32 %v328, 0.0
      %v361 = vmax.f32 %v329, 0.0
      %v362 = vmax.f32 %v330, 0.0
      %v363 = vmax.f32 %v331, 0.0
      %v364 = vmax.f32 %v332, 0.0
      %v365 = vmax.f32 %v333, 0.0
      %v366 = vmax.f32 %v334, 0.0
      %v367 = vmax.f32 %v335, 0.0
      %v368 = vmax.f32 %v336, 0.0
      %v369 = vmax.f32 %v337, 0.0
      %v370 = vmax.f32 %v338, 0.0
      %v371 = vmax.f32 %v339, 0.0
      %v372 = vmax.f32 %v340, 0.0
      %vm373 = vcmask 31744
      %374 = vst.msk [vmem:[#allocation2] sm:$0xff] %vm373, 0.0
      %375 = vst.msk [vmem:[#allocation2 + $0x8] sm:$0xff] %vm373, 0.0
      %vm376 = vcmask 25600
      %377 = vst.msk [vmem:[#allocation2 + $0x10] sm:$0x3] %vm376, 0.0
      %s378 = scalar_lea.vmem [#allocation2], 408
      %379 = vst.msk [vmem:[%s378] sm:$0xff] %vm373, 0.0
      %380 = vst.msk [vmem:[%s378 + $0x8] sm:$0xff] %vm373, 0.0
      %381 = vst.msk [vmem:[%s378 + $0x10] sm:$0x3] %vm376, 0.0
      %vm382 = vcmask 24576
      %383 = vst.msk [vmem:[#allocation2] sm:$0x1] %vm382, 0.0
      %384 = vst.msk [vmem:[#allocation2 + $0x18] sm:$0x1] %vm382, 0.0
      %385 = vst.msk [vmem:[#allocation2 + $0x30] sm:$0x1] %vm382, 0.0
      %386 = vst.msk [vmem:[#allocation2 + $0x48] sm:$0x1] %vm382, 0.0
      %387 = vst.msk [vmem:[#allocation2 + $0x60] sm:$0x1] %vm382, 0.0
      %388 = vst.msk [vmem:[#allocation2 + $0x78] sm:$0x1] %vm382, 0.0
      %389 = vst.msk [vmem:[#allocation2 + $0x90] sm:$0x1] %vm382, 0.0
      %390 = vst.msk [vmem:[#allocation2 + $0xa8] sm:$0x1] %vm382, 0.0
      %391 = vst.msk [vmem:[#allocation2 + $0xc0] sm:$0x1] %vm382, 0.0
      %392 = vst.msk [vmem:[#allocation2 + $0xd8] sm:$0x1] %vm382, 0.0
      %393 = vst.msk [vmem:[#allocation2 + $0xf0] sm:$0x1] %vm382, 0.0
      %394 = vst.msk [vmem:[#allocation2 + $0x108] sm:$0x1] %vm382, 0.0
      %395 = vst.msk [vmem:[#allocation2 + $0x120] sm:$0x1] %vm382, 0.0
      %396 = vst.msk [vmem:[#allocation2 + $0x138] sm:$0x1] %vm382, 0.0
      %397 = vst.msk [vmem:[#allocation2 + $0x150] sm:$0x1] %vm382, 0.0
      %398 = vst.msk [vmem:[#allocation2 + $0x168] sm:$0x1] %vm382, 0.0
      %399 = vst.msk [vmem:[#allocation2 + $0x180] sm:$0x1] %vm382, 0.0
      %400 = vst.msk [vmem:[#allocation2 + $0x198] sm:$0x1] %vm382, 0.0
      %401 = vst.msk [vmem:[#allocation2 + $0x11] sm:$0x1] %vm382, 0.0
      %402 = vst.msk [vmem:[#allocation2 + $0x29] sm:$0x1] %vm382, 0.0
      %403 = vst.msk [vmem:[#allocation2 + $0x41] sm:$0x1] %vm382, 0.0
      %404 = vst.msk [vmem:[#allocation2 + $0x59] sm:$0x1] %vm382, 0.0
      %405 = vst.msk [vmem:[#allocation2 + $0x71] sm:$0x1] %vm382, 0.0
      %406 = vst.msk [vmem:[#allocation2 + $0x89] sm:$0x1] %vm382, 0.0
      %407 = vst.msk [vmem:[#allocation2 + $0xa1] sm:$0x1] %vm382, 0.0
      %408 = vst.msk [vmem:[#allocation2 + $0xb9] sm:$0x1] %vm382, 0.0
      %409 = vst.msk [vmem:[#allocation2 + $0xd1] sm:$0x1] %vm382, 0.0
      %410 = vst.msk [vmem:[#allocation2 + $0xe9] sm:$0x1] %vm382, 0.0
      %411 = vst.msk [vmem:[#allocation2 + $0x101] sm:$0x1] %vm382, 0.0
      %412 = vst.msk [vmem:[#allocation2 + $0x119] sm:$0x1] %vm382, 0.0
      %413 = vst.msk [vmem:[#allocation2 + $0x131] sm:$0x1] %vm382, 0.0
      %414 = vst.msk [vmem:[#allocation2 + $0x149] sm:$0x1] %vm382, 0.0
      %415 = vst.msk [vmem:[#allocation2 + $0x161] sm:$0x1] %vm382, 0.0
      %416 = vst.msk [vmem:[#allocation2 + $0x179] sm:$0x1] %vm382, 0.0
      %417 = vst.msk [vmem:[#allocation2 + $0x191] sm:$0x1] %vm382, 0.0
      %418 = vst.msk [vmem:[#allocation2 + $0x1a9] sm:$0x1] %vm382, 0.0
      %s419 = scalar_lea.vmem [#allocation2], 24
      %420 = vst.msk [vmem:[%s419 + $0x1] sm:$0xff] %vm373, %v341
      %421 = vst.msk [vmem:[%s419 + $0x9] sm:$0xff] %vm373, %v342
      %422 = vst.msk [vmem:[%s419 + $0x19] sm:$0xff] %vm373, %v343
      %423 = vst.msk [vmem:[%s419 + $0x21] sm:$0xff] %vm373, %v344
      %424 = vst.msk [vmem:[%s419 + $0x31] sm:$0xff] %vm373, %v345
      %425 = vst.msk [vmem:[%s419 + $0x39] sm:$0xff] %vm373, %v346
      %426 = vst.msk [vmem:[%s419 + $0x49] sm:$0xff] %vm373, %v347
      %427 = vst.msk [vmem:[%s419 + $0x51] sm:$0xff] %vm373, %v348
      %428 = vst.msk [vmem:[%s419 + $0x61] sm:$0xff] %vm373, %v349
      %429 = vst.msk [vmem:[%s419 + $0x69] sm:$0xff] %vm373, %v350
      %430 = vst.msk [vmem:[%s419 + $0x79] sm:$0xff] %vm373, %v351
      %431 = vst.msk [vmem:[%s419 + $0x81] sm:$0xff] %vm373, %v352
      %432 = vst.msk [vmem:[%s419 + $0x91] sm:$0xff] %vm373, %v353
      %433 = vst.msk [vmem:[%s419 + $0x99] sm:$0xff] %vm373, %v354
      %434 = vst.msk [vmem:[%s419 + $0xa9] sm:$0xff] %vm373, %v355
      %435 = vst.msk [vmem:[%s419 + $0xb1] sm:$0xff] %vm373, %v356
      %436 = vst.msk [vmem:[%s419 + $0xc1] sm:$0xff] %vm373, %v357
      %437 = vst.msk [vmem:[%s419 + $0xc9] sm:$0xff] %vm373, %v358
      %438 = vst.msk [vmem:[%s419 + $0xd9] sm:$0xff] %vm373, %v359
      %439 = vst.msk [vmem:[%s419 + $0xe1] sm:$0xff] %vm373, %v360
      %440 = vst.msk [vmem:[%s419 + $0xf1] sm:$0xff] %vm373, %v361
      %441 = vst.msk [vmem:[%s419 + $0xf9] sm:$0xff] %vm373, %v362
      %442 = vst.msk [vmem:[%s419 + $0x109] sm:$0xff] %vm373, %v363
      %443 = vst.msk [vmem:[%s419 + $0x111] sm:$0xff] %vm373, %v364
      %444 = vst.msk [vmem:[%s419 + $0x121] sm:$0xff] %vm373, %v365
      %445 = vst.msk [vmem:[%s419 + $0x129] sm:$0xff] %vm373, %v366
      %446 = vst.msk [vmem:[%s419 + $0x139] sm:$0xff] %vm373, %v367
      %447 = vst.msk [vmem:[%s419 + $0x141] sm:$0xff] %vm373, %v368
      %448 = vst.msk [vmem:[%s419 + $0x151] sm:$0xff] %vm373, %v369
      %449 = vst.msk [vmem:[%s419 + $0x159] sm:$0xff] %vm373, %v370
      %450 = vst.msk [vmem:[%s419 + $0x169] sm:$0xff] %vm373, %v371
      %451 = vst.msk [vmem:[%s419 + $0x171] sm:$0xff] %vm373, %v372
      %v452 = vld [vmem:[#allocation2] sm:$0xff]
      %v453 = vld [vmem:[#allocation2 + $0x8] sm:$0xff]
      %v454 = vld [vmem:[#allocation2 + $0x18] sm:$0xff]
      %v455 = vld [vmem:[#allocation2 + $0x20] sm:$0xff]
      %v456 = vld [vmem:[#allocation2 + $0x30] sm:$0xff]
      %v457 = vld [vmem:[#allocation2 + $0x38] sm:$0xff]
      %v458 = vld [vmem:[#allocation2 + $0x48] sm:$0xff]
      %v459 = vld [vmem:[#allocation2 + $0x50] sm:$0xff]
      %v460 = vld [vmem:[#allocation2 + $0x60] sm:$0xff]
      %v461 = vld [vmem:[#allocation2 + $0x68] sm:$0xff]
      %v462 = vld [vmem:[#allocation2 + $0x78] sm:$0xff]
      %v463 = vld [vmem:[#allocation2 + $0x80] sm:$0xff]
      %v464 = vld [vmem:[#allocation2 + $0x90] sm:$0xff]
      %v465 = vld [vmem:[#allocation2 + $0x98] sm:$0xff]
      %v466 = vld [vmem:[#allocation2 + $0xa8] sm:$0xff]
      %v467 = vld [vmem:[#allocation2 + $0xb0] sm:$0xff]
      %v468 = vld [vmem:[#allocation2 + $0xc0] sm:$0xff]
      %v469 = vld [vmem:[#allocation2 + $0xc8] sm:$0xff]
      %v470 = vld [vmem:[#allocation2 + $0xd8] sm:$0xff]
      %v471 = vld [vmem:[#allocation2 + $0xe0] sm:$0xff]
      %v472 = vld [vmem:[#allocation2 + $0xf0] sm:$0xff]
      %v473 = vld [vmem:[#allocation2 + $0xf8] sm:$0xff]
      %v474 = vld [vmem:[#allocation2 + $0x108] sm:$0xff]
      %v475 = vld [vmem:[#allocation2 + $0x110] sm:$0xff]
      %v476 = vld [vmem:[#allocation2 + $0x120] sm:$0xff]
      %v477 = vld [vmem:[#allocation2 + $0x128] sm:$0xff]
      %v478 = vld [vmem:[#allocation2 + $0x138] sm:$0xff]
      %v479 = vld [vmem:[#allocation2 + $0x140] sm:$0xff]
      %v480 = vld [vmem:[#allocation2 + $0x150] sm:$0xff]
      %v481 = vld [vmem:[#allocation2 + $0x158] sm:$0xff]
      %v482 = vld [vmem:[#allocation2 + $0x168] sm:$0xff]
      %v483 = vld [vmem:[#allocation2 + $0x170] sm:$0xff]
      %v484 = vld [vmem:[#allocation2 + $0x1] sm:$0xff]
      %v485 = vld [vmem:[#allocation2 + $0x9] sm:$0xff]
      %v486 = vld [vmem:[#allocation2 + $0x19] sm:$0xff]
      %v487 = vld [vmem:[#allocation2 + $0x21] sm:$0xff]
      %v488 = vld [vmem:[#allocation2 + $0x31] sm:$0xff]
      %v489 = vld [vmem:[#allocation2 + $0x39] sm:$0xff]
      %v490 = vld [vmem:[#allocation2 + $0x49] sm:$0xff]
      %v491 = vld [vmem:[#allocation2 + $0x51] sm:$0xff]
      %v492 = vld [vmem:[#allocation2 + $0x61] sm:$0xff]
      %v493 = vld [vmem:[#allocation2 + $0x69] sm:$0xff]
      %v494 = vld [vmem:[#allocation2 + $0x79] sm:$0xff]
      %v495 = vld [vmem:[#allocation2 + $0x81] sm:$0xff]
      %v496 = vld [vmem:[#allocation2 + $0x91] sm:$0xff]
      %v497 = vld [vmem:[#allocation2 + $0x99] sm:$0xff]
      %v498 = vld [vmem:[#allocation2 + $0xa9] sm:$0xff]
      %v499 = vld [vmem:[#allocation2 + $0xb1] sm:$0xff]
      %v500 = vld [vmem:[#allocation2 + $0xc1] sm:$0xff]
      %v501 = vld [vmem:[#allocation2 + $0xc9] sm:$0xff]
      %v502 = vld [vmem:[#allocation2 + $0xd9] sm:$0xff]
      %v503 = vld [vmem:[#allocation2 + $0xe1] sm:$0xff]
      %v504 = vld [vmem:[#allocation2 + $0xf1] sm:$0xff]
      %v505 = vld [vmem:[#allocation2 + $0xf9] sm:$0xff]
      %v506 = vld [vmem:[#allocation2 + $0x109] sm:$0xff]
      %v507 = vld [vmem:[#allocation2 + $0x111] sm:$0xff]
      %v508 = vld [vmem:[#allocation2 + $0x121] sm:$0xff]
      %v509 = vld [vmem:[#allocation2 + $0x129] sm:$0xff]
      %v510 = vld [vmem:[#allocation2 + $0x139] sm:$0xff]
      %v511 = vld [vmem:[#allocation2 + $0x141] sm:$0xff]
      %v512 = vld [vmem:[#allocation2 + $0x151] sm:$0xff]
      %v513 = vld [vmem:[#allocation2 + $0x159] sm:$0xff]
      %v514 = vld [vmem:[#allocation2 + $0x169] sm:$0xff]
      %v515 = vld [vmem:[#allocation2 + $0x171] sm:$0xff]
      %v516 = vld [vmem:[#allocation2 + $0x2] sm:$0xff]
      %v517 = vld [vmem:[#allocation2 + $0xa] sm:$0xff]
      %v518 = vld [vmem:[#allocation2 + $0x1a] sm:$0xff]
      %v519 = vld [vmem:[#allocation2 + $0x22] sm:$0xff]
      %v520 = vld [vmem:[#allocation2 + $0x32] sm:$0xff]
      %v521 = vld [vmem:[#allocation2 + $0x3a] sm:$0xff]
      %v522 = vld [vmem:[#allocation2 + $0x4a] sm:$0xff]
      %v523 = vld [vmem:[#allocation2 + $0x52] sm:$0xff]
      %v524 = vld [vmem:[#allocation2 + $0x62] sm:$0xff]
      %v525 = vld [vmem:[#allocation2 + $0x6a] sm:$0xff]
      %v526 = vld [vmem:[#allocation2 + $0x7a] sm:$0xff]
      %v527 = vld [vmem:[#allocation2 + $0x82] sm:$0xff]
      %v528 = vld [vmem:[#allocation2 + $0x92] sm:$0xff]
      %v529 = vld [vmem:[#allocation2 + $0x9a] sm:$0xff]
      %v530 = vld [vmem:[#allocation2 + $0xaa] sm:$0xff]
      %v531 = vld [vmem:[#allocation2 + $0xb2] sm:$0xff]
      %v532 = vld [vmem:[#allocation2 + $0xc2] sm:$0xff]
      %v533 = vld [vmem:[#allocation2 + $0xca] sm:$0xff]
      %v534 = vld [vmem:[#allocation2 + $0xda] sm:$0xff]
      %v535 = vld [vmem:[#allocation2 + $0xe2] sm:$0xff]
      %v536 = vld [vmem:[#allocation2 + $0xf2] sm:$0xff]
      %v537 = vld [vmem:[#allocation2 + $0xfa] sm:$0xff]
      %v538 = vld [vmem:[#allocation2 + $0x10a] sm:$0xff]
      %v539 = vld [vmem:[#allocation2 + $0x112] sm:$0xff]
      %v540 = vld [vmem:[#allocation2 + $0x122] sm:$0xff]
      %v541 = vld [vmem:[#allocation2 + $0x12a] sm:$0xff]
      %v542 = vld [vmem:[#allocation2 + $0x13a] sm:$0xff]
      %v543 = vld [vmem:[#allocation2 + $0x142] sm:$0xff]
      %v544 = vld [vmem:[#allocation2 + $0x152] sm:$0xff]
      %v545 = vld [vmem:[#allocation2 + $0x15a] sm:$0xff]
      %v546 = vld [vmem:[#allocation2 + $0x16a] sm:$0xff]
      %v547 = vld [vmem:[#allocation2 + $0x172] sm:$0xff]
      %v548 = vld [vmem:[%s419] sm:$0xff]
      %v549 = vld [vmem:[%s419 + $0x8] sm:$0xff]
      %v550 = vld [vmem:[%s419 + $0x18] sm:$0xff]
      %v551 = vld [vmem:[%s419 + $0x20] sm:$0xff]
      %v552 = vld [vmem:[%s419 + $0x30] sm:$0xff]
      %v553 = vld [vmem:[%s419 + $0x38] sm:$0xff]
      %v554 = vld [vmem:[%s419 + $0x48] sm:$0xff]
      %v555 = vld [vmem:[%s419 + $0x50] sm:$0xff]
      %v556 = vld [vmem:[%s419 + $0x60] sm:$0xff]
      %v557 = vld [vmem:[%s419 + $0x68] sm:$0xff]
      %v558 = vld [vmem:[%s419 + $0x78] sm:$0xff]
      %v559 = vld [vmem:[%s419 + $0x80] sm:$0xff]
      %v560 = vld [vmem:[%s419 + $0x90] sm:$0xff]
      %v561 = vld [vmem:[%s419 + $0x98] sm:$0xff]
      %v562 = vld [vmem:[%s419 + $0xa8] sm:$0xff]
      %v563 = vld [vmem:[%s419 + $0xb0] sm:$0xff]
      %v564 = vld [vmem:[%s419 + $0xc0] sm:$0xff]
      %v565 = vld [vmem:[%s419 + $0xc8] sm:$0xff]
      %v566 = vld [vmem:[%s419 + $0xd8] sm:$0xff]
      %v567 = vld [vmem:[%s419 + $0xe0] sm:$0xff]
      %v568 = vld [vmem:[%s419 + $0xf0] sm:$0xff]
      %v569 = vld [vmem:[%s419 + $0xf8] sm:$0xff]
      %v570 = vld [vmem:[%s419 + $0x108] sm:$0xff]
      %v571 = vld [vmem:[%s419 + $0x110] sm:$0xff]
      %v572 = vld [vmem:[%s419 + $0x120] sm:$0xff]
      %v573 = vld [vmem:[%s419 + $0x128] sm:$0xff]
      %v574 = vld [vmem:[%s419 + $0x138] sm:$0xff]
      %v575 = vld [vmem:[%s419 + $0x140] sm:$0xff]
      %v576 = vld [vmem:[%s419 + $0x150] sm:$0xff]
      %v577 = vld [vmem:[%s419 + $0x158] sm:$0xff]
      %v578 = vld [vmem:[%s419 + $0x168] sm:$0xff]
      %v579 = vld [vmem:[%s419 + $0x170] sm:$0xff]
      %v580 = vld [vmem:[%s419 + $0x1] sm:$0xff]
      %v581 = vld [vmem:[%s419 + $0x9] sm:$0xff]
      %v582 = vld [vmem:[%s419 + $0x19] sm:$0xff]
      %v583 = vld [vmem:[%s419 + $0x21] sm:$0xff]
      %v584 = vld [vmem:[%s419 + $0x31] sm:$0xff]
      %v585 = vld [vmem:[%s419 + $0x39] sm:$0xff]
      %v586 = vld [vmem:[%s419 + $0x49] sm:$0xff]
      %v587 = vld [vmem:[%s419 + $0x51] sm:$0xff]
      %v588 = vld [vmem:[%s419 + $0x61] sm:$0xff]
      %v589 = vld [vmem:[%s419 + $0x69] sm:$0xff]
      %v590 = vld [vmem:[%s419 + $0x79] sm:$0xff]
      %v591 = vld [vmem:[%s419 + $0x81] sm:$0xff]
      %v592 = vld [vmem:[%s419 + $0x91] sm:$0xff]
      %v593 = vld [vmem:[%s419 + $0x99] sm:$0xff]
      %v594 = vld [vmem:[%s419 + $0xa9] sm:$0xff]
      %v595 = vld [vmem:[%s419 + $0xb1] sm:$0xff]
      %v596 = vld [vmem:[%s419 + $0xc1] sm:$0xff]
      %v597 = vld [vmem:[%s419 + $0xc9] sm:$0xff]
      %v598 = vld [vmem:[%s419 + $0xd9] sm:$0xff]
      %v599 = vld [vmem:[%s419 + $0xe1] sm:$0xff]
      %v600 = vld [vmem:[%s419 + $0xf1] sm:$0xff]
      %v601 = vld [vmem:[%s419 + $0xf9] sm:$0xff]
      %v602 = vld [vmem:[%s419 + $0x109] sm:$0xff]
      %v603 = vld [vmem:[%s419 + $0x111] sm:$0xff]
      %v604 = vld [vmem:[%s419 + $0x121] sm:$0xff]
      %v605 = vld [vmem:[%s419 + $0x129] sm:$0xff]
      %v606 = vld [vmem:[%s419 + $0x139] sm:$0xff]
      %v607 = vld [vmem:[%s419 + $0x141] sm:$0xff]
      %v608 = vld [vmem:[%s419 + $0x151] sm:$0xff]
      %v609 = vld [vmem:[%s419 + $0x159] sm:$0xff]
      %v610 = vld [vmem:[%s419 + $0x169] sm:$0xff]
      %v611 = vld [vmem:[%s419 + $0x171] sm:$0xff]
      %v612 = vld [vmem:[%s419 + $0x2] sm:$0xff]
      %v613 = vld [vmem:[%s419 + $0xa] sm:$0xff]
      %v614 = vld [vmem:[%s419 + $0x1a] sm:$0xff]
      %v615 = vld [vmem:[%s419 + $0x22] sm:$0xff]
      %v616 = vld [vmem:[%s419 + $0x32] sm:$0xff]
      %v617 = vld [vmem:[%s419 + $0x3a] sm:$0xff]
      %v618 = vld [vmem:[%s419 + $0x4a] sm:$0xff]
      %v619 = vld [vmem:[%s419 + $0x52] sm:$0xff]
      %v620 = vld [vmem:[%s419 + $0x62] sm:$0xff]
      %v621 = vld [vmem:[%s419 + $0x6a] sm:$0xff]
      %v622 = vld [vmem:[%s419 + $0x7a] sm:$0xff]
      %v623 = vld [vmem:[%s419 + $0x82] sm:$0xff]
      %v624 = vld [vmem:[%s419 + $0x92] sm:$0xff]
      %v625 = vld [vmem:[%s419 + $0x9a] sm:$0xff]
      %v626 = vld [vmem:[%s419 + $0xaa] sm:$0xff]
      %v627 = vld [vmem:[%s419 + $0xb2] sm:$0xff]
      %v628 = vld [vmem:[%s419 + $0xc2] sm:$0xff]
      %v629 = vld [vmem:[%s419 + $0xca] sm:$0xff]
      %v630 = vld [vmem:[%s419 + $0xda] sm:$0xff]
      %v631 = vld [vmem:[%s419 + $0xe2] sm:$0xff]
      %v632 = vld [vmem:[%s419 + $0xf2] sm:$0xff]
      %v633 = vld [vmem:[%s419 + $0xfa] sm:$0xff]
      %v634 = vld [vmem:[%s419 + $0x10a] sm:$0xff]
      %v635 = vld [vmem:[%s419 + $0x112] sm:$0xff]
      %v636 = vld [vmem:[%s419 + $0x122] sm:$0xff]
      %v637 = vld [vmem:[%s419 + $0x12a] sm:$0xff]
      %v638 = vld [vmem:[%s419 + $0x13a] sm:$0xff]
      %v639 = vld [vmem:[%s419 + $0x142] sm:$0xff]
      %v640 = vld [vmem:[%s419 + $0x152] sm:$0xff]
      %v641 = vld [vmem:[%s419 + $0x15a] sm:$0xff]
      %v642 = vld [vmem:[%s419 + $0x16a] sm:$0xff]
      %v643 = vld [vmem:[%s419 + $0x172] sm:$0xff]
      %s644 = scalar_lea.vmem [#allocation2], 48
      %v645 = vld [vmem:[%s644] sm:$0xff]
      %v646 = vld [vmem:[%s644 + $0x8] sm:$0xff]
      %v647 = vld [vmem:[%s644 + $0x18] sm:$0xff]
      %v648 = vld [vmem:[%s644 + $0x20] sm:$0xff]
      %v649 = vld [vmem:[%s644 + $0x30] sm:$0xff]
      %v650 = vld [vmem:[%s644 + $0x38] sm:$0xff]
      %v651 = vld [vmem:[%s644 + $0x48] sm:$0xff]
      %v652 = vld [vmem:[%s644 + $0x50] sm:$0xff]
      %v653 = vld [vmem:[%s644 + $0x60] sm:$0xff]
      %v654 = vld [vmem:[%s644 + $0x68] sm:$0xff]
      %v655 = vld [vmem:[%s644 + $0x78] sm:$0xff]
      %v656 = vld [vmem:[%s644 + $0x80] sm:$0xff]
      %v657 = vld [vmem:[%s644 + $0x90] sm:$0xff]
      %v658 = vld [vmem:[%s644 + $0x98] sm:$0xff]
      %v659 = vld [vmem:[%s644 + $0xa8] sm:$0xff]
      %v660 = vld [vmem:[%s644 + $0xb0] sm:$0xff]
      %v661 = vld [vmem:[%s644 + $0xc0] sm:$0xff]
      %v662 = vld [vmem:[%s644 + $0xc8] sm:$0xff]
      %v663 = vld [vmem:[%s644 + $0xd8] sm:$0xff]
      %v664 = vld [vmem:[%s644 + $0xe0] sm:$0xff]
      %v665 = vld [vmem:[%s644 + $0xf0] sm:$0xff]
      %v666 = vld [vmem:[%s644 + $0xf8] sm:$0xff]
      %v667 = vld [vmem:[%s644 + $0x108] sm:$0xff]
      %v668 = vld [vmem:[%s644 + $0x110] sm:$0xff]
      %v669 = vld [vmem:[%s644 + $0x120] sm:$0xff]
      %v670 = vld [vmem:[%s644 + $0x128] sm:$0xff]
      %v671 = vld [vmem:[%s644 + $0x138] sm:$0xff]
      %v672 = vld [vmem:[%s644 + $0x140] sm:$0xff]
      %v673 = vld [vmem:[%s644 + $0x150] sm:$0xff]
      %v674 = vld [vmem:[%s644 + $0x158] sm:$0xff]
      %v675 = vld [vmem:[%s644 + $0x168] sm:$0xff]
      %v676 = vld [vmem:[%s644 + $0x170] sm:$0xff]
      %v677 = vld [vmem:[%s644 + $0x1] sm:$0xff]
      %v678 = vld [vmem:[%s644 + $0x9] sm:$0xff]
      %v679 = vld [vmem:[%s644 + $0x19] sm:$0xff]
      %v680 = vld [vmem:[%s644 + $0x21] sm:$0xff]
      %v681 = vld [vmem:[%s644 + $0x31] sm:$0xff]
      %v682 = vld [vmem:[%s644 + $0x39] sm:$0xff]
      %v683 = vld [vmem:[%s644 + $0x49] sm:$0xff]
      %v684 = vld [vmem:[%s644 + $0x51] sm:$0xff]
      %v685 = vld [vmem:[%s644 + $0x61] sm:$0xff]
      %v686 = vld [vmem:[%s644 + $0x69] sm:$0xff]
      %v687 = vld [vmem:[%s644 + $0x79] sm:$0xff]
      %v688 = vld [vmem:[%s644 + $0x81] sm:$0xff]
      %v689 = vld [vmem:[%s644 + $0x91] sm:$0xff]
      %v690 = vld [vmem:[%s644 + $0x99] sm:$0xff]
      %v691 = vld [vmem:[%s644 + $0xa9] sm:$0xff]
      %v692 = vld [vmem:[%s644 + $0xb1] sm:$0xff]
      %v693 = vld [vmem:[%s644 + $0xc1] sm:$0xff]
      %v694 = vld [vmem:[%s644 + $0xc9] sm:$0xff]
      %v695 = vld [vmem:[%s644 + $0xd9] sm:$0xff]
      %v696 = vld [vmem:[%s644 + $0xe1] sm:$0xff]
      %v697 = vld [vmem:[%s644 + $0xf1] sm:$0xff]
      %v698 = vld [vmem:[%s644 + $0xf9] sm:$0xff]
      %v699 = vld [vmem:[%s644 + $0x109] sm:$0xff]
      %v700 = vld [vmem:[%s644 + $0x111] sm:$0xff]
      %v701 = vld [vmem:[%s644 + $0x121] sm:$0xff]
      %v702 = vld [vmem:[%s644 + $0x129] sm:$0xff]
      %v703 = vld [vmem:[%s644 + $0x139] sm:$0xff]
      %v704 = vld [vmem:[%s644 + $0x141] sm:$0xff]
      %v705 = vld [vmem:[%s644 + $0x151] sm:$0xff]
      %v706 = vld [vmem:[%s644 + $0x159] sm:$0xff]
      %v707 = vld [vmem:[%s644 + $0x169] sm:$0xff]
      %v708 = vld [vmem:[%s644 + $0x171] sm:$0xff]
      %v709 = vld [vmem:[%s644 + $0x2] sm:$0xff]
      %v710 = vld [vmem:[%s644 + $0xa] sm:$0xff]
      %v711 = vld [vmem:[%s644 + $0x1a] sm:$0xff]
      %v712 = vld [vmem:[%s644 + $0x22] sm:$0xff]
      %v713 = vld [vmem:[%s644 + $0x32] sm:$0xff]
      %v714 = vld [vmem:[%s644 + $0x3a] sm:$0xff]
      %v715 = vld [vmem:[%s644 + $0x4a] sm:$0xff]
      %v716 = vld [vmem:[%s644 + $0x52] sm:$0xff]
      %v717 = vld [vmem:[%s644 + $0x62] sm:$0xff]
      %v718 = vld [vmem:[%s644 + $0x6a] sm:$0xff]
      %v719 = vld [vmem:[%s644 + $0x7a] sm:$0xff]
      %v720 = vld [vmem:[%s644 + $0x82] sm:$0xff]
      %v721 = vld [vmem:[%s644 + $0x92] sm:$0xff]
      %v722 = vld [vmem:[%s644 + $0x9a] sm:$0xff]
      %v723 = vld [vmem:[%s644 + $0xaa] sm:$0xff]
      %v724 = vld [vmem:[%s644 + $0xb2] sm:$0xff]
      %v725 = vld [vmem:[%s644 + $0xc2] sm:$0xff]
      %v726 = vld [vmem:[%s644 + $0xca] sm:$0xff]
      %v727 = vld [vmem:[%s644 + $0xda] sm:$0xff]
      %v728 = vld [vmem:[%s644 + $0xe2] sm:$0xff]
      %v729 = vld [vmem:[%s644 + $0xf2] sm:$0xff]
      %v730 = vld [vmem:[%s644 + $0xfa] sm:$0xff]
      %v731 = vld [vmem:[%s644 + $0x10a] sm:$0xff]
      %v732 = vld [vmem:[%s644 + $0x112] sm:$0xff]
      %v733 = vld [vmem:[%s644 + $0x122] sm:$0xff]
      %v734 = vld [vmem:[%s644 + $0x12a] sm:$0xff]
      %v735 = vld [vmem:[%s644 + $0x13a] sm:$0xff]
      %v736 = vld [vmem:[%s644 + $0x142] sm:$0xff]
      %v737 = vld [vmem:[%s644 + $0x152] sm:$0xff]
      %v738 = vld [vmem:[%s644 + $0x15a] sm:$0xff]
      %v739 = vld [vmem:[%s644 + $0x16a] sm:$0xff]
      %v740 = vld [vmem:[%s644 + $0x172] sm:$0xff]
      %773 = vrot.lane.b32.xlu0 %v484, 4
      %v774 = vpop.permute.xlu0 %773
      %775 = vrot.lane.b32.xlu0 %v485, 4
      %v776 = vpop.permute.xlu0 %775
      %777 = vrot.lane.b32.xlu0 %v486, 4
      %v778 = vpop.permute.xlu0 %777
      %779 = vrot.lane.b32.xlu0 %v487, 4
      %v780 = vpop.permute.xlu0 %779
      %781 = vrot.lane.b32.xlu0 %v488, 4
      %v782 = vpop.permute.xlu0 %781
      %783 = vrot.lane.b32.xlu0 %v489, 4
      %v784 = vpop.permute.xlu0 %783
      %785 = vrot.lane.b32.xlu0 %v490, 4
      %v786 = vpop.permute.xlu0 %785
      %787 = vrot.lane.b32.xlu0 %v491, 4
      %v788 = vpop.permute.xlu0 %787
      %789 = vrot.lane.b32.xlu0 %v492, 4
      %v790 = vpop.permute.xlu0 %789
      %791 = vrot.lane.b32.xlu0 %v493, 4
      %v792 = vpop.permute.xlu0 %791
      %793 = vrot.lane.b32.xlu0 %v494, 4
      %v794 = vpop.permute.xlu0 %793
      %795 = vrot.lane.b32.xlu0 %v495, 4
      %v796 = vpop.permute.xlu0 %795
      %797 = vrot.lane.b32.xlu0 %v496, 4
      %v798 = vpop.permute.xlu0 %797
      %799 = vrot.lane.b32.xlu0 %v497, 4
      %v800 = vpop.permute.xlu0 %799
      %801 = vrot.lane.b32.xlu0 %v498, 4
      %v802 = vpop.permute.xlu0 %801
      %803 = vrot.lane.b32.xlu0 %v499, 4
      %v804 = vpop.permute.xlu0 %803
      %805 = vrot.lane.b32.xlu0 %v500, 4
      %v806 = vpop.permute.xlu0 %805
      %807 = vrot.lane.b32.xlu0 %v501, 4
      %v808 = vpop.permute.xlu0 %807
      %809 = vrot.lane.b32.xlu0 %v502, 4
      %v810 = vpop.permute.xlu0 %809
      %811 = vrot.lane.b32.xlu0 %v503, 4
      %v812 = vpop.permute.xlu0 %811
      %813 = vrot.lane.b32.xlu0 %v504, 4
      %v814 = vpop.permute.xlu0 %813
      %815 = vrot.lane.b32.xlu0 %v505, 4
      %v816 = vpop.permute.xlu0 %815
      %817 = vrot.lane.b32.xlu0 %v506, 4
      %v818 = vpop.permute.xlu0 %817
      %819 = vrot.lane.b32.xlu0 %v507, 4
      %v820 = vpop.permute.xlu0 %819
      %821 = vrot.lane.b32.xlu0 %v508, 4
      %v822 = vpop.permute.xlu0 %821
      %823 = vrot.lane.b32.xlu0 %v509, 4
      %v824 = vpop.permute.xlu0 %823
      %825 = vrot.lane.b32.xlu0 %v510, 4
      %v826 = vpop.permute.xlu0 %825
      %827 = vrot.lane.b32.xlu0 %v511, 4
      %v828 = vpop.permute.xlu0 %827
      %829 = vrot.lane.b32.xlu0 %v512, 4
      %v830 = vpop.permute.xlu0 %829
      %831 = vrot.lane.b32.xlu0 %v513, 4
      %v832 = vpop.permute.xlu0 %831
      %833 = vrot.lane.b32.xlu0 %v514, 4
      %v834 = vpop.permute.xlu0 %833
      %835 = vrot.lane.b32.xlu0 %v515, 4
      %v836 = vpop.permute.xlu0 %835
      %901 = vrot.lane.b32.xlu0 %v516, 8
      %v902 = vpop.permute.xlu0 %901
      %903 = vrot.lane.b32.xlu0 %v517, 8
      %v904 = vpop.permute.xlu0 %903
      %905 = vrot.lane.b32.xlu0 %v518, 8
      %v906 = vpop.permute.xlu0 %905
      %907 = vrot.lane.b32.xlu0 %v519, 8
      %v908 = vpop.permute.xlu0 %907
      %909 = vrot.lane.b32.xlu0 %v520, 8
      %v910 = vpop.permute.xlu0 %909
      %911 = vrot.lane.b32.xlu0 %v521, 8
      %v912 = vpop.permute.xlu0 %911
      %913 = vrot.lane.b32.xlu0 %v522, 8
      %v914 = vpop.permute.xlu0 %913
      %915 = vrot.lane.b32.xlu0 %v523, 8
      %v916 = vpop.permute.xlu0 %915
      %917 = vrot.lane.b32.xlu0 %v524, 8
      %v918 = vpop.permute.xlu0 %917
      %919 = vrot.lane.b32.xlu0 %v525, 8
      %v920 = vpop.permute.xlu0 %919
      %921 = vrot.lane.b32.xlu0 %v526, 8
      %v922 = vpop.permute.xlu0 %921
      %923 = vrot.lane.b32.xlu0 %v527, 8
      %v924 = vpop.permute.xlu0 %923
      %925 = vrot.lane.b32.xlu0 %v528, 8
      %v926 = vpop.permute.xlu0 %925
      %927 = vrot.lane.b32.xlu0 %v529, 8
      %v928 = vpop.permute.xlu0 %927
      %929 = vrot.lane.b32.xlu0 %v530, 8
      %v930 = vpop.permute.xlu0 %929
      %931 = vrot.lane.b32.xlu0 %v531, 8
      %v932 = vpop.permute.xlu0 %931
      %933 = vrot.lane.b32.xlu0 %v532, 8
      %v934 = vpop.permute.xlu0 %933
      %935 = vrot.lane.b32.xlu0 %v533, 8
      %v936 = vpop.permute.xlu0 %935
      %937 = vrot.lane.b32.xlu0 %v534, 8
      %v938 = vpop.permute.xlu0 %937
      %939 = vrot.lane.b32.xlu0 %v535, 8
      %v940 = vpop.permute.xlu0 %939
      %941 = vrot.lane.b32.xlu0 %v536, 8
      %v942 = vpop.permute.xlu0 %941
      %943 = vrot.lane.b32.xlu0 %v537, 8
      %v944 = vpop.permute.xlu0 %943
      %945 = vrot.lane.b32.xlu0 %v538, 8
      %v946 = vpop.permute.xlu0 %945
      %947 = vrot.lane.b32.xlu0 %v539, 8
      %v948 = vpop.permute.xlu0 %947
      %949 = vrot.lane.b32.xlu0 %v540, 8
      %v950 = vpop.permute.xlu0 %949
      %951 = vrot.lane.b32.xlu0 %v541, 8
      %v952 = vpop.permute.xlu0 %951
      %953 = vrot.lane.b32.xlu0 %v542, 8
      %v954 = vpop.permute.xlu0 %953
      %955 = vrot.lane.b32.xlu0 %v543, 8
      %v956 = vpop.permute.xlu0 %955
      %957 = vrot.lane.b32.xlu0 %v544, 8
      %v958 = vpop.permute.xlu0 %957
      %959 = vrot.lane.b32.xlu0 %v545, 8
      %v960 = vpop.permute.xlu0 %959
      %961 = vrot.lane.b32.xlu0 %v546, 8
      %v962 = vpop.permute.xlu0 %961
      %963 = vrot.lane.b32.xlu0 %v547, 8
      %v964 = vpop.permute.xlu0 %963
      %1029 = vrot.lane.b32.xlu0 %v548, 12
      %v1030 = vpop.permute.xlu0 %1029
      %1031 = vrot.lane.b32.xlu0 %v549, 12
      %v1032 = vpop.permute.xlu0 %1031
      %1033 = vrot.lane.b32.xlu0 %v550, 12
      %v1034 = vpop.permute.xlu0 %1033
      %1035 = vrot.lane.b32.xlu0 %v551, 12
      %v1036 = vpop.permute.xlu0 %1035
      %1037 = vrot.lane.b32.xlu0 %v552, 12
      %v1038 = vpop.permute.xlu0 %1037
      %1039 = vrot.lane.b32.xlu0 %v553, 12
      %v1040 = vpop.permute.xlu0 %1039
      %1041 = vrot.lane.b32.xlu0 %v554, 12
      %v1042 = vpop.permute.xlu0 %1041
      %1043 = vrot.lane.b32.xlu0 %v555, 12
      %v1044 = vpop.permute.xlu0 %1043
      %1045 = vrot.lane.b32.xlu0 %v556, 12
      %v1046 = vpop.permute.xlu0 %1045
      %1047 = vrot.lane.b32.xlu0 %v557, 12
      %v1048 = vpop.permute.xlu0 %1047
      %1049 = vrot.lane.b32.xlu0 %v558, 12
      %v1050 = vpop.permute.xlu0 %1049
      %1051 = vrot.lane.b32.xlu0 %v559, 12
      %v1052 = vpop.permute.xlu0 %1051
      %1053 = vrot.lane.b32.xlu0 %v560, 12
      %v1054 = vpop.permute.xlu0 %1053
      %1055 = vrot.lane.b32.xlu0 %v561, 12
      %v1056 = vpop.permute.xlu0 %1055
      %1057 = vrot.lane.b32.xlu0 %v562, 12
      %v1058 = vpop.permute.xlu0 %1057
      %1059 = vrot.lane.b32.xlu0 %v563, 12
      %v1060 = vpop.permute.xlu0 %1059
      %1061 = vrot.lane.b32.xlu0 %v564, 12
      %v1062 = vpop.permute.xlu0 %1061
      %1063 = vrot.lane.b32.xlu0 %v565, 12
      %v1064 = vpop.permute.xlu0 %1063
      %1065 = vrot.lane.b32.xlu0 %v566, 12
      %v1066 = vpop.permute.xlu0 %1065
      %1067 = vrot.lane.b32.xlu0 %v567, 12
      %v1068 = vpop.permute.xlu0 %1067
      %1069 = vrot.lane.b32.xlu0 %v568, 12
      %v1070 = vpop.permute.xlu0 %1069
      %1071 = vrot.lane.b32.xlu0 %v569, 12
      %v1072 = vpop.permute.xlu0 %1071
      %1073 = vrot.lane.b32.xlu0 %v570, 12
      %v1074 = vpop.permute.xlu0 %1073
      %1075 = vrot.lane.b32.xlu0 %v571, 12
      %v1076 = vpop.permute.xlu0 %1075
      %1077 = vrot.lane.b32.xlu0 %v572, 12
      %v1078 = vpop.permute.xlu0 %1077
      %1079 = vrot.lane.b32.xlu0 %v573, 12
      %v1080 = vpop.permute.xlu0 %1079
      %1081 = vrot.lane.b32.xlu0 %v574, 12
      %v1082 = vpop.permute.xlu0 %1081
      %1083 = vrot.lane.b32.xlu0 %v575, 12
      %v1084 = vpop.permute.xlu0 %1083
      %1085 = vrot.lane.b32.xlu0 %v576, 12
      %v1086 = vpop.permute.xlu0 %1085
      %1087 = vrot.lane.b32.xlu0 %v577, 12
      %v1088 = vpop.permute.xlu0 %1087
      %1089 = vrot.lane.b32.xlu0 %v578, 12
      %v1090 = vpop.permute.xlu0 %1089
      %1091 = vrot.lane.b32.xlu0 %v579, 12
      %v1092 = vpop.permute.xlu0 %1091
      %1157 = vrot.lane.b32.xlu0 %v580, 16
      %v1158 = vpop.permute.xlu0 %1157
      %1159 = vrot.lane.b32.xlu0 %v581, 16
      %v1160 = vpop.permute.xlu0 %1159
      %1161 = vrot.lane.b32.xlu0 %v582, 16
      %v1162 = vpop.permute.xlu0 %1161
      %1163 = vrot.lane.b32.xlu0 %v583, 16
      %v1164 = vpop.permute.xlu0 %1163
      %1165 = vrot.lane.b32.xlu0 %v584, 16
      %v1166 = vpop.permute.xlu0 %1165
      %1167 = vrot.lane.b32.xlu0 %v585, 16
      %v1168 = vpop.permute.xlu0 %1167
      %1169 = vrot.lane.b32.xlu0 %v586, 16
      %v1170 = vpop.permute.xlu0 %1169
      %1171 = vrot.lane.b32.xlu0 %v587, 16
      %v1172 = vpop.permute.xlu0 %1171
      %1173 = vrot.lane.b32.xlu0 %v588, 16
      %v1174 = vpop.permute.xlu0 %1173
      %1175 = vrot.lane.b32.xlu0 %v589, 16
      %v1176 = vpop.permute.xlu0 %1175
      %1177 = vrot.lane.b32.xlu0 %v590, 16
      %v1178 = vpop.permute.xlu0 %1177
      %1179 = vrot.lane.b32.xlu0 %v591, 16
      %v1180 = vpop.permute.xlu0 %1179
      %1181 = vrot.lane.b32.xlu0 %v592, 16
      %v1182 = vpop.permute.xlu0 %1181
      %1183 = vrot.lane.b32.xlu0 %v593, 16
      %v1184 = vpop.permute.xlu0 %1183
      %1185 = vrot.lane.b32.xlu0 %v594, 16
      %v1186 = vpop.permute.xlu0 %1185
      %1187 = vrot.lane.b32.xlu0 %v595, 16
      %v1188 = vpop.permute.xlu0 %1187
      %1189 = vrot.lane.b32.xlu0 %v596, 16
      %v1190 = vpop.permute.xlu0 %1189
      %1191 = vrot.lane.b32.xlu0 %v597, 16
      %v1192 = vpop.permute.xlu0 %1191
      %1193 = vrot.lane.b32.xlu0 %v598, 16
      %v1194 = vpop.permute.xlu0 %1193
      %1195 = vrot.lane.b32.xlu0 %v599, 16
      %v1196 = vpop.permute.xlu0 %1195
      %1197 = vrot.lane.b32.xlu0 %v600, 16
      %v1198 = vpop.permute.xlu0 %1197
      %1199 = vrot.lane.b32.xlu0 %v601, 16
      %v1200 = vpop.permute.xlu0 %1199
      %1201 = vrot.lane.b32.xlu0 %v602, 16
      %v1202 = vpop.permute.xlu0 %1201
      %1203 = vrot.lane.b32.xlu0 %v603, 16
      %v1204 = vpop.permute.xlu0 %1203
      %1205 = vrot.lane.b32.xlu0 %v604, 16
      %v1206 = vpop.permute.xlu0 %1205
      %1207 = vrot.lane.b32.xlu0 %v605, 16
      %v1208 = vpop.permute.xlu0 %1207
      %1209 = vrot.lane.b32.xlu0 %v606, 16
      %v1210 = vpop.permute.xlu0 %1209
      %1211 = vrot.lane.b32.xlu0 %v607, 16
      %v1212 = vpop.permute.xlu0 %1211
      %1213 = vrot.lane.b32.xlu0 %v608, 16
      %v1214 = vpop.permute.xlu0 %1213
      %1215 = vrot.lane.b32.xlu0 %v609, 16
      %v1216 = vpop.permute.xlu0 %1215
      %1217 = vrot.lane.b32.xlu0 %v610, 16
      %v1218 = vpop.permute.xlu0 %1217
      %1219 = vrot.lane.b32.xlu0 %v611, 16
      %v1220 = vpop.permute.xlu0 %1219
      %1285 = vrot.lane.b32.xlu0 %v612, 20
      %v1286 = vpop.permute.xlu0 %1285
      %1287 = vrot.lane.b32.xlu0 %v613, 20
      %v1288 = vpop.permute.xlu0 %1287
      %1289 = vrot.lane.b32.xlu0 %v614, 20
      %v1290 = vpop.permute.xlu0 %1289
      %1291 = vrot.lane.b32.xlu0 %v615, 20
      %v1292 = vpop.permute.xlu0 %1291
      %1293 = vrot.lane.b32.xlu0 %v616, 20
      %v1294 = vpop.permute.xlu0 %1293
      %1295 = vrot.lane.b32.xlu0 %v617, 20
      %v1296 = vpop.permute.xlu0 %1295
      %1297 = vrot.lane.b32.xlu0 %v618, 20
      %v1298 = vpop.permute.xlu0 %1297
      %1299 = vrot.lane.b32.xlu0 %v619, 20
      %v1300 = vpop.permute.xlu0 %1299
      %1301 = vrot.lane.b32.xlu0 %v620, 20
      %v1302 = vpop.permute.xlu0 %1301
      %1303 = vrot.lane.b32.xlu0 %v621, 20
      %v1304 = vpop.permute.xlu0 %1303
      %1305 = vrot.lane.b32.xlu0 %v622, 20
      %v1306 = vpop.permute.xlu0 %1305
      %1307 = vrot.lane.b32.xlu0 %v623, 20
      %v1308 = vpop.permute.xlu0 %1307
      %1309 = vrot.lane.b32.xlu0 %v624, 20
      %v1310 = vpop.permute.xlu0 %1309
      %1311 = vrot.lane.b32.xlu0 %v625, 20
      %v1312 = vpop.permute.xlu0 %1311
      %1313 = vrot.lane.b32.xlu0 %v626, 20
      %v1314 = vpop.permute.xlu0 %1313
      %1315 = vrot.lane.b32.xlu0 %v627, 20
      %v1316 = vpop.permute.xlu0 %1315
      %1317 = vrot.lane.b32.xlu0 %v628, 20
      %v1318 = vpop.permute.xlu0 %1317
      %1319 = vrot.lane.b32.xlu0 %v629, 20
      %v1320 = vpop.permute.xlu0 %1319
      %1321 = vrot.lane.b32.xlu0 %v630, 20
      %v1322 = vpop.permute.xlu0 %1321
      %1323 = vrot.lane.b32.xlu0 %v631, 20
      %v1324 = vpop.permute.xlu0 %1323
      %1325 = vrot.lane.b32.xlu0 %v632, 20
      %v1326 = vpop.permute.xlu0 %1325
      %1327 = vrot.lane.b32.xlu0 %v633, 20
      %v1328 = vpop.permute.xlu0 %1327
      %1329 = vrot.lane.b32.xlu0 %v634, 20
      %v1330 = vpop.permute.xlu0 %1329
      %1331 = vrot.lane.b32.xlu0 %v635, 20
      %v1332 = vpop.permute.xlu0 %1331
      %1333 = vrot.lane.b32.xlu0 %v636, 20
      %v1334 = vpop.permute.xlu0 %1333
      %1335 = vrot.lane.b32.xlu0 %v637, 20
      %v1336 = vpop.permute.xlu0 %1335
      %1337 = vrot.lane.b32.xlu0 %v638, 20
      %v1338 = vpop.permute.xlu0 %1337
      %1339 = vrot.lane.b32.xlu0 %v639, 20
      %v1340 = vpop.permute.xlu0 %1339
      %1341 = vrot.lane.b32.xlu0 %v640, 20
      %v1342 = vpop.permute.xlu0 %1341
      %1343 = vrot.lane.b32.xlu0 %v641, 20
      %v1344 = vpop.permute.xlu0 %1343
      %1345 = vrot.lane.b32.xlu0 %v642, 20
      %v1346 = vpop.permute.xlu0 %1345
      %1347 = vrot.lane.b32.xlu0 %v643, 20
      %v1348 = vpop.permute.xlu0 %1347
      %1413 = vrot.lane.b32.xlu0 %v645, 24
      %v1414 = vpop.permute.xlu0 %1413
      %1415 = vrot.lane.b32.xlu0 %v646, 24
      %v1416 = vpop.permute.xlu0 %1415
      %1417 = vrot.lane.b32.xlu0 %v647, 24
      %v1418 = vpop.permute.xlu0 %1417
      %1419 = vrot.lane.b32.xlu0 %v648, 24
      %v1420 = vpop.permute.xlu0 %1419
      %1421 = vrot.lane.b32.xlu0 %v649, 24
      %v1422 = vpop.permute.xlu0 %1421
      %1423 = vrot.lane.b32.xlu0 %v650, 24
      %v1424 = vpop.permute.xlu0 %1423
      %1425 = vrot.lane.b32.xlu0 %v651, 24
      %v1426 = vpop.permute.xlu0 %1425
      %1427 = vrot.lane.b32.xlu0 %v652, 24
      %v1428 = vpop.permute.xlu0 %1427
      %1429 = vrot.lane.b32.xlu0 %v653, 24
      %v1430 = vpop.permute.xlu0 %1429
      %1431 = vrot.lane.b32.xlu0 %v654, 24
      %v1432 = vpop.permute.xlu0 %1431
      %1433 = vrot.lane.b32.xlu0 %v655, 24
      %v1434 = vpop.permute.xlu0 %1433
      %1435 = vrot.lane.b32.xlu0 %v656, 24
      %v1436 = vpop.permute.xlu0 %1435
      %1437 = vrot.lane.b32.xlu0 %v657, 24
      %v1438 = vpop.permute.xlu0 %1437
      %1439 = vrot.lane.b32.xlu0 %v658, 24
      %v1440 = vpop.permute.xlu0 %1439
      %1441 = vrot.lane.b32.xlu0 %v659, 24
      %v1442 = vpop.permute.xlu0 %1441
      %1443 = vrot.lane.b32.xlu0 %v660, 24
      %v1444 = vpop.permute.xlu0 %1443
      %1445 = vrot.lane.b32.xlu0 %v661, 24
      %v1446 = vpop.permute.xlu0 %1445
      %1447 = vrot.lane.b32.xlu0 %v662, 24
      %v1448 = vpop.permute.xlu0 %1447
      %1449 = vrot.lane.b32.xlu0 %v663, 24
      %v1450 = vpop.permute.xlu0 %1449
      %1451 = vrot.lane.b32.xlu0 %v664, 24
      %v1452 = vpop.permute.xlu0 %1451
      %1453 = vrot.lane.b32.xlu0 %v665, 24
      %v1454 = vpop.permute.xlu0 %1453
      %1455 = vrot.lane.b32.xlu0 %v666, 24
      %v1456 = vpop.permute.xlu0 %1455
      %1457 = vrot.lane.b32.xlu0 %v667, 24
      %v1458 = vpop.permute.xlu0 %1457
      %1459 = vrot.lane.b32.xlu0 %v668, 24
      %v1460 = vpop.permute.xlu0 %1459
      %1461 = vrot.lane.b32.xlu0 %v669, 24
      %v1462 = vpop.permute.xlu0 %1461
      %1463 = vrot.lane.b32.xlu0 %v670, 24
      %v1464 = vpop.permute.xlu0 %1463
      %1465 = vrot.lane.b32.xlu0 %v671, 24
      %v1466 = vpop.permute.xlu0 %1465
      %1467 = vrot.lane.b32.xlu0 %v672, 24
      %v1468 = vpop.permute.xlu0 %1467
      %1469 = vrot.lane.b32.xlu0 %v673, 24
      %v1470 = vpop.permute.xlu0 %1469
      %1471 = vrot.lane.b32.xlu0 %v674, 24
      %v1472 = vpop.permute.xlu0 %1471
      %1473 = vrot.lane.b32.xlu0 %v675, 24
      %v1474 = vpop.permute.xlu0 %1473
      %1475 = vrot.lane.b32.xlu0 %v676, 24
      %v1476 = vpop.permute.xlu0 %1475
      %1541 = vrot.lane.b32.xlu0 %v677, 28
      %v1542 = vpop.permute.xlu0 %1541
      %1543 = vrot.lane.b32.xlu0 %v678, 28
      %v1544 = vpop.permute.xlu0 %1543
      %1545 = vrot.lane.b32.xlu0 %v679, 28
      %v1546 = vpop.permute.xlu0 %1545
      %1547 = vrot.lane.b32.xlu0 %v680, 28
      %v1548 = vpop.permute.xlu0 %1547
      %1549 = vrot.lane.b32.xlu0 %v681, 28
      %v1550 = vpop.permute.xlu0 %1549
      %1551 = vrot.lane.b32.xlu0 %v682, 28
      %v1552 = vpop.permute.xlu0 %1551
      %1553 = vrot.lane.b32.xlu0 %v683, 28
      %v1554 = vpop.permute.xlu0 %1553
      %1555 = vrot.lane.b32.xlu0 %v684, 28
      %v1556 = vpop.permute.xlu0 %1555
      %1557 = vrot.lane.b32.xlu0 %v685, 28
      %v1558 = vpop.permute.xlu0 %1557
      %1559 = vrot.lane.b32.xlu0 %v686, 28
      %v1560 = vpop.permute.xlu0 %1559
      %1561 = vrot.lane.b32.xlu0 %v687, 28
      %v1562 = vpop.permute.xlu0 %1561
      %1563 = vrot.lane.b32.xlu0 %v688, 28
      %v1564 = vpop.permute.xlu0 %1563
      %1565 = vrot.lane.b32.xlu0 %v689, 28
      %v1566 = vpop.permute.xlu0 %1565
      %1567 = vrot.lane.b32.xlu0 %v690, 28
      %v1568 = vpop.permute.xlu0 %1567
      %1569 = vrot.lane.b32.xlu0 %v691, 28
      %v1570 = vpop.permute.xlu0 %1569
      %1571 = vrot.lane.b32.xlu0 %v692, 28
      %v1572 = vpop.permute.xlu0 %1571
      %1573 = vrot.lane.b32.xlu0 %v693, 28
      %v1574 = vpop.permute.xlu0 %1573
      %1575 = vrot.lane.b32.xlu0 %v694, 28
      %v1576 = vpop.permute.xlu0 %1575
      %1577 = vrot.lane.b32.xlu0 %v695, 28
      %v1578 = vpop.permute.xlu0 %1577
      %1579 = vrot.lane.b32.xlu0 %v696, 28
      %v1580 = vpop.permute.xlu0 %1579
      %1581 = vrot.lane.b32.xlu0 %v697, 28
      %v1582 = vpop.permute.xlu0 %1581
      %1583 = vrot.lane.b32.xlu0 %v698, 28
      %v1584 = vpop.permute.xlu0 %1583
      %1585 = vrot.lane.b32.xlu0 %v699, 28
      %v1586 = vpop.permute.xlu0 %1585
      %1587 = vrot.lane.b32.xlu0 %v700, 28
      %v1588 = vpop.permute.xlu0 %1587
      %1589 = vrot.lane.b32.xlu0 %v701, 28
      %v1590 = vpop.permute.xlu0 %1589
      %1591 = vrot.lane.b32.xlu0 %v702, 28
      %v1592 = vpop.permute.xlu0 %1591
      %1593 = vrot.lane.b32.xlu0 %v703, 28
      %v1594 = vpop.permute.xlu0 %1593
      %1595 = vrot.lane.b32.xlu0 %v704, 28
      %v1596 = vpop.permute.xlu0 %1595
      %1597 = vrot.lane.b32.xlu0 %v705, 28
      %v1598 = vpop.permute.xlu0 %1597
      %1599 = vrot.lane.b32.xlu0 %v706, 28
      %v1600 = vpop.permute.xlu0 %1599
      %1601 = vrot.lane.b32.xlu0 %v707, 28
      %v1602 = vpop.permute.xlu0 %1601
      %1603 = vrot.lane.b32.xlu0 %v708, 28
      %v1604 = vpop.permute.xlu0 %1603
      %1669 = vrot.lane.b32.xlu0 %v709, 32
      %v1670 = vpop.permute.xlu0 %1669
      %1671 = vrot.lane.b32.xlu0 %v710, 32
      %v1672 = vpop.permute.xlu0 %1671
      %1673 = vrot.lane.b32.xlu0 %v711, 32
      %v1674 = vpop.permute.xlu0 %1673
      %1675 = vrot.lane.b32.xlu0 %v712, 32
      %v1676 = vpop.permute.xlu0 %1675
      %1677 = vrot.lane.b32.xlu0 %v713, 32
      %v1678 = vpop.permute.xlu0 %1677
      %1679 = vrot.lane.b32.xlu0 %v714, 32
      %v1680 = vpop.permute.xlu0 %1679
      %1681 = vrot.lane.b32.xlu0 %v715, 32
      %v1682 = vpop.permute.xlu0 %1681
      %1683 = vrot.lane.b32.xlu0 %v716, 32
      %v1684 = vpop.permute.xlu0 %1683
      %1685 = vrot.lane.b32.xlu0 %v717, 32
      %v1686 = vpop.permute.xlu0 %1685
      %1687 = vrot.lane.b32.xlu0 %v718, 32
      %v1688 = vpop.permute.xlu0 %1687
      %1689 = vrot.lane.b32.xlu0 %v719, 32
      %v1690 = vpop.permute.xlu0 %1689
      %1691 = vrot.lane.b32.xlu0 %v720, 32
      %v1692 = vpop.permute.xlu0 %1691
      %1693 = vrot.lane.b32.xlu0 %v721, 32
      %v1694 = vpop.permute.xlu0 %1693
      %1695 = vrot.lane.b32.xlu0 %v722, 32
      %v1696 = vpop.permute.xlu0 %1695
      %1697 = vrot.lane.b32.xlu0 %v723, 32
      %v1698 = vpop.permute.xlu0 %1697
      %1699 = vrot.lane.b32.xlu0 %v724, 32
      %v1700 = vpop.permute.xlu0 %1699
      %1701 = vrot.lane.b32.xlu0 %v725, 32
      %v1702 = vpop.permute.xlu0 %1701
      %1703 = vrot.lane.b32.xlu0 %v726, 32
      %v1704 = vpop.permute.xlu0 %1703
      %1705 = vrot.lane.b32.xlu0 %v727, 32
      %v1706 = vpop.permute.xlu0 %1705
      %1707 = vrot.lane.b32.xlu0 %v728, 32
      %v1708 = vpop.permute.xlu0 %1707
      %1709 = vrot.lane.b32.xlu0 %v729, 32
      %v1710 = vpop.permute.xlu0 %1709
      %1711 = vrot.lane.b32.xlu0 %v730, 32
      %v1712 = vpop.permute.xlu0 %1711
      %1713 = vrot.lane.b32.xlu0 %v731, 32
      %v1714 = vpop.permute.xlu0 %1713
      %1715 = vrot.lane.b32.xlu0 %v732, 32
      %v1716 = vpop.permute.xlu0 %1715
      %1717 = vrot.lane.b32.xlu0 %v733, 32
      %v1718 = vpop.permute.xlu0 %1717
      %1719 = vrot.lane.b32.xlu0 %v734, 32
      %v1720 = vpop.permute.xlu0 %1719
      %1721 = vrot.lane.b32.xlu0 %v735, 32
      %v1722 = vpop.permute.xlu0 %1721
      %1723 = vrot.lane.b32.xlu0 %v736, 32
      %v1724 = vpop.permute.xlu0 %1723
      %1725 = vrot.lane.b32.xlu0 %v737, 32
      %v1726 = vpop.permute.xlu0 %1725
      %1727 = vrot.lane.b32.xlu0 %v738, 32
      %v1728 = vpop.permute.xlu0 %1727
      %1729 = vrot.lane.b32.xlu0 %v739, 32
      %v1730 = vpop.permute.xlu0 %1729
      %1731 = vrot.lane.b32.xlu0 %v740, 32
      %v1732 = vpop.permute.xlu0 %1731
      %v1765 = vsel %vm373, %v452, %v774
      %v1766 = vsel %vm373, %v453, %v776
      %v1767 = vsel %vm373, %v454, %v778
      %v1768 = vsel %vm373, %v455, %v780
      %v1769 = vsel %vm373, %v456, %v782
      %v1770 = vsel %vm373, %v457, %v784
      %v1771 = vsel %vm373, %v458, %v786
      %v1772 = vsel %vm373, %v459, %v788
      %v1773 = vsel %vm373, %v460, %v790
      %v1774 = vsel %vm373, %v461, %v792
      %v1775 = vsel %vm373, %v462, %v794
      %v1776 = vsel %vm373, %v463, %v796
      %v1777 = vsel %vm373, %v464, %v798
      %v1778 = vsel %vm373, %v465, %v800
      %v1779 = vsel %vm373, %v466, %v802
      %v1780 = vsel %vm373, %v467, %v804
      %v1781 = vsel %vm373, %v468, %v806
      %v1782 = vsel %vm373, %v469, %v808
      %v1783 = vsel %vm373, %v470, %v810
      %v1784 = vsel %vm373, %v471, %v812
      %v1785 = vsel %vm373, %v472, %v814
      %v1786 = vsel %vm373, %v473, %v816
      %v1787 = vsel %vm373, %v474, %v818
      %v1788 = vsel %vm373, %v475, %v820
      %v1789 = vsel %vm373, %v476, %v822
      %v1790 = vsel %vm373, %v477, %v824
      %v1791 = vsel %vm373, %v478, %v826
      %v1792 = vsel %vm373, %v479, %v828
      %v1793 = vsel %vm373, %v480, %v830
      %v1794 = vsel %vm373, %v481, %v832
      %v1795 = vsel %vm373, %v482, %v834
      %v1796 = vsel %vm373, %v483, %v836
      %vm1797 = vcmask 64512
      %v1798 = vsel %vm1797, %v1765, %v902
      %v1799 = vsel %vm1797, %v1766, %v904
      %v1800 = vsel %vm1797, %v1767, %v906
      %v1801 = vsel %vm1797, %v1768, %v908
      %v1802 = vsel %vm1797, %v1769, %v910
      %v1803 = vsel %vm1797, %v1770, %v912
      %v1804 = vsel %vm1797, %v1771, %v914
      %v1805 = vsel %vm1797, %v1772, %v916
      %v1806 = vsel %vm1797, %v1773, %v918
      %v1807 = vsel %vm1797, %v1774, %v920
      %v1808 = vsel %vm1797, %v1775, %v922
      %v1809 = vsel %vm1797, %v1776, %v924
      %v1810 = vsel %vm1797, %v1777, %v926
      %v1811 = vsel %vm1797, %v1778, %v928
      %v1812 = vsel %vm1797, %v1779, %v930
      %v1813 = vsel %vm1797, %v1780, %v932
      %v1814 = vsel %vm1797, %v1781, %v934
      %v1815 = vsel %vm1797, %v1782, %v936
      %v1816 = vsel %vm1797, %v1783, %v938
      %v1817 = vsel %vm1797, %v1784, %v940
      %v1818 = vsel %vm1797, %v1785, %v942
      %v1819 = vsel %vm1797, %v1786, %v944
      %v1820 = vsel %vm1797, %v1787, %v946
      %v1821 = vsel %vm1797, %v1788, %v948
      %v1822 = vsel %vm1797, %v1789, %v950
      %v1823 = vsel %vm1797, %v1790, %v952
      %v1824 = vsel %vm1797, %v1791, %v954
      %v1825 = vsel %vm1797, %v1792, %v956
      %v1826 = vsel %vm1797, %v1793, %v958
      %v1827 = vsel %vm1797, %v1794, %v960
      %v1828 = vsel %vm1797, %v1795, %v962
      %v1829 = vsel %vm1797, %v1796, %v964
      %vm1830 = vcmask 97280
      %v1831 = vsel %vm1830, %v1798, %v1030
      %v1832 = vsel %vm1830, %v1799, %v1032
      %v1833 = vsel %vm1830, %v1800, %v1034
      %v1834 = vsel %vm1830, %v1801, %v1036
      %v1835 = vsel %vm1830, %v1802, %v1038
      %v1836 = vsel %vm1830, %v1803, %v1040
      %v1837 = vsel %vm1830, %v1804, %v1042
      %v1838 = vsel %vm1830, %v1805, %v1044
      %v1839 = vsel %vm1830, %v1806, %v1046
      %v1840 = vsel %vm1830, %v1807, %v1048
      %v1841 = vsel %vm1830, %v1808, %v1050
      %v1842 = vsel %vm1830, %v1809, %v1052
      %v1843 = vsel %vm1830, %v1810, %v1054
      %v1844 = vsel %vm1830, %v1811, %v1056
      %v1845 = vsel %vm1830, %v1812, %v1058
      %v1846 = vsel %vm1830, %v1813, %v1060
      %v1847 = vsel %vm1830, %v1814, %v1062
      %v1848 = vsel %vm1830, %v1815, %v1064
      %v1849 = vsel %vm1830, %v1816, %v1066
      %v1850 = vsel %vm1830, %v1817, %v1068
      %v1851 = vsel %vm1830, %v1818, %v1070
      %v1852 = vsel %vm1830, %v1819, %v1072
      %v1853 = vsel %vm1830, %v1820, %v1074
      %v1854 = vsel %vm1830, %v1821, %v1076
      %v1855 = vsel %vm1830, %v1822, %v1078
      %v1856 = vsel %vm1830, %v1823, %v1080
      %v1857 = vsel %vm1830, %v1824, %v1082
      %v1858 = vsel %vm1830, %v1825, %v1084
      %v1859 = vsel %vm1830, %v1826, %v1086
      %v1860 = vsel %vm1830, %v1827, %v1088
      %v1861 = vsel %vm1830, %v1828, %v1090
      %v1862 = vsel %vm1830, %v1829, %v1092
      %vm1863 = vcmask 130048
      %v1864 = vsel %vm1863, %v1831, %v1158
      %v1865 = vsel %vm1863, %v1832, %v1160
      %v1866 = vsel %vm1863, %v1833, %v1162
      %v1867 = vsel %vm1863, %v1834, %v1164
      %v1868 = vsel %vm1863, %v1835, %v1166
      %v1869 = vsel %vm1863, %v1836, %v1168
      %v1870 = vsel %vm1863, %v1837, %v1170
      %v1871 = vsel %vm1863, %v1838, %v1172
      %v1872 = vsel %vm1863, %v1839, %v1174
      %v1873 = vsel %vm1863, %v1840, %v1176
      %v1874 = vsel %vm1863, %v1841, %v1178
      %v1875 = vsel %vm1863, %v1842, %v1180
      %v1876 = vsel %vm1863, %v1843, %v1182
      %v1877 = vsel %vm1863, %v1844, %v1184
      %v1878 = vsel %vm1863, %v1845, %v1186
      %v1879 = vsel %vm1863, %v1846, %v1188
      %v1880 = vsel %vm1863, %v1847, %v1190
      %v1881 = vsel %vm1863, %v1848, %v1192
      %v1882 = vsel %vm1863, %v1849, %v1194
      %v1883 = vsel %vm1863, %v1850, %v1196
      %v1884 = vsel %vm1863, %v1851, %v1198
      %v1885 = vsel %vm1863, %v1852, %v1200
      %v1886 = vsel %vm1863, %v1853, %v1202
      %v1887 = vsel %vm1863, %v1854, %v1204
      %v1888 = vsel %vm1863, %v1855, %v1206
      %v1889 = vsel %vm1863, %v1856, %v1208
      %v1890 = vsel %vm1863, %v1857, %v1210
      %v1891 = vsel %vm1863, %v1858, %v1212
      %v1892 = vsel %vm1863, %v1859, %v1214
      %v1893 = vsel %vm1863, %v1860, %v1216
      %v1894 = vsel %vm1863, %v1861, %v1218
      %v1895 = vsel %vm1863, %v1862, %v1220
      %vm1896 = vcmask 162816
      %v1897 = vsel %vm1896, %v1864, %v1286
      %v1898 = vsel %vm1896, %v1865, %v1288
      %v1899 = vsel %vm1896, %v1866, %v1290
      %v1900 = vsel %vm1896, %v1867, %v1292
      %v1901 = vsel %vm1896, %v1868, %v1294
      %v1902 = vsel %vm1896, %v1869, %v1296
      %v1903 = vsel %vm1896, %v1870, %v1298
      %v1904 = vsel %vm1896, %v1871, %v1300
      %v1905 = vsel %vm1896, %v1872, %v1302
      %v1906 = vsel %vm1896, %v1873, %v1304
      %v1907 = vsel %vm1896, %v1874, %v1306
      %v1908 = vsel %vm1896, %v1875, %v1308
      %v1909 = vsel %vm1896, %v1876, %v1310
      %v1910 = vsel %vm1896, %v1877, %v1312
      %v1911 = vsel %vm1896, %v1878, %v1314
      %v1912 = vsel %vm1896, %v1879, %v1316
      %v1913 = vsel %vm1896, %v1880, %v1318
      %v1914 = vsel %vm1896, %v1881, %v1320
      %v1915 = vsel %vm1896, %v1882, %v1322
      %v1916 = vsel %vm1896, %v1883, %v1324
      %v1917 = vsel %vm1896, %v1884, %v1326
      %v1918 = vsel %vm1896, %v1885, %v1328
      %v1919 = vsel %vm1896, %v1886, %v1330
      %v1920 = vsel %vm1896, %v1887, %v1332
      %v1921 = vsel %vm1896, %v1888, %v1334
      %v1922 = vsel %vm1896, %v1889, %v1336
      %v1923 = vsel %vm1896, %v1890, %v1338
      %v1924 = vsel %vm1896, %v1891, %v1340
      %v1925 = vsel %vm1896, %v1892, %v1342
      %v1926 = vsel %vm1896, %v1893, %v1344
      %v1927 = vsel %vm1896, %v1894, %v1346
      %v1928 = vsel %vm1896, %v1895, %v1348
      %vm1929 = vcmask 195584
      %v1930 = vsel %vm1929, %v1897, %v1414
      %v1931 = vsel %vm1929, %v1898, %v1416
      %v1932 = vsel %vm1929, %v1899, %v1418
      %v1933 = vsel %vm1929, %v1900, %v1420
      %v1934 = vsel %vm1929, %v1901, %v1422
      %v1935 = vsel %vm1929, %v1902, %v1424
      %v1936 = vsel %vm1929, %v1903, %v1426
      %v1937 = vsel %vm1929, %v1904, %v1428
      %v1938 = vsel %vm1929, %v1905, %v1430
      %v1939 = vsel %vm1929, %v1906, %v1432
      %v1940 = vsel %vm1929, %v1907, %v1434
      %v1941 = vsel %vm1929, %v1908, %v1436
      %v1942 = vsel %vm1929, %v1909, %v1438
      %v1943 = vsel %vm1929, %v1910, %v1440
      %v1944 = vsel %vm1929, %v1911, %v1442
      %v1945 = vsel %vm1929, %v1912, %v1444
      %v1946 = vsel %vm1929, %v1913, %v1446
      %v1947 = vsel %vm1929, %v1914, %v1448
      %v1948 = vsel %vm1929, %v1915, %v1450
      %v1949 = vsel %vm1929, %v1916, %v1452
      %v1950 = vsel %vm1929, %v1917, %v1454
      %v1951 = vsel %vm1929, %v1918, %v1456
      %v1952 = vsel %vm1929, %v1919, %v1458
      %v1953 = vsel %vm1929, %v1920, %v1460
      %v1954 = vsel %vm1929, %v1921, %v1462
      %v1955 = vsel %vm1929, %v1922, %v1464
      %v1956 = vsel %vm1929, %v1923, %v1466
      %v1957 = vsel %vm1929, %v1924, %v1468
      %v1958 = vsel %vm1929, %v1925, %v1470
      %v1959 = vsel %vm1929, %v1926, %v1472
      %v1960 = vsel %vm1929, %v1927, %v1474
      %v1961 = vsel %vm1929, %v1928, %v1476
      %vm1962 = vcmask 228352
      %v1963 = vsel %vm1962, %v1930, %v1542
      %v1964 = vsel %vm1962, %v1931, %v1544
      %v1965 = vsel %vm1962, %v1932, %v1546
      %v1966 = vsel %vm1962, %v1933, %v1548
      %v1967 = vsel %vm1962, %v1934, %v1550
      %v1968 = vsel %vm1962, %v1935, %v1552
      %v1969 = vsel %vm1962, %v1936, %v1554
      %v1970 = vsel %vm1962, %v1937, %v1556
      %v1971 = vsel %vm1962, %v1938, %v1558
      %v1972 = vsel %vm1962, %v1939, %v1560
      %v1973 = vsel %vm1962, %v1940, %v1562
      %v1974 = vsel %vm1962, %v1941, %v1564
      %v1975 = vsel %vm1962, %v1942, %v1566
      %v1976 = vsel %vm1962, %v1943, %v1568
      %v1977 = vsel %vm1962, %v1944, %v1570
      %v1978 = vsel %vm1962, %v1945, %v1572
      %v1979 = vsel %vm1962, %v1946, %v1574
      %v1980 = vsel %vm1962, %v1947, %v1576
      %v1981 = vsel %vm1962, %v1948, %v1578
      %v1982 = vsel %vm1962, %v1949, %v1580
      %v1983 = vsel %vm1962, %v1950, %v1582
      %v1984 = vsel %vm1962, %v1951, %v1584
      %v1985 = vsel %vm1962, %v1952, %v1586
      %v1986 = vsel %vm1962, %v1953, %v1588
      %v1987 = vsel %vm1962, %v1954, %v1590
      %v1988 = vsel %vm1962, %v1955, %v1592
      %v1989 = vsel %vm1962, %v1956, %v1594
      %v1990 = vsel %vm1962, %v1957, %v1596
      %v1991 = vsel %vm1962, %v1958, %v1598
      %v1992 = vsel %vm1962, %v1959, %v1600
      %v1993 = vsel %vm1962, %v1960, %v1602
      %v1994 = vsel %vm1962, %v1961, %v1604
      %vm1995 = vcmask 261120
      %v1996 = vsel %vm1995, %v1963, %v1670
      %v1997 = vsel %vm1995, %v1964, %v1672
      %v1998 = vsel %vm1995, %v1965, %v1674
      %v1999 = vsel %vm1995, %v1966, %v1676
      %v2000 = vsel %vm1995, %v1967, %v1678
      %v2001 = vsel %vm1995, %v1968, %v1680
      %v2002 = vsel %vm1995, %v1969, %v1682
      %v2003 = vsel %vm1995, %v1970, %v1684
      %v2004 = vsel %vm1995, %v1971, %v1686
      %v2005 = vsel %vm1995, %v1972, %v1688
      %v2006 = vsel %vm1995, %v1973, %v1690
      %v2007 = vsel %vm1995, %v1974, %v1692
      %v2008 = vsel %vm1995, %v1975, %v1694
      %v2009 = vsel %vm1995, %v1976, %v1696
      %v2010 = vsel %vm1995, %v1977, %v1698
      %v2011 = vsel %vm1995, %v1978, %v1700
      %v2012 = vsel %vm1995, %v1979, %v1702
      %v2013 = vsel %vm1995, %v1980, %v1704
      %v2014 = vsel %vm1995, %v1981, %v1706
      %v2015 = vsel %vm1995, %v1982, %v1708
      %v2016 = vsel %vm1995, %v1983, %v1710
      %v2017 = vsel %vm1995, %v1984, %v1712
      %v2018 = vsel %vm1995, %v1985, %v1714
      %v2019 = vsel %vm1995, %v1986, %v1716
      %v2020 = vsel %vm1995, %v1987, %v1718
      %v2021 = vsel %vm1995, %v1988, %v1720
      %v2022 = vsel %vm1995, %v1989, %v1722
      %v2023 = vsel %vm1995, %v1990, %v1724
      %v2024 = vsel %vm1995, %v1991, %v1726
      %v2025 = vsel %vm1995, %v1992, %v1728
      %v2026 = vsel %vm1995, %v1993, %v1730
      %v2027 = vsel %vm1995, %v1994, %v1732
      %v2028 = vpack.c.bf16 %v1997, %v1996
      %v2029 = vpack.c.bf16 %v1999, %v1998
      %v2030 = vpack.c.bf16 %v2001, %v2000
      %v2031 = vpack.c.bf16 %v2003, %v2002
      %v2032 = vpack.c.bf16 %v2005, %v2004
      %v2033 = vpack.c.bf16 %v2007, %v2006
      %v2034 = vpack.c.bf16 %v2009, %v2008
      %v2035 = vpack.c.bf16 %v2011, %v2010
      %v2036 = vpack.c.bf16 %v2013, %v2012
      %v2037 = vpack.c.bf16 %v2015, %v2014
      %v2038 = vpack.c.bf16 %v2017, %v2016
      %v2039 = vpack.c.bf16 %v2019, %v2018
      %v2040 = vpack.c.bf16 %v2021, %v2020
      %v2041 = vpack.c.bf16 %v2023, %v2022
      %v2042 = vpack.c.bf16 %v2025, %v2024
      %v2043 = vpack.c.bf16 %v2027, %v2026
      %v2044 = vld [vmem:[%s3] sm:$0xf]
      %v2045 = vld [vmem:[%s3 + $0x4] sm:$0xf]
      %v2046 = vld [vmem:[%s3 + $0x8] sm:$0xf]
      %v2047 = vld [vmem:[%s3 + $0xc] sm:$0xf]
      %v2048 = vld [vmem:[%s3 + $0x10] sm:$0x3]
      %v2054 = vunpack.c.l.b16 %v2044
      %v2055 = vunpack.c.l.b16 %v2045
      %v2056 = vunpack.c.l.b16 %v2046
      %v2057 = vunpack.c.l.b16 %v2047
      %v2058 = vunpack.c.l.b16 %v2048
      %v2059 = vpack.c.b16 %v2055, %v2054
      %v2060 = vpack.c.b16 %v2057, %v2056
      %v2061 = vpack.c.b16 %v2058, %v2058
      %vm2064 = vcmask 293888
      %v2066 = vsel %vm2064, %v2028, 0
      %v2069 = vsel %vm2064, %v2029, 0
      %v2072 = vsel %vm2064, %v2030, 0
      %v2075 = vsel %vm2064, %v2031, 0
      %v2078 = vsel %vm2064, %v2032, 0
      %v2081 = vsel %vm2064, %v2033, 0
      %v2084 = vsel %vm2064, %v2034, 0
      %v2087 = vsel %vm2064, %v2035, 0
      %v2090 = vsel %vm2064, %v2036, 0
      %v2093 = vsel %vm2064, %v2037, 0
      %v2096 = vsel %vm2064, %v2038, 0
      %v2099 = vsel %vm2064, %v2039, 0
      %v2102 = vsel %vm2064, %v2040, 0
      %v2105 = vsel %vm2064, %v2041, 0
      %v2108 = vsel %vm2064, %v2042, 0
      %v2111 = vsel %vm2064, %v2043, 0
      %vm2113 = vcmask 1041408
      %v2115 = vsel %vm2113, %v2061, 0
      %2117 = vmatpush.bf16.msra.mxu0 0
      %2118 = vmatpush.bf16.msra.mxu0 0
      %2119 = vmatpush.bf16.msra.mxu0 0
      %2120 = vmatpush.bf16.msra.mxu0 0
      %2121 = vmatpush.bf16.msra.mxu0 0
      %2122 = vmatpush.bf16.msra.mxu0 %v2115
      %2123 = vmatpush.bf16.msra.mxu0 %v2060
      %2124 = vmatpush.bf16.msra.mxu0 %v2059
      %2125 = vmatmul.bf16.gmra.mxu0 %v2066
      %v2126 = vpop.f32.mrf.mxu0
      %v2127 = vadd.f32 0.0, %v2126
      %v2128 = vpop.f32.mrf.mxu0
      %v2129 = vadd.f32 0.0, %v2128
      %2130 = vmatmul.bf16.gmra.mxu0 %v2069
      %v2131 = vpop.f32.mrf.mxu0
      %v2132 = vadd.f32 0.0, %v2131
      %v2133 = vpop.f32.mrf.mxu0
      %v2134 = vadd.f32 0.0, %v2133
      %2135 = vmatmul.bf16.gmra.mxu0 %v2072
      %v2136 = vpop.f32.mrf.mxu0
      %v2137 = vadd.f32 0.0, %v2136
      %v2138 = vpop.f32.mrf.mxu0
      %v2139 = vadd.f32 0.0, %v2138
      %2140 = vmatmul.bf16.gmra.mxu0 %v2075
      %v2141 = vpop.f32.mrf.mxu0
      %v2142 = vadd.f32 0.0, %v2141
      %v2143 = vpop.f32.mrf.mxu0
      %v2144 = vadd.f32 0.0, %v2143
      %2145 = vmatmul.bf16.gmra.mxu0 %v2078
      %v2146 = vpop.f32.mrf.mxu0
      %v2147 = vadd.f32 0.0, %v2146
      %v2148 = vpop.f32.mrf.mxu0
      %v2149 = vadd.f32 0.0, %v2148
      %2150 = vmatmul.bf16.gmra.mxu0 %v2081
      %v2151 = vpop.f32.mrf.mxu0
      %v2152 = vadd.f32 0.0, %v2151
      %v2153 = vpop.f32.mrf.mxu0
      %v2154 = vadd.f32 0.0, %v2153
      %2155 = vmatmul.bf16.gmra.mxu0 %v2084
      %v2156 = vpop.f32.mrf.mxu0
      %v2157 = vadd.f32 0.0, %v2156
      %v2158 = vpop.f32.mrf.mxu0
      %v2159 = vadd.f32 0.0, %v2158
      %2160 = vmatmul.bf16.gmra.mxu0 %v2087
      %v2161 = vpop.f32.mrf.mxu0
      %v2162 = vadd.f32 0.0, %v2161
      %v2163 = vpop.f32.mrf.mxu0
      %v2164 = vadd.f32 0.0, %v2163
      %2165 = vmatmul.bf16.gmra.mxu0 %v2090
      %v2166 = vpop.f32.mrf.mxu0
      %v2167 = vadd.f32 0.0, %v2166
      %v2168 = vpop.f32.mrf.mxu0
      %v2169 = vadd.f32 0.0, %v2168
      %2170 = vmatmul.bf16.gmra.mxu0 %v2093
      %v2171 = vpop.f32.mrf.mxu0
      %v2172 = vadd.f32 0.0, %v2171
      %v2173 = vpop.f32.mrf.mxu0
      %v2174 = vadd.f32 0.0, %v2173
      %2175 = vmatmul.bf16.gmra.mxu0 %v2096
      %v2176 = vpop.f32.mrf.mxu0
      %v2177 = vadd.f32 0.0, %v2176
      %v2178 = vpop.f32.mrf.mxu0
      %v2179 = vadd.f32 0.0, %v2178
      %2180 = vmatmul.bf16.gmra.mxu0 %v2099
      %v2181 = vpop.f32.mrf.mxu0
      %v2182 = vadd.f32 0.0, %v2181
      %v2183 = vpop.f32.mrf.mxu0
      %v2184 = vadd.f32 0.0, %v2183
      %2185 = vmatmul.bf16.gmra.mxu0 %v2102
      %v2186 = vpop.f32.mrf.mxu0
      %v2187 = vadd.f32 0.0, %v2186
      %v2188 = vpop.f32.mrf.mxu0
      %v2189 = vadd.f32 0.0, %v2188
      %2190 = vmatmul.bf16.gmra.mxu0 %v2105
      %v2191 = vpop.f32.mrf.mxu0
      %v2192 = vadd.f32 0.0, %v2191
      %v2193 = vpop.f32.mrf.mxu0
      %v2194 = vadd.f32 0.0, %v2193
      %2195 = vmatmul.bf16.gmra.mxu0 %v2108
      %v2196 = vpop.f32.mrf.mxu0
      %v2197 = vadd.f32 0.0, %v2196
      %v2198 = vpop.f32.mrf.mxu0
      %v2199 = vadd.f32 0.0, %v2198
      %2200 = vmatmul.bf16.gmra.mxu0 %v2111
      %v2201 = vpop.f32.mrf.mxu0
      %v2202 = vadd.f32 0.0, %v2201
      %v2203 = vpop.f32.mrf.mxu0
      %v2204 = vadd.f32 0.0, %v2203
      %2205 = vdwg.mxu0
      %2206 = vst.msk [vmem:[%s231] sm:$0xff] %vm373, %v2127
      %2207 = vst.msk [vmem:[%s231 + $0x8] sm:$0xff] %vm373, %v2129
      %2208 = vst.msk [vmem:[%s231 + $0x10] sm:$0xff] %vm373, %v2132
      %2209 = vst.msk [vmem:[%s231 + $0x18] sm:$0xff] %vm373, %v2134
      %2210 = vst.msk [vmem:[%s231 + $0x20] sm:$0xff] %vm373, %v2137
      %2211 = vst.msk [vmem:[%s231 + $0x28] sm:$0xff] %vm373, %v2139
      %2212 = vst.msk [vmem:[%s231 + $0x30] sm:$0xff] %vm373, %v2142
      %2213 = vst.msk [vmem:[%s231 + $0x38] sm:$0xff] %vm373, %v2144
      %2214 = vst.msk [vmem:[%s231 + $0x40] sm:$0xff] %vm373, %v2147
      %2215 = vst.msk [vmem:[%s231 + $0x48] sm:$0xff] %vm373, %v2149
      %2216 = vst.msk [vmem:[%s231 + $0x50] sm:$0xff] %vm373, %v2152
      %2217 = vst.msk [vmem:[%s231 + $0x58] sm:$0xff] %vm373, %v2154
      %2218 = vst.msk [vmem:[%s231 + $0x60] sm:$0xff] %vm373, %v2157
      %2219 = vst.msk [vmem:[%s231 + $0x68] sm:$0xff] %vm373, %v2159
      %2220 = vst.msk [vmem:[%s231 + $0x70] sm:$0xff] %vm373, %v2162
      %2221 = vst.msk [vmem:[%s231 + $0x78] sm:$0xff] %vm373, %v2164
      %2222 = vst.msk [vmem:[%s231 + $0x80] sm:$0xff] %vm373, %v2167
      %2223 = vst.msk [vmem:[%s231 + $0x88] sm:$0xff] %vm373, %v2169
      %2224 = vst.msk [vmem:[%s231 + $0x90] sm:$0xff] %vm373, %v2172
      %2225 = vst.msk [vmem:[%s231 + $0x98] sm:$0xff] %vm373, %v2174
      %2226 = vst.msk [vmem:[%s231 + $0xa0] sm:$0xff] %vm373, %v2177
      %2227 = vst.msk [vmem:[%s231 + $0xa8] sm:$0xff] %vm373, %v2179
      %2228 = vst.msk [vmem:[%s231 + $0xb0] sm:$0xff] %vm373, %v2182
      %2229 = vst.msk [vmem:[%s231 + $0xb8] sm:$0xff] %vm373, %v2184
      %2230 = vst.msk [vmem:[%s231 + $0xc0] sm:$0xff] %vm373, %v2187
      %2231 = vst.msk [vmem:[%s231 + $0xc8] sm:$0xff] %vm373, %v2189
      %2232 = vst.msk [vmem:[%s231 + $0xd0] sm:$0xff] %vm373, %v2192
      %2233 = vst.msk [vmem:[%s231 + $0xd8] sm:$0xff] %vm373, %v2194
      %2234 = vst.msk [vmem:[%s231 + $0xe0] sm:$0xff] %vm373, %v2197
      %2235 = vst.msk [vmem:[%s231 + $0xe8] sm:$0xff] %vm373, %v2199
      %2236 = vst.msk [vmem:[%s231 + $0xf0] sm:$0xff] %vm373, %v2202
      %2237 = vst.msk [vmem:[%s231 + $0xf8] sm:$0xff] %vm373, %v2204
      %v2238 = vsel %vm373, %v2127, 0.0
      %v2239 = vsel %vm373, %v2129, 0.0
      %v2240 = vadd.f32 %v2238, %v2239
      %v2241 = vsel %vm373, %v2132, 0.0
      %v2242 = vadd.f32 %v2240, %v2241
      %v2243 = vsel %vm373, %v2134, 0.0
      %v2244 = vadd.f32 %v2242, %v2243
      %v2245 = vsel %vm373, %v2137, 0.0
      %v2246 = vadd.f32 %v2244, %v2245
      %v2247 = vsel %vm373, %v2139, 0.0
      %v2248 = vadd.f32 %v2246, %v2247
      %v2249 = vsel %vm373, %v2142, 0.0
      %v2250 = vadd.f32 %v2248, %v2249
      %v2251 = vsel %vm373, %v2144, 0.0
      %v2252 = vadd.f32 %v2250, %v2251
      %v2253 = vsel %vm373, %v2147, 0.0
      %v2254 = vadd.f32 %v2252, %v2253
      %v2255 = vsel %vm373, %v2149, 0.0
      %v2256 = vadd.f32 %v2254, %v2255
      %v2257 = vsel %vm373, %v2152, 0.0
      %v2258 = vadd.f32 %v2256, %v2257
      %v2259 = vsel %vm373, %v2154, 0.0
      %v2260 = vadd.f32 %v2258, %v2259
      %v2261 = vsel %vm373, %v2157, 0.0
      %v2262 = vadd.f32 %v2260, %v2261
      %v2263 = vsel %vm373, %v2159, 0.0
      %v2264 = vadd.f32 %v2262, %v2263
      %v2265 = vsel %vm373, %v2162, 0.0
      %v2266 = vadd.f32 %v2264, %v2265
      %v2267 = vsel %vm373, %v2164, 0.0
      %v2268 = vadd.f32 %v2266, %v2267
      %v2269 = vsel %vm373, %v2167, 0.0
      %v2270 = vadd.f32 %v2268, %v2269
      %v2271 = vsel %vm373, %v2169, 0.0
      %v2272 = vadd.f32 %v2270, %v2271
      %v2273 = vsel %vm373, %v2172, 0.0
      %v2274 = vadd.f32 %v2272, %v2273
      %v2275 = vsel %vm373, %v2174, 0.0
      %v2276 = vadd.f32 %v2274, %v2275
      %v2277 = vsel %vm373, %v2177, 0.0
      %v2278 = vadd.f32 %v2276, %v2277
      %v2279 = vsel %vm373, %v2179, 0.0
      %v2280 = vadd.f32 %v2278, %v2279
      %v2281 = vsel %vm373, %v2182, 0.0
      %v2282 = vadd.f32 %v2280, %v2281
      %v2283 = vsel %vm373, %v2184, 0.0
      %v2284 = vadd.f32 %v2282, %v2283
      %v2285 = vsel %vm373, %v2187, 0.0
      %v2286 = vadd.f32 %v2284, %v2285
      %v2287 = vsel %vm373, %v2189, 0.0
      %v2288 = vadd.f32 %v2286, %v2287
      %v2289 = vsel %vm373, %v2192, 0.0
      %v2290 = vadd.f32 %v2288, %v2289
      %v2291 = vsel %vm373, %v2194, 0.0
      %v2292 = vadd.f32 %v2290, %v2291
      %v2293 = vsel %vm373, %v2197, 0.0
      %v2294 = vadd.f32 %v2292, %v2293
      %v2295 = vsel %vm373, %v2199, 0.0
      %v2296 = vadd.f32 %v2294, %v2295
      %v2297 = vsel %vm373, %v2202, 0.0
      %v2298 = vadd.f32 %v2296, %v2297
      %v2299 = vsel %vm373, %v2204, 0.0
      %v2300 = vadd.f32 %v2298, %v2299
      %v2301 = vrot.slane %v2300, 4
      %v2302 = vadd.f32 %v2300, %v2301
      %v2303 = vrot.slane %v2302, 2
      %v2304 = vadd.f32 %v2302, %v2303
      %v2305 = vrot.slane %v2304, 1
      %v2306 = vadd.f32 %v2304, %v2305
      %2307 = vst.msk [vmem:[%s235] sm:$0x1] %vm382, %v2306
      %v2308 = vmul.f32 %v2127, %v2127
      %v2309 = vmul.f32 %v2129, %v2129
      %v2310 = vmul.f32 %v2132, %v2132
      %v2311 = vmul.f32 %v2134, %v2134
      %v2312 = vmul.f32 %v2137, %v2137
      %v2313 = vmul.f32 %v2139, %v2139
      %v2314 = vmul.f32 %v2142, %v2142
      %v2315 = vmul.f32 %v2144, %v2144
      %v2316 = vmul.f32 %v2147, %v2147
      %v2317 = vmul.f32 %v2149, %v2149
      %v2318 = vmul.f32 %v2152, %v2152
      %v2319 = vmul.f32 %v2154, %v2154
      %v2320 = vmul.f32 %v2157, %v2157
      %v2321 = vmul.f32 %v2159, %v2159
      %v2322 = vmul.f32 %v2162, %v2162
      %v2323 = vmul.f32 %v2164, %v2164
      %v2324 = vmul.f32 %v2167, %v2167
      %v2325 = vmul.f32 %v2169, %v2169
      %v2326 = vmul.f32 %v2172, %v2172
      %v2327 = vmul.f32 %v2174, %v2174
      %v2328 = vmul.f32 %v2177, %v2177
      %v2329 = vmul.f32 %v2179, %v2179
      %v2330 = vmul.f32 %v2182, %v2182
      %v2331 = vmul.f32 %v2184, %v2184
      %v2332 = vmul.f32 %v2187, %v2187
      %v2333 = vmul.f32 %v2189, %v2189
      %v2334 = vmul.f32 %v2192, %v2192
      %v2335 = vmul.f32 %v2194, %v2194
      %v2336 = vmul.f32 %v2197, %v2197
      %v2337 = vmul.f32 %v2199, %v2199
      %v2338 = vmul.f32 %v2202, %v2202
      %v2339 = vmul.f32 %v2204, %v2204
      %v2340 = vsel %vm373, %v2308, 0.0
      %v2341 = vsel %vm373, %v2309, 0.0
      %v2342 = vadd.f32 %v2340, %v2341
      %v2343 = vsel %vm373, %v2310, 0.0
      %v2344 = vadd.f32 %v2342, %v2343
      %v2345 = vsel %vm373, %v2311, 0.0
      %v2346 = vadd.f32 %v2344, %v2345
      %v2347 = vsel %vm373, %v2312, 0.0
      %v2348 = vadd.f32 %v2346, %v2347
      %v2349 = vsel %vm373, %v2313, 0.0
      %v2350 = vadd.f32 %v2348, %v2349
      %v2351 = vsel %vm373, %v2314, 0.0
      %v2352 = vadd.f32 %v2350, %v2351
      %v2353 = vsel %vm373, %v2315, 0.0
      %v2354 = vadd.f32 %v2352, %v2353
      %v2355 = vsel %vm373, %v2316, 0.0
      %v2356 = vadd.f32 %v2354, %v2355
      %v2357 = vsel %vm373, %v2317, 0.0
      %v2358 = vadd.f32 %v2356, %v2357
      %v2359 = vsel %vm373, %v2318, 0.0
      %v2360 = vadd.f32 %v2358, %v2359
      %v2361 = vsel %vm373, %v2319, 0.0
      %v2362 = vadd.f32 %v2360, %v2361
      %v2363 = vsel %vm373, %v2320, 0.0
      %v2364 = vadd.f32 %v2362, %v2363
      %v2365 = vsel %vm373, %v2321, 0.0
      %v2366 = vadd.f32 %v2364, %v2365
      %v2367 = vsel %vm373, %v2322, 0.0
      %v2368 = vadd.f32 %v2366, %v2367
      %v2369 = vsel %vm373, %v2323, 0.0
      %v2370 = vadd.f32 %v2368, %v2369
      %v2371 = vsel %vm373, %v2324, 0.0
      %v2372 = vadd.f32 %v2370, %v2371
      %v2373 = vsel %vm373, %v2325, 0.0
      %v2374 = vadd.f32 %v2372, %v2373
      %v2375 = vsel %vm373, %v2326, 0.0
      %v2376 = vadd.f32 %v2374, %v2375
      %v2377 = vsel %vm373, %v2327, 0.0
      %v2378 = vadd.f32 %v2376, %v2377
      %v2379 = vsel %vm373, %v2328, 0.0
      %v2380 = vadd.f32 %v2378, %v2379
      %v2381 = vsel %vm373, %v2329, 0.0
      %v2382 = vadd.f32 %v2380, %v2381
      %v2383 = vsel %vm373, %v2330, 0.0
      %v2384 = vadd.f32 %v2382, %v2383
      %v2385 = vsel %vm373, %v2331, 0.0
      %v2386 = vadd.f32 %v2384, %v2385
      %v2387 = vsel %vm373, %v2332, 0.0
      %v2388 = vadd.f32 %v2386, %v2387
      %v2389 = vsel %vm373, %v2333, 0.0
      %v2390 = vadd.f32 %v2388, %v2389
      %v2391 = vsel %vm373, %v2334, 0.0
      %v2392 = vadd.f32 %v2390, %v2391
      %v2393 = vsel %vm373, %v2335, 0.0
      %v2394 = vadd.f32 %v2392, %v2393
      %v2395 = vsel %vm373, %v2336, 0.0
      %v2396 = vadd.f32 %v2394, %v2395
      %v2397 = vsel %vm373, %v2337, 0.0
      %v2398 = vadd.f32 %v2396, %v2397
      %v2399 = vsel %vm373, %v2338, 0.0
      %v2400 = vadd.f32 %v2398, %v2399
      %v2401 = vsel %vm373, %v2339, 0.0
      %v2402 = vadd.f32 %v2400, %v2401
      %v2403 = vrot.slane %v2402, 4
      %v2404 = vadd.f32 %v2402, %v2403
      %v2405 = vrot.slane %v2404, 2
      %v2406 = vadd.f32 %v2404, %v2405
      %v2407 = vrot.slane %v2406, 1
      %v2408 = vadd.f32 %v2406, %v2407
      %2409 = vst.msk [vmem:[%s235 + $0x1] sm:$0x1] %vm382, %v2408
      %p2410 = scmp.lt.s32.totalorder %s17, 1
      %s2411 = scalar_select %p2410, %s17, 1
      %s2412 = smul.addr %s2411, 32
      %s2413 = smul.addr %s2412, 8
      %s2414 = scalar_lea.vmem %s4, %s2413
      %p2415 = scmp.lt.s32.totalorder %s17, 1
      %s2416 = scalar_select %p2415, %s17, 1
      %s2417 = smul.addr %s2416, 2
      %s2418 = scalar_lea.vmem %s5, %s2417
      // Predicated region
      $region37: #{resblock_forward_nhwc.5} parent=35 // pred_check
        %p2419 = pneg %p124
      $region38: #{resblock_forward_nhwc.5} parent=35 // pred_check_branch
        %2421 = sbr.rel (%p2419) target = $region40
      $region39: #{resblock_forward_nhwc.5} parent=35 // pred_region
        _
      $region40: #{resblock_forward_nhwc.5} parent=35 // pred_fallthru
        _
      // Predicated region
      $region41: #{resblock_forward_nhwc.5} parent=35 // pred_check
        %p2422 = pneg %p150
      $region42: #{resblock_forward_nhwc.5} parent=35 // pred_check_branch
        %2424 = sbr.rel (%p2422) target = $region44
      $region43: #{resblock_forward_nhwc.5} parent=35 // pred_region
        _
      $region44: #{resblock_forward_nhwc.5} parent=35 // pred_fallthru
        _
    $region36: #{resblock_forward_nhwc.5} parent=5 // pred_fallthru
      _
    %p2425 = scmp.le.s32.totalorder 2, %s12
    // Predicated region
    $region45: #{resblock_forward_nhwc.5} parent=5 // pred_check
      %p2426 = pneg %p2425
    $region46: #{resblock_forward_nhwc.5} parent=5 // pred_check_branch
      %2428 = sbr.rel (%p2426) target = $region48
    $region47: #{resblock_forward_nhwc.5} parent=5 // pred_region
      %s2429 = ssub.s32 %s12, 2
      // Predicated region
      $region49: #{resblock_forward_nhwc.5} parent=47 // pred_check
        %p2430 = pneg %p130
      $region50: #{resblock_forward_nhwc.5} parent=47 // pred_check_branch
        %2432 = sbr.rel (%p2430) target = $region52
      $region51: #{resblock_forward_nhwc.5} parent=47 // pred_region
        %p2433 = scmp.lt.s32.totalorder %s18, 1
        %s2434 = scalar_select %p2433, %s18, 1
        %s2435 = smul.addr %s2434, 32
        %s2436 = smul.addr %s2435, 8
        %s2437 = scalar_lea.vmem %s4, %s2436
      $region52: #{resblock_forward_nhwc.5} parent=47 // pred_fallthru
        _
      // Predicated region
      $region53: #{resblock_forward_nhwc.5} parent=47 // pred_check
        %p2438 = pneg %p156
      $region54: #{resblock_forward_nhwc.5} parent=47 // pred_check_branch
        %2440 = sbr.rel (%p2438) target = $region56
      $region55: #{resblock_forward_nhwc.5} parent=47 // pred_region
        %p2441 = scmp.lt.s32.totalorder %s18, 1
        %s2442 = scalar_select %p2441, %s18, 1
        %s2443 = smul.addr %s2442, 2
        %s2444 = scalar_lea.vmem %s5, %s2443
      $region56: #{resblock_forward_nhwc.5} parent=47 // pred_fallthru
        _
    $region48: #{resblock_forward_nhwc.5} parent=5 // pred_fallthru
      _
  $region6: #{resblock_forward_nhwc.5} parent=0 // loop_footer
    %s16 = sadd.s32 1, %s12
  $region7: #{resblock_forward_nhwc.5} parent=0 // loop_footer_branch
    %11 = sbr.rel target = $region3
  $region8: #{resblock_forward_nhwc.5} parent=0 // loop_exit
    _

</llo_original>
